<compile_context>
chip_gen: v6e
topology: v6e:2x2x1
jax: 0.10.0
libtpu: 0.0.40
codegen_flags: <defaults>
</compile_context>

<pallas_src>
import functools

import jax
import jax.numpy as jnp
from jax.experimental import pallas as pl
from jax.experimental.pallas import tpu as pltpu


def _gru_cell(x, h, w_ih_t, w_hh_t, b_ih, b_hh, hid):
    """PyTorch GRUCell math. x:[B,E], h:[B,H], w_*_t pre-transposed, b_*:[1,3H]."""
    gi = jnp.dot(x, w_ih_t, preferred_element_type=jnp.float32) + b_ih   # [B, 3H]
    gh = jnp.dot(h, w_hh_t, preferred_element_type=jnp.float32) + b_hh   # [B, 3H]
    r = jax.nn.sigmoid(gi[:, 0:hid] + gh[:, 0:hid])
    z = jax.nn.sigmoid(gi[:, hid:2 * hid] + gh[:, hid:2 * hid])
    n = jnp.tanh(gi[:, 2 * hid:3 * hid] + r * gh[:, 2 * hid:3 * hid])
    return (1.0 - z) * n + z * h


def _encoder_kernel(src_ref, emb_ref,
                    wih_f_ref, whh_f_ref, bih_f_ref, bhh_f_ref,
                    wih_b_ref, whh_b_ref, bih_b_ref, bhh_b_ref,
                    wfc_ref, bfc_ref,
                    enc_out_ref, sent_ref,
                    *, seq_len, batch, enc_hid):
    vocab, _ = emb_ref.shape
    sb = seq_len * batch

    # ---- embedding lookup via one-hot matmul (exact for f32) ----
    tok = src_ref[...]                                           # [S*B, 1] int32
    lane_ids = jax.lax.broadcasted_iota(jnp.int32, (sb, vocab), 1)
    onehot = (tok == lane_ids).astype(jnp.float32)               # [S*B, V]
    embedded = jnp.dot(onehot, emb_ref[...],
                       preferred_element_type=jnp.float32)       # [S*B, E]
    # TODO(synk): nn.Dropout(p=0.5) is treated as identity (eval mode); a
    # training-mode variant would use pltpu.prng_seed / prng_random_bits.

    wih_f = wih_f_ref[...]; whh_f = whh_f_ref[...]
    bih_f = bih_f_ref[...]; bhh_f = bhh_f_ref[...]
    wih_b = wih_b_ref[...]; whh_b = whh_b_ref[...]
    bih_b = bih_b_ref[...]; bhh_b = bhh_b_ref[...]

    # ---- forward direction (t = 0 .. S-1), unrolled (S is small & static) ----
    h = jnp.zeros((batch, enc_hid), jnp.float32)
    fwd = []
    for t in range(seq_len):
        x_t = embedded[t * batch:(t + 1) * batch, :]
        h = _gru_cell(x_t, h, wih_f, whh_f, bih_f, bhh_f, enc_hid)
        fwd.append(h)

    # ---- backward direction (t = S-1 .. 0) ----
    h = jnp.zeros((batch, enc_hid), jnp.float32)
    bwd = [None] * seq_len
    for t in reversed(range(seq_len)):
        x_t = embedded[t * batch:(t + 1) * batch, :]
        h = _gru_cell(x_t, h, wih_b, whh_b, bih_b, bhh_b, enc_hid)
        bwd[t] = h

    # ---- write enc_hidden_states [S, B, 2H] (static first-axis indices) ----
    for t in range(seq_len):
        enc_out_ref[t, :, :] = jnp.concatenate([fwd[t], bwd[t]], axis=-1)

    # ---- sent = relu(fc(cat(last_forward, first_backward))) ----
    cat = jnp.concatenate([fwd[seq_len - 1], bwd[0]], axis=-1)   # [B, 2H]
    sent = jnp.dot(cat, wfc_ref[...],
                   preferred_element_type=jnp.float32) + bfc_ref[...]
    sent_ref[...] = jnp.maximum(sent, 0.0)


def bidirectional_encoder_forward(src, params):
    """Pallas equivalent of BidirectionalEncoder.forward (eval mode).

    src: [S, B] int32 token ids.
    params: PyTorch-layout weights:
      emb [V, E]; w_ih_{f,b} [3H, E]; w_hh_{f,b} [3H, H]; b_ih_{f,b}, b_hh_{f,b} [3H];
      w_fc [dec, 2H]; b_fc [dec].
    returns (enc_hidden_states [S, B, 2H] f32, sent [B, dec] f32)
    """
    S, B = src.shape
    V, E = params["emb"].shape
    H = params["w_hh_f"].shape[1]
    dec = params["w_fc"].shape[0]

    src_flat = src.reshape(S * B, 1).astype(jnp.int32)

    args = (
        src_flat,
        params["emb"].astype(jnp.float32),
        params["w_ih_f"].T, params["w_hh_f"].T,
        params["b_ih_f"].reshape(1, -1), params["b_hh_f"].reshape(1, -1),
        params["w_ih_b"].T, params["w_hh_b"].T,
        params["b_ih_b"].reshape(1, -1), params["b_hh_b"].reshape(1, -1),
        params["w_fc"].T, params["b_fc"].reshape(1, -1),
    )

    out_shape = (
        jax.ShapeDtypeStruct((S, B, 2 * H), jnp.float32),
        jax.ShapeDtypeStruct((B, dec), jnp.float32),
    )

    vmem_spec = pl.BlockSpec(memory_space=pltpu.MemorySpace.VMEM)

    flops = (2 * S * B * V * E                       # embedding one-hot matmul
             + 2 * 2 * S * (2 * B * E * 3 * H + 2 * B * H * 3 * H)  # GRU gates
             + 2 * B * (2 * H) * dec)                # fc
    transcendentals = 2 * 2 * S * B * 3 * H          # sigmoid/tanh per gate
    bytes_accessed = int(sum(int(a.size) * a.dtype.itemsize for a in args)
                         + (S * B * 2 * H + B * dec) * 4)

    kernel = functools.partial(_encoder_kernel, seq_len=S, batch=B, enc_hid=H)

    return pl.pallas_call(
        kernel,
        out_shape=out_shape,
        in_specs=[vmem_spec] * len(args),
        out_specs=(vmem_spec, vmem_spec),
        cost_estimate=pl.CostEstimate(flops=int(flops),
                                      transcendentals=int(transcendentals),
                                      bytes_accessed=bytes_accessed),
    )(*args)


def _reference(src, params):
    """Pure-JAX reference with identical math (for correctness check)."""
    S, B = src.shape
    H = params["w_hh_f"].shape[1]
    emb = params["emb"][src]                          # [S, B, E]

    def cell(x, h, w_ih, w_hh, b_ih, b_hh):
        gi = x @ w_ih.T + b_ih
        gh = h @ w_hh.T + b_hh
        r = jax.nn.sigmoid(gi[:, :H] + gh[:, :H])
        z = jax.nn.sigmoid(gi[:, H:2 * H] + gh[:, H:2 * H])
        n = jnp.tanh(gi[:, 2 * H:] + r * gh[:, 2 * H:])
        return (1.0 - z) * n + z * h

    h = jnp.zeros((B, H), jnp.float32)
    fwd = []
    for t in range(S):
        h = cell(emb[t], h, params["w_ih_f"], params["w_hh_f"],
                 params["b_ih_f"], params["b_hh_f"])
        fwd.append(h)
    h = jnp.zeros((B, H), jnp.float32)
    bwd = [None] * S
    for t in reversed(range(S)):
        h = cell(emb[t], h, params["w_ih_b"], params["w_hh_b"],
                 params["b_ih_b"], params["b_hh_b"])
        bwd[t] = h
    enc = jnp.concatenate([jnp.stack(fwd, 0), jnp.stack(bwd, 0)], axis=-1)
    sent = jax.nn.relu(jnp.concatenate([fwd[-1], bwd[0]], axis=-1)
                       @ params["w_fc"].T + params["b_fc"])
    return enc, sent


if __name__ == "__main__":
    key = jax.random.PRNGKey(0)
    V, E, H, DEC = 64, 32, 32, 32        # src_vocab, emb_dim, enc_hid_dim, dec_hid_dim
    S, B = 8, 2                          # seq_len, batch
    keys = jax.random.split(key, 12)
    s = 0.1
    params = {
        "emb":    jax.random.normal(keys[0], (V, E), jnp.float32) * s,
        "w_ih_f": jax.random.normal(keys[1], (3 * H, E), jnp.float32) * s,
        "w_hh_f": jax.random.normal(keys[2], (3 * H, H), jnp.float32) * s,
        "b_ih_f": jax.random.normal(keys[3], (3 * H,), jnp.float32) * s,
        "b_hh_f": jax.random.normal(keys[4], (3 * H,), jnp.float32) * s,
        "w_ih_b": jax.random.normal(keys[5], (3 * H, E), jnp.float32) * s,
        "w_hh_b": jax.random.normal(keys[6], (3 * H, H), jnp.float32) * s,
        "b_ih_b": jax.random.normal(keys[7], (3 * H,), jnp.float32) * s,
        "b_hh_b": jax.random.normal(keys[8], (3 * H,), jnp.float32) * s,
        "w_fc":   jax.random.normal(keys[9], (DEC, 2 * H), jnp.float32) * s,
        "b_fc":   jax.random.normal(keys[10], (DEC,), jnp.float32) * s,
    }
    src = jax.random.randint(keys[11], (S, B), 0, V, dtype=jnp.int32)

    enc, sent = bidirectional_encoder_forward(src, params)
    jax.block_until_ready((enc, sent))

    enc_exp, sent_exp = _reference(src, params)

    assert enc.shape == (S, B, 2 * H) and enc.dtype == jnp.float32
    assert sent.shape == (B, DEC) and sent.dtype == jnp.float32
    assert bool(jnp.allclose(enc, enc_exp, atol=1e-3, rtol=1e-3))
    assert bool(jnp.allclose(sent, sent_exp, atol=1e-3, rtol=1e-3))

    print("KERNEL_OK")
</pallas_src>

<mosaic_0001>
module attributes {stable_mosaic.version = 11 : i64} {
  func.func @_encoder_kernel(%arg0: memref<16x1xi32, #tpu.memory_space<vmem>>, %arg1: memref<64x32xf32, #tpu.memory_space<vmem>>, %arg2: memref<32x96xf32, #tpu.memory_space<vmem>>, %arg3: memref<32x96xf32, #tpu.memory_space<vmem>>, %arg4: memref<1x96xf32, #tpu.memory_space<vmem>>, %arg5: memref<1x96xf32, #tpu.memory_space<vmem>>, %arg6: memref<32x96xf32, #tpu.memory_space<vmem>>, %arg7: memref<32x96xf32, #tpu.memory_space<vmem>>, %arg8: memref<1x96xf32, #tpu.memory_space<vmem>>, %arg9: memref<1x96xf32, #tpu.memory_space<vmem>>, %arg10: memref<64x32xf32, #tpu.memory_space<vmem>>, %arg11: memref<1x32xf32, #tpu.memory_space<vmem>>, %arg12: memref<8x2x64xf32, #tpu.memory_space<vmem>>, %arg13: memref<2x32xf32, #tpu.memory_space<vmem>>) attributes {dimension_semantics = [], scalar_prefetch = 0 : i64, scratch_operands = 0 : i64, tpu.core_type = #tpu.core_type<tc>} {
    %c0 = arith.constant 0 : index
    %c0_0 = arith.constant 0 : index
    %0 = vector.load %arg0[%c0, %c0_0] : memref<16x1xi32, #tpu.memory_space<vmem>>, vector<16x1xi32>
    %1 = tpu.iota {dimensions = array<i32: 1>} : vector<16x64xi32>
    %2 = vector.broadcast %0 : vector<16x1xi32> to vector<16x64xi32>
    %3 = arith.cmpi eq, %2, %1 : vector<16x64xi32>
    %4 = arith.extui %3 : vector<16x64xi1> to vector<16x64xi32>
    %5 = arith.sitofp %4 : vector<16x64xi32> to vector<16x64xf32>
    %c0_1 = arith.constant 0 : index
    %c0_2 = arith.constant 0 : index
    %6 = vector.load %arg1[%c0_1, %c0_2] : memref<64x32xf32, #tpu.memory_space<vmem>>, vector<64x32xf32>
    %cst = arith.constant dense<0.000000e+00> : vector<16x32xf32>
    %7 = tpu.matmul %5, %6, %cst {dimension_numbers = #tpu.dot_dimension_numbers<[1], [0], [0], [1], [0, 0, 1, 1], [], []>} : vector<16x64xf32>, vector<64x32xf32>, vector<16x32xf32> -> vector<16x32xf32>
    %c0_3 = arith.constant 0 : index
    %c0_4 = arith.constant 0 : index
    %8 = vector.load %arg2[%c0_3, %c0_4] : memref<32x96xf32, #tpu.memory_space<vmem>>, vector<32x96xf32>
    %c0_5 = arith.constant 0 : index
    %c0_6 = arith.constant 0 : index
    %9 = vector.load %arg3[%c0_5, %c0_6] : memref<32x96xf32, #tpu.memory_space<vmem>>, vector<32x96xf32>
    %c0_7 = arith.constant 0 : index
    %c0_8 = arith.constant 0 : index
    %10 = vector.load %arg4[%c0_7, %c0_8] : memref<1x96xf32, #tpu.memory_space<vmem>>, vector<1x96xf32>
    %c0_9 = arith.constant 0 : index
    %c0_10 = arith.constant 0 : index
    %11 = vector.load %arg5[%c0_9, %c0_10] : memref<1x96xf32, #tpu.memory_space<vmem>>, vector<1x96xf32>
    %c0_11 = arith.constant 0 : index
    %c0_12 = arith.constant 0 : index
    %12 = vector.load %arg6[%c0_11, %c0_12] : memref<32x96xf32, #tpu.memory_space<vmem>>, vector<32x96xf32>
    %c0_13 = arith.constant 0 : index
    %c0_14 = arith.constant 0 : index
    %13 = vector.load %arg7[%c0_13, %c0_14] : memref<32x96xf32, #tpu.memory_space<vmem>>, vector<32x96xf32>
    %c0_15 = arith.constant 0 : index
    %c0_16 = arith.constant 0 : index
    %14 = vector.load %arg8[%c0_15, %c0_16] : memref<1x96xf32, #tpu.memory_space<vmem>>, vector<1x96xf32>
    %c0_17 = arith.constant 0 : index
    %c0_18 = arith.constant 0 : index
    %15 = vector.load %arg9[%c0_17, %c0_18] : memref<1x96xf32, #tpu.memory_space<vmem>>, vector<1x96xf32>
    %cst_19 = arith.constant 0.000000e+00 : f32
    %16 = vector.broadcast %cst_19 : f32 to vector<2x32xf32>
    %17 = vector.extract_strided_slice %7 {offsets = [0, 0], sizes = [2, 32], strides = [1, 1]} : vector<16x32xf32> to vector<2x32xf32>
    %cst_20 = arith.constant dense<0.000000e+00> : vector<2x96xf32>
    %18 = tpu.matmul %17, %8, %cst_20 {dimension_numbers = #tpu.dot_dimension_numbers<[1], [0], [0], [1], [0, 0, 1, 1], [], []>} : vector<2x32xf32>, vector<32x96xf32>, vector<2x96xf32> -> vector<2x96xf32>
    %19 = vector.broadcast %10 : vector<1x96xf32> to vector<2x96xf32>
    %20 = arith.addf %18, %19 : vector<2x96xf32>
    %cst_21 = arith.constant dense<0.000000e+00> : vector<2x96xf32>
    %21 = tpu.matmul %16, %9, %cst_21 {dimension_numbers = #tpu.dot_dimension_numbers<[1], [0], [0], [1], [0, 0, 1, 1], [], []>} : vector<2x32xf32>, vector<32x96xf32>, vector<2x96xf32> -> vector<2x96xf32>
    %22 = vector.broadcast %11 : vector<1x96xf32> to vector<2x96xf32>
    %23 = arith.addf %21, %22 : vector<2x96xf32>
    %24 = vector.extract_strided_slice %20 {offsets = [0, 0], sizes = [2, 32], strides = [1, 1]} : vector<2x96xf32> to vector<2x32xf32>
    %25 = vector.extract_strided_slice %23 {offsets = [0, 0], sizes = [2, 32], strides = [1, 1]} : vector<2x96xf32> to vector<2x32xf32>
    %26 = arith.addf %24, %25 : vector<2x32xf32>
    %27 = arith.negf %26 : vector<2x32xf32>
    %28 = math.exp %27 : vector<2x32xf32>
    %cst_22 = arith.constant 1.000000e+00 : f32
    %29 = vector.broadcast %cst_22 : f32 to vector<2x32xf32>
    %30 = arith.addf %29, %28 : vector<2x32xf32>
    %31 = arith.divf %29, %30 : vector<2x32xf32>
    %32 = vector.extract_strided_slice %20 {offsets = [0, 32], sizes = [2, 32], strides = [1, 1]} : vector<2x96xf32> to vector<2x32xf32>
    %33 = vector.extract_strided_slice %23 {offsets = [0, 32], sizes = [2, 32], strides = [1, 1]} : vector<2x96xf32> to vector<2x32xf32>
    %34 = arith.addf %32, %33 : vector<2x32xf32>
    %35 = arith.negf %34 : vector<2x32xf32>
    %36 = math.exp %35 : vector<2x32xf32>
    %cst_23 = arith.constant 1.000000e+00 : f32
    %37 = vector.broadcast %cst_23 : f32 to vector<2x32xf32>
    %38 = arith.addf %37, %36 : vector<2x32xf32>
    %39 = arith.divf %37, %38 : vector<2x32xf32>
    %40 = vector.extract_strided_slice %20 {offsets = [0, 64], sizes = [2, 32], strides = [1, 1]} : vector<2x96xf32> to vector<2x32xf32>
    %41 = vector.extract_strided_slice %23 {offsets = [0, 64], sizes = [2, 32], strides = [1, 1]} : vector<2x96xf32> to vector<2x32xf32>
    %42 = arith.mulf %31, %41 : vector<2x32xf32>
    %43 = arith.addf %40, %42 : vector<2x32xf32>
    %44 = math.tanh %43 : vector<2x32xf32>
    %cst_24 = arith.constant 1.000000e+00 : f32
    %45 = vector.broadcast %cst_24 : f32 to vector<2x32xf32>
    %46 = arith.subf %45, %39 : vector<2x32xf32>
    %47 = arith.mulf %46, %44 : vector<2x32xf32>
    %48 = arith.mulf %39, %16 : vector<2x32xf32>
    %49 = arith.addf %47, %48 : vector<2x32xf32>
    %50 = vector.extract_strided_slice %7 {offsets = [2, 0], sizes = [2, 32], strides = [1, 1]} : vector<16x32xf32> to vector<2x32xf32>
    %cst_25 = arith.constant dense<0.000000e+00> : vector<2x96xf32>
    %51 = tpu.matmul %50, %8, %cst_25 {dimension_numbers = #tpu.dot_dimension_numbers<[1], [0], [0], [1], [0, 0, 1, 1], [], []>} : vector<2x32xf32>, vector<32x96xf32>, vector<2x96xf32> -> vector<2x96xf32>
    %52 = vector.broadcast %10 : vector<1x96xf32> to vector<2x96xf32>
    %53 = arith.addf %51, %52 : vector<2x96xf32>
    %cst_26 = arith.constant dense<0.000000e+00> : vector<2x96xf32>
    %54 = tpu.matmul %49, %9, %cst_26 {dimension_numbers = #tpu.dot_dimension_numbers<[1], [0], [0], [1], [0, 0, 1, 1], [], []>} : vector<2x32xf32>, vector<32x96xf32>, vector<2x96xf32> -> vector<2x96xf32>
    %55 = vector.broadcast %11 : vector<1x96xf32> to vector<2x96xf32>
    %56 = arith.addf %54, %55 : vector<2x96xf32>
    %57 = vector.extract_strided_slice %53 {offsets = [0, 0], sizes = [2, 32], strides = [1, 1]} : vector<2x96xf32> to vector<2x32xf32>
    %58 = vector.extract_strided_slice %56 {offsets = [0, 0], sizes = [2, 32], strides = [1, 1]} : vector<2x96xf32> to vector<2x32xf32>
    %59 = arith.addf %57, %58 : vector<2x32xf32>
    %60 = arith.negf %59 : vector<2x32xf32>
    %61 = math.exp %60 : vector<2x32xf32>
    %cst_27 = arith.constant 1.000000e+00 : f32
    %62 = vector.broadcast %cst_27 : f32 to vector<2x32xf32>
    %63 = arith.addf %62, %61 : vector<2x32xf32>
    %64 = arith.divf %62, %63 : vector<2x32xf32>
    %65 = vector.extract_strided_slice %53 {offsets = [0, 32], sizes = [2, 32], strides = [1, 1]} : vector<2x96xf32> to vector<2x32xf32>
    %66 = vector.extract_strided_slice %56 {offsets = [0, 32], sizes = [2, 32], strides = [1, 1]} : vector<2x96xf32> to vector<2x32xf32>
    %67 = arith.addf %65, %66 : vector<2x32xf32>
    %68 = arith.negf %67 : vector<2x32xf32>
    %69 = math.exp %68 : vector<2x32xf32>
    %cst_28 = arith.constant 1.000000e+00 : f32
    %70 = vector.broadcast %cst_28 : f32 to vector<2x32xf32>
    %71 = arith.addf %70, %69 : vector<2x32xf32>
    %72 = arith.divf %70, %71 : vector<2x32xf32>
    %73 = vector.extract_strided_slice %53 {offsets = [0, 64], sizes = [2, 32], strides = [1, 1]} : vector<2x96xf32> to vector<2x32xf32>
    %74 = vector.extract_strided_slice %56 {offsets = [0, 64], sizes = [2, 32], strides = [1, 1]} : vector<2x96xf32> to vector<2x32xf32>
    %75 = arith.mulf %64, %74 : vector<2x32xf32>
    %76 = arith.addf %73, %75 : vector<2x32xf32>
    %77 = math.tanh %76 : vector<2x32xf32>
    %cst_29 = arith.constant 1.000000e+00 : f32
    %78 = vector.broadcast %cst_29 : f32 to vector<2x32xf32>
    %79 = arith.subf %78, %72 : vector<2x32xf32>
    %80 = arith.mulf %79, %77 : vector<2x32xf32>
    %81 = arith.mulf %72, %49 : vector<2x32xf32>
    %82 = arith.addf %80, %81 : vector<2x32xf32>
    %83 = vector.extract_strided_slice %7 {offsets = [4, 0], sizes = [2, 32], strides = [1, 1]} : vector<16x32xf32> to vector<2x32xf32>
    %cst_30 = arith.constant dense<0.000000e+00> : vector<2x96xf32>
    %84 = tpu.matmul %83, %8, %cst_30 {dimension_numbers = #tpu.dot_dimension_numbers<[1], [0], [0], [1], [0, 0, 1, 1], [], []>} : vector<2x32xf32>, vector<32x96xf32>, vector<2x96xf32> -> vector<2x96xf32>
    %85 = vector.broadcast %10 : vector<1x96xf32> to vector<2x96xf32>
    %86 = arith.addf %84, %85 : vector<2x96xf32>
    %cst_31 = arith.constant dense<0.000000e+00> : vector<2x96xf32>
    %87 = tpu.matmul %82, %9, %cst_31 {dimension_numbers = #tpu.dot_dimension_numbers<[1], [0], [0], [1], [0, 0, 1, 1], [], []>} : vector<2x32xf32>, vector<32x96xf32>, vector<2x96xf32> -> vector<2x96xf32>
    %88 = vector.broadcast %11 : vector<1x96xf32> to vector<2x96xf32>
    %89 = arith.addf %87, %88 : vector<2x96xf32>
    %90 = vector.extract_strided_slice %86 {offsets = [0, 0], sizes = [2, 32], strides = [1, 1]} : vector<2x96xf32> to vector<2x32xf32>
    %91 = vector.extract_strided_slice %89 {offsets = [0, 0], sizes = [2, 32], strides = [1, 1]} : vector<2x96xf32> to vector<2x32xf32>
    %92 = arith.addf %90, %91 : vector<2x32xf32>
    %93 = arith.negf %92 : vector<2x32xf32>
    %94 = math.exp %93 : vector<2x32xf32>
    %cst_32 = arith.constant 1.000000e+00 : f32
    %95 = vector.broadcast %cst_32 : f32 to vector<2x32xf32>
    %96 = arith.addf %95, %94 : vector<2x32xf32>
    %97 = arith.divf %95, %96 : vector<2x32xf32>
    %98 = vector.extract_strided_slice %86 {offsets = [0, 32], sizes = [2, 32], strides = [1, 1]} : vector<2x96xf32> to vector<2x32xf32>
    %99 = vector.extract_strided_slice %89 {offsets = [0, 32], sizes = [2, 32], strides = [1, 1]} : vector<2x96xf32> to vector<2x32xf32>
    %100 = arith.addf %98, %99 : vector<2x32xf32>
    %101 = arith.negf %100 : vector<2x32xf32>
    %102 = math.exp %101 : vector<2x32xf32>
    %cst_33 = arith.constant 1.000000e+00 : f32
    %103 = vector.broadcast %cst_33 : f32 to vector<2x32xf32>
    %104 = arith.addf %103, %102 : vector<2x32xf32>
    %105 = arith.divf %103, %104 : vector<2x32xf32>
    %106 = vector.extract_strided_slice %86 {offsets = [0, 64], sizes = [2, 32], strides = [1, 1]} : vector<2x96xf32> to vector<2x32xf32>
    %107 = vector.extract_strided_slice %89 {offsets = [0, 64], sizes = [2, 32], strides = [1, 1]} : vector<2x96xf32> to vector<2x32xf32>
    %108 = arith.mulf %97, %107 : vector<2x32xf32>
    %109 = arith.addf %106, %108 : vector<2x32xf32>
    %110 = math.tanh %109 : vector<2x32xf32>
    %cst_34 = arith.constant 1.000000e+00 : f32
    %111 = vector.broadcast %cst_34 : f32 to vector<2x32xf32>
    %112 = arith.subf %111, %105 : vector<2x32xf32>
    %113 = arith.mulf %112, %110 : vector<2x32xf32>
    %114 = arith.mulf %105, %82 : vector<2x32xf32>
    %115 = arith.addf %113, %114 : vector<2x32xf32>
    %116 = vector.extract_strided_slice %7 {offsets = [6, 0], sizes = [2, 32], strides = [1, 1]} : vector<16x32xf32> to vector<2x32xf32>
    %cst_35 = arith.constant dense<0.000000e+00> : vector<2x96xf32>
    %117 = tpu.matmul %116, %8, %cst_35 {dimension_numbers = #tpu.dot_dimension_numbers<[1], [0], [0], [1], [0, 0, 1, 1], [], []>} : vector<2x32xf32>, vector<32x96xf32>, vector<2x96xf32> -> vector<2x96xf32>
    %118 = vector.broadcast %10 : vector<1x96xf32> to vector<2x96xf32>
    %119 = arith.addf %117, %118 : vector<2x96xf32>
    %cst_36 = arith.constant dense<0.000000e+00> : vector<2x96xf32>
    %120 = tpu.matmul %115, %9, %cst_36 {dimension_numbers = #tpu.dot_dimension_numbers<[1], [0], [0], [1], [0, 0, 1, 1], [], []>} : vector<2x32xf32>, vector<32x96xf32>, vector<2x96xf32> -> vector<2x96xf32>
    %121 = vector.broadcast %11 : vector<1x96xf32> to vector<2x96xf32>
    %122 = arith.addf %120, %121 : vector<2x96xf32>
    %123 = vector.extract_strided_slice %119 {offsets = [0, 0], sizes = [2, 32], strides = [1, 1]} : vector<2x96xf32> to vector<2x32xf32>
    %124 = vector.extract_strided_slice %122 {offsets = [0, 0], sizes = [2, 32], strides = [1, 1]} : vector<2x96xf32> to vector<2x32xf32>
    %125 = arith.addf %123, %124 : vector<2x32xf32>
    %126 = arith.negf %125 : vector<2x32xf32>
    %127 = math.exp %126 : vector<2x32xf32>
    %cst_37 = arith.constant 1.000000e+00 : f32
    %128 = vector.broadcast %cst_37 : f32 to vector<2x32xf32>
    %129 = arith.addf %128, %127 : vector<2x32xf32>
    %130 = arith.divf %128, %129 : vector<2x32xf32>
    %131 = vector.extract_strided_slice %119 {offsets = [0, 32], sizes = [2, 32], strides = [1, 1]} : vector<2x96xf32> to vector<2x32xf32>
    %132 = vector.extract_strided_slice %122 {offsets = [0, 32], sizes = [2, 32], strides = [1, 1]} : vector<2x96xf32> to vector<2x32xf32>
    %133 = arith.addf %131, %132 : vector<2x32xf32>
    %134 = arith.negf %133 : vector<2x32xf32>
    %135 = math.exp %134 : vector<2x32xf32>
    %cst_38 = arith.constant 1.000000e+00 : f32
    %136 = vector.broadcast %cst_38 : f32 to vector<2x32xf32>
    %137 = arith.addf %136, %135 : vector<2x32xf32>
    %138 = arith.divf %136, %137 : vector<2x32xf32>
    %139 = vector.extract_strided_slice %119 {offsets = [0, 64], sizes = [2, 32], strides = [1, 1]} : vector<2x96xf32> to vector<2x32xf32>
    %140 = vector.extract_strided_slice %122 {offsets = [0, 64], sizes = [2, 32], strides = [1, 1]} : vector<2x96xf32> to vector<2x32xf32>
    %141 = arith.mulf %130, %140 : vector<2x32xf32>
    %142 = arith.addf %139, %141 : vector<2x32xf32>
    %143 = math.tanh %142 : vector<2x32xf32>
    %cst_39 = arith.constant 1.000000e+00 : f32
    %144 = vector.broadcast %cst_39 : f32 to vector<2x32xf32>
    %145 = arith.subf %144, %138 : vector<2x32xf32>
    %146 = arith.mulf %145, %143 : vector<2x32xf32>
    %147 = arith.mulf %138, %115 : vector<2x32xf32>
    %148 = arith.addf %146, %147 : vector<2x32xf32>
    %149 = vector.extract_strided_slice %7 {offsets = [8, 0], sizes = [2, 32], strides = [1, 1]} : vector<16x32xf32> to vector<2x32xf32>
    %cst_40 = arith.constant dense<0.000000e+00> : vector<2x96xf32>
    %150 = tpu.matmul %149, %8, %cst_40 {dimension_numbers = #tpu.dot_dimension_numbers<[1], [0], [0], [1], [0, 0, 1, 1], [], []>} : vector<2x32xf32>, vector<32x96xf32>, vector<2x96xf32> -> vector<2x96xf32>
    %151 = vector.broadcast %10 : vector<1x96xf32> to vector<2x96xf32>
    %152 = arith.addf %150, %151 : vector<2x96xf32>
    %cst_41 = arith.constant dense<0.000000e+00> : vector<2x96xf32>
    %153 = tpu.matmul %148, %9, %cst_41 {dimension_numbers = #tpu.dot_dimension_numbers<[1], [0], [0], [1], [0, 0, 1, 1], [], []>} : vector<2x32xf32>, vector<32x96xf32>, vector<2x96xf32> -> vector<2x96xf32>
    %154 = vector.broadcast %11 : vector<1x96xf32> to vector<2x96xf32>
    %155 = arith.addf %153, %154 : vector<2x96xf32>
    %156 = vector.extract_strided_slice %152 {offsets = [0, 0], sizes = [2, 32], strides = [1, 1]} : vector<2x96xf32> to vector<2x32xf32>
    %157 = vector.extract_strided_slice %155 {offsets = [0, 0], sizes = [2, 32], strides = [1, 1]} : vector<2x96xf32> to vector<2x32xf32>
    %158 = arith.addf %156, %157 : vector<2x32xf32>
    %159 = arith.negf %158 : vector<2x32xf32>
    %160 = math.exp %159 : vector<2x32xf32>
    %cst_42 = arith.constant 1.000000e+00 : f32
    %161 = vector.broadcast %cst_42 : f32 to vector<2x32xf32>
    %162 = arith.addf %161, %160 : vector<2x32xf32>
    %163 = arith.divf %161, %162 : vector<2x32xf32>
    %164 = vector.extract_strided_slice %152 {offsets = [0, 32], sizes = [2, 32], strides = [1, 1]} : vector<2x96xf32> to vector<2x32xf32>
    %165 = vector.extract_strided_slice %155 {offsets = [0, 32], sizes = [2, 32], strides = [1, 1]} : vector<2x96xf32> to vector<2x32xf32>
    %166 = arith.addf %164, %165 : vector<2x32xf32>
    %167 = arith.negf %166 : vector<2x32xf32>
    %168 = math.exp %167 : vector<2x32xf32>
    %cst_43 = arith.constant 1.000000e+00 : f32
    %169 = vector.broadcast %cst_43 : f32 to vector<2x32xf32>
    %170 = arith.addf %169, %168 : vector<2x32xf32>
    %171 = arith.divf %169, %170 : vector<2x32xf32>
    %172 = vector.extract_strided_slice %152 {offsets = [0, 64], sizes = [2, 32], strides = [1, 1]} : vector<2x96xf32> to vector<2x32xf32>
    %173 = vector.extract_strided_slice %155 {offsets = [0, 64], sizes = [2, 32], strides = [1, 1]} : vector<2x96xf32> to vector<2x32xf32>
    %174 = arith.mulf %163, %173 : vector<2x32xf32>
    %175 = arith.addf %172, %174 : vector<2x32xf32>
    %176 = math.tanh %175 : vector<2x32xf32>
    %cst_44 = arith.constant 1.000000e+00 : f32
    %177 = vector.broadcast %cst_44 : f32 to vector<2x32xf32>
    %178 = arith.subf %177, %171 : vector<2x32xf32>
    %179 = arith.mulf %178, %176 : vector<2x32xf32>
    %180 = arith.mulf %171, %148 : vector<2x32xf32>
    %181 = arith.addf %179, %180 : vector<2x32xf32>
    %182 = vector.extract_strided_slice %7 {offsets = [10, 0], sizes = [2, 32], strides = [1, 1]} : vector<16x32xf32> to vector<2x32xf32>
    %cst_45 = arith.constant dense<0.000000e+00> : vector<2x96xf32>
    %183 = tpu.matmul %182, %8, %cst_45 {dimension_numbers = #tpu.dot_dimension_numbers<[1], [0], [0], [1], [0, 0, 1, 1], [], []>} : vector<2x32xf32>, vector<32x96xf32>, vector<2x96xf32> -> vector<2x96xf32>
    %184 = vector.broadcast %10 : vector<1x96xf32> to vector<2x96xf32>
    %185 = arith.addf %183, %184 : vector<2x96xf32>
    %cst_46 = arith.constant dense<0.000000e+00> : vector<2x96xf32>
    %186 = tpu.matmul %181, %9, %cst_46 {dimension_numbers = #tpu.dot_dimension_numbers<[1], [0], [0], [1], [0, 0, 1, 1], [], []>} : vector<2x32xf32>, vector<32x96xf32>, vector<2x96xf32> -> vector<2x96xf32>
    %187 = vector.broadcast %11 : vector<1x96xf32> to vector<2x96xf32>
    %188 = arith.addf %186, %187 : vector<2x96xf32>
    %189 = vector.extract_strided_slice %185 {offsets = [0, 0], sizes = [2, 32], strides = [1, 1]} : vector<2x96xf32> to vector<2x32xf32>
    %190 = vector.extract_strided_slice %188 {offsets = [0, 0], sizes = [2, 32], strides = [1, 1]} : vector<2x96xf32> to vector<2x32xf32>
    %191 = arith.addf %189, %190 : vector<2x32xf32>
    %192 = arith.negf %191 : vector<2x32xf32>
    %193 = math.exp %192 : vector<2x32xf32>
    %cst_47 = arith.constant 1.000000e+00 : f32
    %194 = vector.broadcast %cst_47 : f32 to vector<2x32xf32>
    %195 = arith.addf %194, %193 : vector<2x32xf32>
    %196 = arith.divf %194, %195 : vector<2x32xf32>
    %197 = vector.extract_strided_slice %185 {offsets = [0, 32], sizes = [2, 32], strides = [1, 1]} : vector<2x96xf32> to vector<2x32xf32>
    %198 = vector.extract_strided_slice %188 {offsets = [0, 32], sizes = [2, 32], strides = [1, 1]} : vector<2x96xf32> to vector<2x32xf32>
    %199 = arith.addf %197, %198 : vector<2x32xf32>
    %200 = arith.negf %199 : vector<2x32xf32>
    %201 = math.exp %200 : vector<2x32xf32>
    %cst_48 = arith.constant 1.000000e+00 : f32
    %202 = vector.broadcast %cst_48 : f32 to vector<2x32xf32>
    %203 = arith.addf %202, %201 : vector<2x32xf32>
    %204 = arith.divf %202, %203 : vector<2x32xf32>
    %205 = vector.extract_strided_slice %185 {offsets = [0, 64], sizes = [2, 32], strides = [1, 1]} : vector<2x96xf32> to vector<2x32xf32>
    %206 = vector.extract_strided_slice %188 {offsets = [0, 64], sizes = [2, 32], strides = [1, 1]} : vector<2x96xf32> to vector<2x32xf32>
    %207 = arith.mulf %196, %206 : vector<2x32xf32>
    %208 = arith.addf %205, %207 : vector<2x32xf32>
    %209 = math.tanh %208 : vector<2x32xf32>
    %cst_49 = arith.constant 1.000000e+00 : f32
    %210 = vector.broadcast %cst_49 : f32 to vector<2x32xf32>
    %211 = arith.subf %210, %204 : vector<2x32xf32>
    %212 = arith.mulf %211, %209 : vector<2x32xf32>
    %213 = arith.mulf %204, %181 : vector<2x32xf32>
    %214 = arith.addf %212, %213 : vector<2x32xf32>
    %215 = vector.extract_strided_slice %7 {offsets = [12, 0], sizes = [2, 32], strides = [1, 1]} : vector<16x32xf32> to vector<2x32xf32>
    %cst_50 = arith.constant dense<0.000000e+00> : vector<2x96xf32>
    %216 = tpu.matmul %215, %8, %cst_50 {dimension_numbers = #tpu.dot_dimension_numbers<[1], [0], [0], [1], [0, 0, 1, 1], [], []>} : vector<2x32xf32>, vector<32x96xf32>, vector<2x96xf32> -> vector<2x96xf32>
    %217 = vector.broadcast %10 : vector<1x96xf32> to vector<2x96xf32>
    %218 = arith.addf %216, %217 : vector<2x96xf32>
    %cst_51 = arith.constant dense<0.000000e+00> : vector<2x96xf32>
    %219 = tpu.matmul %214, %9, %cst_51 {dimension_numbers = #tpu.dot_dimension_numbers<[1], [0], [0], [1], [0, 0, 1, 1], [], []>} : vector<2x32xf32>, vector<32x96xf32>, vector<2x96xf32> -> vector<2x96xf32>
    %220 = vector.broadcast %11 : vector<1x96xf32> to vector<2x96xf32>
    %221 = arith.addf %219, %220 : vector<2x96xf32>
    %222 = vector.extract_strided_slice %218 {offsets = [0, 0], sizes = [2, 32], strides = [1, 1]} : vector<2x96xf32> to vector<2x32xf32>
    %223 = vector.extract_strided_slice %221 {offsets = [0, 0], sizes = [2, 32], strides = [1, 1]} : vector<2x96xf32> to vector<2x32xf32>
    %224 = arith.addf %222, %223 : vector<2x32xf32>
    %225 = arith.negf %224 : vector<2x32xf32>
    %226 = math.exp %225 : vector<2x32xf32>
    %cst_52 = arith.constant 1.000000e+00 : f32
    %227 = vector.broadcast %cst_52 : f32 to vector<2x32xf32>
    %228 = arith.addf %227, %226 : vector<2x32xf32>
    %229 = arith.divf %227, %228 : vector<2x32xf32>
    %230 = vector.extract_strided_slice %218 {offsets = [0, 32], sizes = [2, 32], strides = [1, 1]} : vector<2x96xf32> to vector<2x32xf32>
    %231 = vector.extract_strided_slice %221 {offsets = [0, 32], sizes = [2, 32], strides = [1, 1]} : vector<2x96xf32> to vector<2x32xf32>
    %232 = arith.addf %230, %231 : vector<2x32xf32>
    %233 = arith.negf %232 : vector<2x32xf32>
    %234 = math.exp %233 : vector<2x32xf32>
    %cst_53 = arith.constant 1.000000e+00 : f32
    %235 = vector.broadcast %cst_53 : f32 to vector<2x32xf32>
    %236 = arith.addf %235, %234 : vector<2x32xf32>
    %237 = arith.divf %235, %236 : vector<2x32xf32>
    %238 = vector.extract_strided_slice %218 {offsets = [0, 64], sizes = [2, 32], strides = [1, 1]} : vector<2x96xf32> to vector<2x32xf32>
    %239 = vector.extract_strided_slice %221 {offsets = [0, 64], sizes = [2, 32], strides = [1, 1]} : vector<2x96xf32> to vector<2x32xf32>
    %240 = arith.mulf %229, %239 : vector<2x32xf32>
    %241 = arith.addf %238, %240 : vector<2x32xf32>
    %242 = math.tanh %241 : vector<2x32xf32>
    %cst_54 = arith.constant 1.000000e+00 : f32
    %243 = vector.broadcast %cst_54 : f32 to vector<2x32xf32>
    %244 = arith.subf %243, %237 : vector<2x32xf32>
    %245 = arith.mulf %244, %242 : vector<2x32xf32>
    %246 = arith.mulf %237, %214 : vector<2x32xf32>
    %247 = arith.addf %245, %246 : vector<2x32xf32>
    %248 = vector.extract_strided_slice %7 {offsets = [14, 0], sizes = [2, 32], strides = [1, 1]} : vector<16x32xf32> to vector<2x32xf32>
    %cst_55 = arith.constant dense<0.000000e+00> : vector<2x96xf32>
    %249 = tpu.matmul %248, %8, %cst_55 {dimension_numbers = #tpu.dot_dimension_numbers<[1], [0], [0], [1], [0, 0, 1, 1], [], []>} : vector<2x32xf32>, vector<32x96xf32>, vector<2x96xf32> -> vector<2x96xf32>
    %250 = vector.broadcast %10 : vector<1x96xf32> to vector<2x96xf32>
    %251 = arith.addf %249, %250 : vector<2x96xf32>
    %cst_56 = arith.constant dense<0.000000e+00> : vector<2x96xf32>
    %252 = tpu.matmul %247, %9, %cst_56 {dimension_numbers = #tpu.dot_dimension_numbers<[1], [0], [0], [1], [0, 0, 1, 1], [], []>} : vector<2x32xf32>, vector<32x96xf32>, vector<2x96xf32> -> vector<2x96xf32>
    %253 = vector.broadcast %11 : vector<1x96xf32> to vector<2x96xf32>
    %254 = arith.addf %252, %253 : vector<2x96xf32>
    %255 = vector.extract_strided_slice %251 {offsets = [0, 0], sizes = [2, 32], strides = [1, 1]} : vector<2x96xf32> to vector<2x32xf32>
    %256 = vector.extract_strided_slice %254 {offsets = [0, 0], sizes = [2, 32], strides = [1, 1]} : vector<2x96xf32> to vector<2x32xf32>
    %257 = arith.addf %255, %256 : vector<2x32xf32>
    %258 = arith.negf %257 : vector<2x32xf32>
    %259 = math.exp %258 : vector<2x32xf32>
    %cst_57 = arith.constant 1.000000e+00 : f32
    %260 = vector.broadcast %cst_57 : f32 to vector<2x32xf32>
    %261 = arith.addf %260, %259 : vector<2x32xf32>
    %262 = arith.divf %260, %261 : vector<2x32xf32>
    %263 = vector.extract_strided_slice %251 {offsets = [0, 32], sizes = [2, 32], strides = [1, 1]} : vector<2x96xf32> to vector<2x32xf32>
    %264 = vector.extract_strided_slice %254 {offsets = [0, 32], sizes = [2, 32], strides = [1, 1]} : vector<2x96xf32> to vector<2x32xf32>
    %265 = arith.addf %263, %264 : vector<2x32xf32>
    %266 = arith.negf %265 : vector<2x32xf32>
    %267 = math.exp %266 : vector<2x32xf32>
    %cst_58 = arith.constant 1.000000e+00 : f32
    %268 = vector.broadcast %cst_58 : f32 to vector<2x32xf32>
    %269 = arith.addf %268, %267 : vector<2x32xf32>
    %270 = arith.divf %268, %269 : vector<2x32xf32>
    %271 = vector.extract_strided_slice %251 {offsets = [0, 64], sizes = [2, 32], strides = [1, 1]} : vector<2x96xf32> to vector<2x32xf32>
    %272 = vector.extract_strided_slice %254 {offsets = [0, 64], sizes = [2, 32], strides = [1, 1]} : vector<2x96xf32> to vector<2x32xf32>
    %273 = arith.mulf %262, %272 : vector<2x32xf32>
    %274 = arith.addf %271, %273 : vector<2x32xf32>
    %275 = math.tanh %274 : vector<2x32xf32>
    %cst_59 = arith.constant 1.000000e+00 : f32
    %276 = vector.broadcast %cst_59 : f32 to vector<2x32xf32>
    %277 = arith.subf %276, %270 : vector<2x32xf32>
    %278 = arith.mulf %277, %275 : vector<2x32xf32>
    %279 = arith.mulf %270, %247 : vector<2x32xf32>
    %280 = arith.addf %278, %279 : vector<2x32xf32>
    %cst_60 = arith.constant 0.000000e+00 : f32
    %281 = vector.broadcast %cst_60 : f32 to vector<2x32xf32>
    %282 = vector.extract_strided_slice %7 {offsets = [14, 0], sizes = [2, 32], strides = [1, 1]} : vector<16x32xf32> to vector<2x32xf32>
    %cst_61 = arith.constant dense<0.000000e+00> : vector<2x96xf32>
    %283 = tpu.matmul %282, %12, %cst_61 {dimension_numbers = #tpu.dot_dimension_numbers<[1], [0], [0], [1], [0, 0, 1, 1], [], []>} : vector<2x32xf32>, vector<32x96xf32>, vector<2x96xf32> -> vector<2x96xf32>
    %284 = vector.broadcast %14 : vector<1x96xf32> to vector<2x96xf32>
    %285 = arith.addf %283, %284 : vector<2x96xf32>
    %cst_62 = arith.constant dense<0.000000e+00> : vector<2x96xf32>
    %286 = tpu.matmul %281, %13, %cst_62 {dimension_numbers = #tpu.dot_dimension_numbers<[1], [0], [0], [1], [0, 0, 1, 1], [], []>} : vector<2x32xf32>, vector<32x96xf32>, vector<2x96xf32> -> vector<2x96xf32>
    %287 = vector.broadcast %15 : vector<1x96xf32> to vector<2x96xf32>
    %288 = arith.addf %286, %287 : vector<2x96xf32>
    %289 = vector.extract_strided_slice %285 {offsets = [0, 0], sizes = [2, 32], strides = [1, 1]} : vector<2x96xf32> to vector<2x32xf32>
    %290 = vector.extract_strided_slice %288 {offsets = [0, 0], sizes = [2, 32], strides = [1, 1]} : vector<2x96xf32> to vector<2x32xf32>
    %291 = arith.addf %289, %290 : vector<2x32xf32>
    %292 = arith.negf %291 : vector<2x32xf32>
    %293 = math.exp %292 : vector<2x32xf32>
    %cst_63 = arith.constant 1.000000e+00 : f32
    %294 = vector.broadcast %cst_63 : f32 to vector<2x32xf32>
    %295 = arith.addf %294, %293 : vector<2x32xf32>
    %296 = arith.divf %294, %295 : vector<2x32xf32>
    %297 = vector.extract_strided_slice %285 {offsets = [0, 32], sizes = [2, 32], strides = [1, 1]} : vector<2x96xf32> to vector<2x32xf32>
    %298 = vector.extract_strided_slice %288 {offsets = [0, 32], sizes = [2, 32], strides = [1, 1]} : vector<2x96xf32> to vector<2x32xf32>
    %299 = arith.addf %297, %298 : vector<2x32xf32>
    %300 = arith.negf %299 : vector<2x32xf32>
    %301 = math.exp %300 : vector<2x32xf32>
    %cst_64 = arith.constant 1.000000e+00 : f32
    %302 = vector.broadcast %cst_64 : f32 to vector<2x32xf32>
    %303 = arith.addf %302, %301 : vector<2x32xf32>
    %304 = arith.divf %302, %303 : vector<2x32xf32>
    %305 = vector.extract_strided_slice %285 {offsets = [0, 64], sizes = [2, 32], strides = [1, 1]} : vector<2x96xf32> to vector<2x32xf32>
    %306 = vector.extract_strided_slice %288 {offsets = [0, 64], sizes = [2, 32], strides = [1, 1]} : vector<2x96xf32> to vector<2x32xf32>
    %307 = arith.mulf %296, %306 : vector<2x32xf32>
    %308 = arith.addf %305, %307 : vector<2x32xf32>
    %309 = math.tanh %308 : vector<2x32xf32>
    %cst_65 = arith.constant 1.000000e+00 : f32
    %310 = vector.broadcast %cst_65 : f32 to vector<2x32xf32>
    %311 = arith.subf %310, %304 : vector<2x32xf32>
    %312 = arith.mulf %311, %309 : vector<2x32xf32>
    %313 = arith.mulf %304, %281 : vector<2x32xf32>
    %314 = arith.addf %312, %313 : vector<2x32xf32>
    %315 = vector.extract_strided_slice %7 {offsets = [12, 0], sizes = [2, 32], strides = [1, 1]} : vector<16x32xf32> to vector<2x32xf32>
    %cst_66 = arith.constant dense<0.000000e+00> : vector<2x96xf32>
    %316 = tpu.matmul %315, %12, %cst_66 {dimension_numbers = #tpu.dot_dimension_numbers<[1], [0], [0], [1], [0, 0, 1, 1], [], []>} : vector<2x32xf32>, vector<32x96xf32>, vector<2x96xf32> -> vector<2x96xf32>
    %317 = vector.broadcast %14 : vector<1x96xf32> to vector<2x96xf32>
    %318 = arith.addf %316, %317 : vector<2x96xf32>
    %cst_67 = arith.constant dense<0.000000e+00> : vector<2x96xf32>
    %319 = tpu.matmul %314, %13, %cst_67 {dimension_numbers = #tpu.dot_dimension_numbers<[1], [0], [0], [1], [0, 0, 1, 1], [], []>} : vector<2x32xf32>, vector<32x96xf32>, vector<2x96xf32> -> vector<2x96xf32>
    %320 = vector.broadcast %15 : vector<1x96xf32> to vector<2x96xf32>
    %321 = arith.addf %319, %320 : vector<2x96xf32>
    %322 = vector.extract_strided_slice %318 {offsets = [0, 0], sizes = [2, 32], strides = [1, 1]} : vector<2x96xf32> to vector<2x32xf32>
    %323 = vector.extract_strided_slice %321 {offsets = [0, 0], sizes = [2, 32], strides = [1, 1]} : vector<2x96xf32> to vector<2x32xf32>
    %324 = arith.addf %322, %323 : vector<2x32xf32>
    %325 = arith.negf %324 : vector<2x32xf32>
    %326 = math.exp %325 : vector<2x32xf32>
    %cst_68 = arith.constant 1.000000e+00 : f32
    %327 = vector.broadcast %cst_68 : f32 to vector<2x32xf32>
    %328 = arith.addf %327, %326 : vector<2x32xf32>
    %329 = arith.divf %327, %328 : vector<2x32xf32>
    %330 = vector.extract_strided_slice %318 {offsets = [0, 32], sizes = [2, 32], strides = [1, 1]} : vector<2x96xf32> to vector<2x32xf32>
    %331 = vector.extract_strided_slice %321 {offsets = [0, 32], sizes = [2, 32], strides = [1, 1]} : vector<2x96xf32> to vector<2x32xf32>
    %332 = arith.addf %330, %331 : vector<2x32xf32>
    %333 = arith.negf %332 : vector<2x32xf32>
    %334 = math.exp %333 : vector<2x32xf32>
    %cst_69 = arith.constant 1.000000e+00 : f32
    %335 = vector.broadcast %cst_69 : f32 to vector<2x32xf32>
    %336 = arith.addf %335, %334 : vector<2x32xf32>
    %337 = arith.divf %335, %336 : vector<2x32xf32>
    %338 = vector.extract_strided_slice %318 {offsets = [0, 64], sizes = [2, 32], strides = [1, 1]} : vector<2x96xf32> to vector<2x32xf32>
    %339 = vector.extract_strided_slice %321 {offsets = [0, 64], sizes = [2, 32], strides = [1, 1]} : vector<2x96xf32> to vector<2x32xf32>
    %340 = arith.mulf %329, %339 : vector<2x32xf32>
    %341 = arith.addf %338, %340 : vector<2x32xf32>
    %342 = math.tanh %341 : vector<2x32xf32>
    %cst_70 = arith.constant 1.000000e+00 : f32
    %343 = vector.broadcast %cst_70 : f32 to vector<2x32xf32>
    %344 = arith.subf %343, %337 : vector<2x32xf32>
    %345 = arith.mulf %344, %342 : vector<2x32xf32>
    %346 = arith.mulf %337, %314 : vector<2x32xf32>
    %347 = arith.addf %345, %346 : vector<2x32xf32>
    %348 = vector.extract_strided_slice %7 {offsets = [10, 0], sizes = [2, 32], strides = [1, 1]} : vector<16x32xf32> to vector<2x32xf32>
    %cst_71 = arith.constant dense<0.000000e+00> : vector<2x96xf32>
    %349 = tpu.matmul %348, %12, %cst_71 {dimension_numbers = #tpu.dot_dimension_numbers<[1], [0], [0], [1], [0, 0, 1, 1], [], []>} : vector<2x32xf32>, vector<32x96xf32>, vector<2x96xf32> -> vector<2x96xf32>
    %350 = vector.broadcast %14 : vector<1x96xf32> to vector<2x96xf32>
    %351 = arith.addf %349, %350 : vector<2x96xf32>
    %cst_72 = arith.constant dense<0.000000e+00> : vector<2x96xf32>
    %352 = tpu.matmul %347, %13, %cst_72 {dimension_numbers = #tpu.dot_dimension_numbers<[1], [0], [0], [1], [0, 0, 1, 1], [], []>} : vector<2x32xf32>, vector<32x96xf32>, vector<2x96xf32> -> vector<2x96xf32>
    %353 = vector.broadcast %15 : vector<1x96xf32> to vector<2x96xf32>
    %354 = arith.addf %352, %353 : vector<2x96xf32>
    %355 = vector.extract_strided_slice %351 {offsets = [0, 0], sizes = [2, 32], strides = [1, 1]} : vector<2x96xf32> to vector<2x32xf32>
    %356 = vector.extract_strided_slice %354 {offsets = [0, 0], sizes = [2, 32], strides = [1, 1]} : vector<2x96xf32> to vector<2x32xf32>
    %357 = arith.addf %355, %356 : vector<2x32xf32>
    %358 = arith.negf %357 : vector<2x32xf32>
    %359 = math.exp %358 : vector<2x32xf32>
    %cst_73 = arith.constant 1.000000e+00 : f32
    %360 = vector.broadcast %cst_73 : f32 to vector<2x32xf32>
    %361 = arith.addf %360, %359 : vector<2x32xf32>
    %362 = arith.divf %360, %361 : vector<2x32xf32>
    %363 = vector.extract_strided_slice %351 {offsets = [0, 32], sizes = [2, 32], strides = [1, 1]} : vector<2x96xf32> to vector<2x32xf32>
    %364 = vector.extract_strided_slice %354 {offsets = [0, 32], sizes = [2, 32], strides = [1, 1]} : vector<2x96xf32> to vector<2x32xf32>
    %365 = arith.addf %363, %364 : vector<2x32xf32>
    %366 = arith.negf %365 : vector<2x32xf32>
    %367 = math.exp %366 : vector<2x32xf32>
    %cst_74 = arith.constant 1.000000e+00 : f32
    %368 = vector.broadcast %cst_74 : f32 to vector<2x32xf32>
    %369 = arith.addf %368, %367 : vector<2x32xf32>
    %370 = arith.divf %368, %369 : vector<2x32xf32>
    %371 = vector.extract_strided_slice %351 {offsets = [0, 64], sizes = [2, 32], strides = [1, 1]} : vector<2x96xf32> to vector<2x32xf32>
    %372 = vector.extract_strided_slice %354 {offsets = [0, 64], sizes = [2, 32], strides = [1, 1]} : vector<2x96xf32> to vector<2x32xf32>
    %373 = arith.mulf %362, %372 : vector<2x32xf32>
    %374 = arith.addf %371, %373 : vector<2x32xf32>
    %375 = math.tanh %374 : vector<2x32xf32>
    %cst_75 = arith.constant 1.000000e+00 : f32
    %376 = vector.broadcast %cst_75 : f32 to vector<2x32xf32>
    %377 = arith.subf %376, %370 : vector<2x32xf32>
    %378 = arith.mulf %377, %375 : vector<2x32xf32>
    %379 = arith.mulf %370, %347 : vector<2x32xf32>
    %380 = arith.addf %378, %379 : vector<2x32xf32>
    %381 = vector.extract_strided_slice %7 {offsets = [8, 0], sizes = [2, 32], strides = [1, 1]} : vector<16x32xf32> to vector<2x32xf32>
    %cst_76 = arith.constant dense<0.000000e+00> : vector<2x96xf32>
    %382 = tpu.matmul %381, %12, %cst_76 {dimension_numbers = #tpu.dot_dimension_numbers<[1], [0], [0], [1], [0, 0, 1, 1], [], []>} : vector<2x32xf32>, vector<32x96xf32>, vector<2x96xf32> -> vector<2x96xf32>
    %383 = vector.broadcast %14 : vector<1x96xf32> to vector<2x96xf32>
    %384 = arith.addf %382, %383 : vector<2x96xf32>
    %cst_77 = arith.constant dense<0.000000e+00> : vector<2x96xf32>
    %385 = tpu.matmul %380, %13, %cst_77 {dimension_numbers = #tpu.dot_dimension_numbers<[1], [0], [0], [1], [0, 0, 1, 1], [], []>} : vector<2x32xf32>, vector<32x96xf32>, vector<2x96xf32> -> vector<2x96xf32>
    %386 = vector.broadcast %15 : vector<1x96xf32> to vector<2x96xf32>
    %387 = arith.addf %385, %386 : vector<2x96xf32>
    %388 = vector.extract_strided_slice %384 {offsets = [0, 0], sizes = [2, 32], strides = [1, 1]} : vector<2x96xf32> to vector<2x32xf32>
    %389 = vector.extract_strided_slice %387 {offsets = [0, 0], sizes = [2, 32], strides = [1, 1]} : vector<2x96xf32> to vector<2x32xf32>
    %390 = arith.addf %388, %389 : vector<2x32xf32>
    %391 = arith.negf %390 : vector<2x32xf32>
    %392 = math.exp %391 : vector<2x32xf32>
    %cst_78 = arith.constant 1.000000e+00 : f32
    %393 = vector.broadcast %cst_78 : f32 to vector<2x32xf32>
    %394 = arith.addf %393, %392 : vector<2x32xf32>
    %395 = arith.divf %393, %394 : vector<2x32xf32>
    %396 = vector.extract_strided_slice %384 {offsets = [0, 32], sizes = [2, 32], strides = [1, 1]} : vector<2x96xf32> to vector<2x32xf32>
    %397 = vector.extract_strided_slice %387 {offsets = [0, 32], sizes = [2, 32], strides = [1, 1]} : vector<2x96xf32> to vector<2x32xf32>
    %398 = arith.addf %396, %397 : vector<2x32xf32>
    %399 = arith.negf %398 : vector<2x32xf32>
    %400 = math.exp %399 : vector<2x32xf32>
    %cst_79 = arith.constant 1.000000e+00 : f32
    %401 = vector.broadcast %cst_79 : f32 to vector<2x32xf32>
    %402 = arith.addf %401, %400 : vector<2x32xf32>
    %403 = arith.divf %401, %402 : vector<2x32xf32>
    %404 = vector.extract_strided_slice %384 {offsets = [0, 64], sizes = [2, 32], strides = [1, 1]} : vector<2x96xf32> to vector<2x32xf32>
    %405 = vector.extract_strided_slice %387 {offsets = [0, 64], sizes = [2, 32], strides = [1, 1]} : vector<2x96xf32> to vector<2x32xf32>
    %406 = arith.mulf %395, %405 : vector<2x32xf32>
    %407 = arith.addf %404, %406 : vector<2x32xf32>
    %408 = math.tanh %407 : vector<2x32xf32>
    %cst_80 = arith.constant 1.000000e+00 : f32
    %409 = vector.broadcast %cst_80 : f32 to vector<2x32xf32>
    %410 = arith.subf %409, %403 : vector<2x32xf32>
    %411 = arith.mulf %410, %408 : vector<2x32xf32>
    %412 = arith.mulf %403, %380 : vector<2x32xf32>
    %413 = arith.addf %411, %412 : vector<2x32xf32>
    %414 = vector.extract_strided_slice %7 {offsets = [6, 0], sizes = [2, 32], strides = [1, 1]} : vector<16x32xf32> to vector<2x32xf32>
    %cst_81 = arith.constant dense<0.000000e+00> : vector<2x96xf32>
    %415 = tpu.matmul %414, %12, %cst_81 {dimension_numbers = #tpu.dot_dimension_numbers<[1], [0], [0], [1], [0, 0, 1, 1], [], []>} : vector<2x32xf32>, vector<32x96xf32>, vector<2x96xf32> -> vector<2x96xf32>
    %416 = vector.broadcast %14 : vector<1x96xf32> to vector<2x96xf32>
    %417 = arith.addf %415, %416 : vector<2x96xf32>
    %cst_82 = arith.constant dense<0.000000e+00> : vector<2x96xf32>
    %418 = tpu.matmul %413, %13, %cst_82 {dimension_numbers = #tpu.dot_dimension_numbers<[1], [0], [0], [1], [0, 0, 1, 1], [], []>} : vector<2x32xf32>, vector<32x96xf32>, vector<2x96xf32> -> vector<2x96xf32>
    %419 = vector.broadcast %15 : vector<1x96xf32> to vector<2x96xf32>
    %420 = arith.addf %418, %419 : vector<2x96xf32>
    %421 = vector.extract_strided_slice %417 {offsets = [0, 0], sizes = [2, 32], strides = [1, 1]} : vector<2x96xf32> to vector<2x32xf32>
    %422 = vector.extract_strided_slice %420 {offsets = [0, 0], sizes = [2, 32], strides = [1, 1]} : vector<2x96xf32> to vector<2x32xf32>
    %423 = arith.addf %421, %422 : vector<2x32xf32>
    %424 = arith.negf %423 : vector<2x32xf32>
    %425 = math.exp %424 : vector<2x32xf32>
    %cst_83 = arith.constant 1.000000e+00 : f32
    %426 = vector.broadcast %cst_83 : f32 to vector<2x32xf32>
    %427 = arith.addf %426, %425 : vector<2x32xf32>
    %428 = arith.divf %426, %427 : vector<2x32xf32>
    %429 = vector.extract_strided_slice %417 {offsets = [0, 32], sizes = [2, 32], strides = [1, 1]} : vector<2x96xf32> to vector<2x32xf32>
    %430 = vector.extract_strided_slice %420 {offsets = [0, 32], sizes = [2, 32], strides = [1, 1]} : vector<2x96xf32> to vector<2x32xf32>
    %431 = arith.addf %429, %430 : vector<2x32xf32>
    %432 = arith.negf %431 : vector<2x32xf32>
    %433 = math.exp %432 : vector<2x32xf32>
    %cst_84 = arith.constant 1.000000e+00 : f32
    %434 = vector.broadcast %cst_84 : f32 to vector<2x32xf32>
    %435 = arith.addf %434, %433 : vector<2x32xf32>
    %436 = arith.divf %434, %435 : vector<2x32xf32>
    %437 = vector.extract_strided_slice %417 {offsets = [0, 64], sizes = [2, 32], strides = [1, 1]} : vector<2x96xf32> to vector<2x32xf32>
    %438 = vector.extract_strided_slice %420 {offsets = [0, 64], sizes = [2, 32], strides = [1, 1]} : vector<2x96xf32> to vector<2x32xf32>
    %439 = arith.mulf %428, %438 : vector<2x32xf32>
    %440 = arith.addf %437, %439 : vector<2x32xf32>
    %441 = math.tanh %440 : vector<2x32xf32>
    %cst_85 = arith.constant 1.000000e+00 : f32
    %442 = vector.broadcast %cst_85 : f32 to vector<2x32xf32>
    %443 = arith.subf %442, %436 : vector<2x32xf32>
    %444 = arith.mulf %443, %441 : vector<2x32xf32>
    %445 = arith.mulf %436, %413 : vector<2x32xf32>
    %446 = arith.addf %444, %445 : vector<2x32xf32>
    %447 = vector.extract_strided_slice %7 {offsets = [4, 0], sizes = [2, 32], strides = [1, 1]} : vector<16x32xf32> to vector<2x32xf32>
    %cst_86 = arith.constant dense<0.000000e+00> : vector<2x96xf32>
    %448 = tpu.matmul %447, %12, %cst_86 {dimension_numbers = #tpu.dot_dimension_numbers<[1], [0], [0], [1], [0, 0, 1, 1], [], []>} : vector<2x32xf32>, vector<32x96xf32>, vector<2x96xf32> -> vector<2x96xf32>
    %449 = vector.broadcast %14 : vector<1x96xf32> to vector<2x96xf32>
    %450 = arith.addf %448, %449 : vector<2x96xf32>
    %cst_87 = arith.constant dense<0.000000e+00> : vector<2x96xf32>
    %451 = tpu.matmul %446, %13, %cst_87 {dimension_numbers = #tpu.dot_dimension_numbers<[1], [0], [0], [1], [0, 0, 1, 1], [], []>} : vector<2x32xf32>, vector<32x96xf32>, vector<2x96xf32> -> vector<2x96xf32>
    %452 = vector.broadcast %15 : vector<1x96xf32> to vector<2x96xf32>
    %453 = arith.addf %451, %452 : vector<2x96xf32>
    %454 = vector.extract_strided_slice %450 {offsets = [0, 0], sizes = [2, 32], strides = [1, 1]} : vector<2x96xf32> to vector<2x32xf32>
    %455 = vector.extract_strided_slice %453 {offsets = [0, 0], sizes = [2, 32], strides = [1, 1]} : vector<2x96xf32> to vector<2x32xf32>
    %456 = arith.addf %454, %455 : vector<2x32xf32>
    %457 = arith.negf %456 : vector<2x32xf32>
    %458 = math.exp %457 : vector<2x32xf32>
    %cst_88 = arith.constant 1.000000e+00 : f32
    %459 = vector.broadcast %cst_88 : f32 to vector<2x32xf32>
    %460 = arith.addf %459, %458 : vector<2x32xf32>
    %461 = arith.divf %459, %460 : vector<2x32xf32>
    %462 = vector.extract_strided_slice %450 {offsets = [0, 32], sizes = [2, 32], strides = [1, 1]} : vector<2x96xf32> to vector<2x32xf32>
    %463 = vector.extract_strided_slice %453 {offsets = [0, 32], sizes = [2, 32], strides = [1, 1]} : vector<2x96xf32> to vector<2x32xf32>
    %464 = arith.addf %462, %463 : vector<2x32xf32>
    %465 = arith.negf %464 : vector<2x32xf32>
    %466 = math.exp %465 : vector<2x32xf32>
    %cst_89 = arith.constant 1.000000e+00 : f32
    %467 = vector.broadcast %cst_89 : f32 to vector<2x32xf32>
    %468 = arith.addf %467, %466 : vector<2x32xf32>
    %469 = arith.divf %467, %468 : vector<2x32xf32>
    %470 = vector.extract_strided_slice %450 {offsets = [0, 64], sizes = [2, 32], strides = [1, 1]} : vector<2x96xf32> to vector<2x32xf32>
    %471 = vector.extract_strided_slice %453 {offsets = [0, 64], sizes = [2, 32], strides = [1, 1]} : vector<2x96xf32> to vector<2x32xf32>
    %472 = arith.mulf %461, %471 : vector<2x32xf32>
    %473 = arith.addf %470, %472 : vector<2x32xf32>
    %474 = math.tanh %473 : vector<2x32xf32>
    %cst_90 = arith.constant 1.000000e+00 : f32
    %475 = vector.broadcast %cst_90 : f32 to vector<2x32xf32>
    %476 = arith.subf %475, %469 : vector<2x32xf32>
    %477 = arith.mulf %476, %474 : vector<2x32xf32>
    %478 = arith.mulf %469, %446 : vector<2x32xf32>
    %479 = arith.addf %477, %478 : vector<2x32xf32>
    %480 = vector.extract_strided_slice %7 {offsets = [2, 0], sizes = [2, 32], strides = [1, 1]} : vector<16x32xf32> to vector<2x32xf32>
    %cst_91 = arith.constant dense<0.000000e+00> : vector<2x96xf32>
    %481 = tpu.matmul %480, %12, %cst_91 {dimension_numbers = #tpu.dot_dimension_numbers<[1], [0], [0], [1], [0, 0, 1, 1], [], []>} : vector<2x32xf32>, vector<32x96xf32>, vector<2x96xf32> -> vector<2x96xf32>
    %482 = vector.broadcast %14 : vector<1x96xf32> to vector<2x96xf32>
    %483 = arith.addf %481, %482 : vector<2x96xf32>
    %cst_92 = arith.constant dense<0.000000e+00> : vector<2x96xf32>
    %484 = tpu.matmul %479, %13, %cst_92 {dimension_numbers = #tpu.dot_dimension_numbers<[1], [0], [0], [1], [0, 0, 1, 1], [], []>} : vector<2x32xf32>, vector<32x96xf32>, vector<2x96xf32> -> vector<2x96xf32>
    %485 = vector.broadcast %15 : vector<1x96xf32> to vector<2x96xf32>
    %486 = arith.addf %484, %485 : vector<2x96xf32>
    %487 = vector.extract_strided_slice %483 {offsets = [0, 0], sizes = [2, 32], strides = [1, 1]} : vector<2x96xf32> to vector<2x32xf32>
    %488 = vector.extract_strided_slice %486 {offsets = [0, 0], sizes = [2, 32], strides = [1, 1]} : vector<2x96xf32> to vector<2x32xf32>
    %489 = arith.addf %487, %488 : vector<2x32xf32>
    %490 = arith.negf %489 : vector<2x32xf32>
    %491 = math.exp %490 : vector<2x32xf32>
    %cst_93 = arith.constant 1.000000e+00 : f32
    %492 = vector.broadcast %cst_93 : f32 to vector<2x32xf32>
    %493 = arith.addf %492, %491 : vector<2x32xf32>
    %494 = arith.divf %492, %493 : vector<2x32xf32>
    %495 = vector.extract_strided_slice %483 {offsets = [0, 32], sizes = [2, 32], strides = [1, 1]} : vector<2x96xf32> to vector<2x32xf32>
    %496 = vector.extract_strided_slice %486 {offsets = [0, 32], sizes = [2, 32], strides = [1, 1]} : vector<2x96xf32> to vector<2x32xf32>
    %497 = arith.addf %495, %496 : vector<2x32xf32>
    %498 = arith.negf %497 : vector<2x32xf32>
    %499 = math.exp %498 : vector<2x32xf32>
    %cst_94 = arith.constant 1.000000e+00 : f32
    %500 = vector.broadcast %cst_94 : f32 to vector<2x32xf32>
    %501 = arith.addf %500, %499 : vector<2x32xf32>
    %502 = arith.divf %500, %501 : vector<2x32xf32>
    %503 = vector.extract_strided_slice %483 {offsets = [0, 64], sizes = [2, 32], strides = [1, 1]} : vector<2x96xf32> to vector<2x32xf32>
    %504 = vector.extract_strided_slice %486 {offsets = [0, 64], sizes = [2, 32], strides = [1, 1]} : vector<2x96xf32> to vector<2x32xf32>
    %505 = arith.mulf %494, %504 : vector<2x32xf32>
    %506 = arith.addf %503, %505 : vector<2x32xf32>
    %507 = math.tanh %506 : vector<2x32xf32>
    %cst_95 = arith.constant 1.000000e+00 : f32
    %508 = vector.broadcast %cst_95 : f32 to vector<2x32xf32>
    %509 = arith.subf %508, %502 : vector<2x32xf32>
    %510 = arith.mulf %509, %507 : vector<2x32xf32>
    %511 = arith.mulf %502, %479 : vector<2x32xf32>
    %512 = arith.addf %510, %511 : vector<2x32xf32>
    %513 = vector.extract_strided_slice %7 {offsets = [0, 0], sizes = [2, 32], strides = [1, 1]} : vector<16x32xf32> to vector<2x32xf32>
    %cst_96 = arith.constant dense<0.000000e+00> : vector<2x96xf32>
    %514 = tpu.matmul %513, %12, %cst_96 {dimension_numbers = #tpu.dot_dimension_numbers<[1], [0], [0], [1], [0, 0, 1, 1], [], []>} : vector<2x32xf32>, vector<32x96xf32>, vector<2x96xf32> -> vector<2x96xf32>
    %515 = vector.broadcast %14 : vector<1x96xf32> to vector<2x96xf32>
    %516 = arith.addf %514, %515 : vector<2x96xf32>
    %cst_97 = arith.constant dense<0.000000e+00> : vector<2x96xf32>
    %517 = tpu.matmul %512, %13, %cst_97 {dimension_numbers = #tpu.dot_dimension_numbers<[1], [0], [0], [1], [0, 0, 1, 1], [], []>} : vector<2x32xf32>, vector<32x96xf32>, vector<2x96xf32> -> vector<2x96xf32>
    %518 = vector.broadcast %15 : vector<1x96xf32> to vector<2x96xf32>
    %519 = arith.addf %517, %518 : vector<2x96xf32>
    %520 = vector.extract_strided_slice %516 {offsets = [0, 0], sizes = [2, 32], strides = [1, 1]} : vector<2x96xf32> to vector<2x32xf32>
    %521 = vector.extract_strided_slice %519 {offsets = [0, 0], sizes = [2, 32], strides = [1, 1]} : vector<2x96xf32> to vector<2x32xf32>
    %522 = arith.addf %520, %521 : vector<2x32xf32>
    %523 = arith.negf %522 : vector<2x32xf32>
    %524 = math.exp %523 : vector<2x32xf32>
    %cst_98 = arith.constant 1.000000e+00 : f32
    %525 = vector.broadcast %cst_98 : f32 to vector<2x32xf32>
    %526 = arith.addf %525, %524 : vector<2x32xf32>
    %527 = arith.divf %525, %526 : vector<2x32xf32>
    %528 = vector.extract_strided_slice %516 {offsets = [0, 32], sizes = [2, 32], strides = [1, 1]} : vector<2x96xf32> to vector<2x32xf32>
    %529 = vector.extract_strided_slice %519 {offsets = [0, 32], sizes = [2, 32], strides = [1, 1]} : vector<2x96xf32> to vector<2x32xf32>
    %530 = arith.addf %528, %529 : vector<2x32xf32>
    %531 = arith.negf %530 : vector<2x32xf32>
    %532 = math.exp %531 : vector<2x32xf32>
    %cst_99 = arith.constant 1.000000e+00 : f32
    %533 = vector.broadcast %cst_99 : f32 to vector<2x32xf32>
    %534 = arith.addf %533, %532 : vector<2x32xf32>
    %535 = arith.divf %533, %534 : vector<2x32xf32>
    %536 = vector.extract_strided_slice %516 {offsets = [0, 64], sizes = [2, 32], strides = [1, 1]} : vector<2x96xf32> to vector<2x32xf32>
    %537 = vector.extract_strided_slice %519 {offsets = [0, 64], sizes = [2, 32], strides = [1, 1]} : vector<2x96xf32> to vector<2x32xf32>
    %538 = arith.mulf %527, %537 : vector<2x32xf32>
    %539 = arith.addf %536, %538 : vector<2x32xf32>
    %540 = math.tanh %539 : vector<2x32xf32>
    %cst_100 = arith.constant 1.000000e+00 : f32
    %541 = vector.broadcast %cst_100 : f32 to vector<2x32xf32>
    %542 = arith.subf %541, %535 : vector<2x32xf32>
    %543 = arith.mulf %542, %540 : vector<2x32xf32>
    %544 = arith.mulf %535, %512 : vector<2x32xf32>
    %545 = arith.addf %543, %544 : vector<2x32xf32>
    %546 = tpu.concatenate %49, %545 in 1 : vector<2x32xf32>, vector<2x32xf32> -> vector<2x64xf32>
    %c0_101 = arith.constant 0 : index
    %c0_102 = arith.constant 0 : index
    %c0_103 = arith.constant 0 : index
    %547 = vector.load %arg12[%c0_101, %c0_102, %c0_103] : memref<8x2x64xf32, #tpu.memory_space<vmem>>, vector<1x2x64xf32>
    %548 = vector.shape_cast %547 : vector<1x2x64xf32> to vector<2x64xf32>
    %549 = vector.shape_cast %546 : vector<2x64xf32> to vector<1x2x64xf32>
    tpu.vector_store %arg12[%c0_101, %c0_102, %c0_103], %549 {strides = array<i32>} : memref<8x2x64xf32, #tpu.memory_space<vmem>>, vector<1x2x64xf32>,
    %550 = tpu.concatenate %82, %512 in 1 : vector<2x32xf32>, vector<2x32xf32> -> vector<2x64xf32>
    %c1 = arith.constant 1 : index
    %c0_104 = arith.constant 0 : index
    %c0_105 = arith.constant 0 : index
    %551 = vector.load %arg12[%c1, %c0_104, %c0_105] : memref<8x2x64xf32, #tpu.memory_space<vmem>>, vector<1x2x64xf32>
    %552 = vector.shape_cast %551 : vector<1x2x64xf32> to vector<2x64xf32>
    %553 = vector.shape_cast %550 : vector<2x64xf32> to vector<1x2x64xf32>
    tpu.vector_store %arg12[%c1, %c0_104, %c0_105], %553 {strides = array<i32>} : memref<8x2x64xf32, #tpu.memory_space<vmem>>, vector<1x2x64xf32>,
    %554 = tpu.concatenate %115, %479 in 1 : vector<2x32xf32>, vector<2x32xf32> -> vector<2x64xf32>
    %c2 = arith.constant 2 : index
    %c0_106 = arith.constant 0 : index
    %c0_107 = arith.constant 0 : index
    %555 = vector.load %arg12[%c2, %c0_106, %c0_107] : memref<8x2x64xf32, #tpu.memory_space<vmem>>, vector<1x2x64xf32>
    %556 = vector.shape_cast %555 : vector<1x2x64xf32> to vector<2x64xf32>
    %557 = vector.shape_cast %554 : vector<2x64xf32> to vector<1x2x64xf32>
    tpu.vector_store %arg12[%c2, %c0_106, %c0_107], %557 {strides = array<i32>} : memref<8x2x64xf32, #tpu.memory_space<vmem>>, vector<1x2x64xf32>,
    %558 = tpu.concatenate %148, %446 in 1 : vector<2x32xf32>, vector<2x32xf32> -> vector<2x64xf32>
    %c3 = arith.constant 3 : index
    %c0_108 = arith.constant 0 : index
    %c0_109 = arith.constant 0 : index
    %559 = vector.load %arg12[%c3, %c0_108, %c0_109] : memref<8x2x64xf32, #tpu.memory_space<vmem>>, vector<1x2x64xf32>
    %560 = vector.shape_cast %559 : vector<1x2x64xf32> to vector<2x64xf32>
    %561 = vector.shape_cast %558 : vector<2x64xf32> to vector<1x2x64xf32>
    tpu.vector_store %arg12[%c3, %c0_108, %c0_109], %561 {strides = array<i32>} : memref<8x2x64xf32, #tpu.memory_space<vmem>>, vector<1x2x64xf32>,
    %562 = tpu.concatenate %181, %413 in 1 : vector<2x32xf32>, vector<2x32xf32> -> vector<2x64xf32>
    %c4 = arith.constant 4 : index
    %c0_110 = arith.constant 0 : index
    %c0_111 = arith.constant 0 : index
    %563 = vector.load %arg12[%c4, %c0_110, %c0_111] : memref<8x2x64xf32, #tpu.memory_space<vmem>>, vector<1x2x64xf32>
    %564 = vector.shape_cast %563 : vector<1x2x64xf32> to vector<2x64xf32>
    %565 = vector.shape_cast %562 : vector<2x64xf32> to vector<1x2x64xf32>
    tpu.vector_store %arg12[%c4, %c0_110, %c0_111], %565 {strides = array<i32>} : memref<8x2x64xf32, #tpu.memory_space<vmem>>, vector<1x2x64xf32>,
    %566 = tpu.concatenate %214, %380 in 1 : vector<2x32xf32>, vector<2x32xf32> -> vector<2x64xf32>
    %c5 = arith.constant 5 : index
    %c0_112 = arith.constant 0 : index
    %c0_113 = arith.constant 0 : index
    %567 = vector.load %arg12[%c5, %c0_112, %c0_113] : memref<8x2x64xf32, #tpu.memory_space<vmem>>, vector<1x2x64xf32>
    %568 = vector.shape_cast %567 : vector<1x2x64xf32> to vector<2x64xf32>
    %569 = vector.shape_cast %566 : vector<2x64xf32> to vector<1x2x64xf32>
    tpu.vector_store %arg12[%c5, %c0_112, %c0_113], %569 {strides = array<i32>} : memref<8x2x64xf32, #tpu.memory_space<vmem>>, vector<1x2x64xf32>,
    %570 = tpu.concatenate %247, %347 in 1 : vector<2x32xf32>, vector<2x32xf32> -> vector<2x64xf32>
    %c6 = arith.constant 6 : index
    %c0_114 = arith.constant 0 : index
    %c0_115 = arith.constant 0 : index
    %571 = vector.load %arg12[%c6, %c0_114, %c0_115] : memref<8x2x64xf32, #tpu.memory_space<vmem>>, vector<1x2x64xf32>
    %572 = vector.shape_cast %571 : vector<1x2x64xf32> to vector<2x64xf32>
    %573 = vector.shape_cast %570 : vector<2x64xf32> to vector<1x2x64xf32>
    tpu.vector_store %arg12[%c6, %c0_114, %c0_115], %573 {strides = array<i32>} : memref<8x2x64xf32, #tpu.memory_space<vmem>>, vector<1x2x64xf32>,
    %574 = tpu.concatenate %280, %314 in 1 : vector<2x32xf32>, vector<2x32xf32> -> vector<2x64xf32>
    %c7 = arith.constant 7 : index
    %c0_116 = arith.constant 0 : index
    %c0_117 = arith.constant 0 : index
    %575 = vector.load %arg12[%c7, %c0_116, %c0_117] : memref<8x2x64xf32, #tpu.memory_space<vmem>>, vector<1x2x64xf32>
    %576 = vector.shape_cast %575 : vector<1x2x64xf32> to vector<2x64xf32>
    %577 = vector.shape_cast %574 : vector<2x64xf32> to vector<1x2x64xf32>
    tpu.vector_store %arg12[%c7, %c0_116, %c0_117], %577 {strides = array<i32>} : memref<8x2x64xf32, #tpu.memory_space<vmem>>, vector<1x2x64xf32>,
    %578 = tpu.concatenate %280, %545 in 1 : vector<2x32xf32>, vector<2x32xf32> -> vector<2x64xf32>
    %c0_118 = arith.constant 0 : index
    %c0_119 = arith.constant 0 : index
    %579 = vector.load %arg10[%c0_118, %c0_119] : memref<64x32xf32, #tpu.memory_space<vmem>>, vector<64x32xf32>
    %cst_120 = arith.constant dense<0.000000e+00> : vector<2x32xf32>
    %580 = tpu.matmul %578, %579, %cst_120 {dimension_numbers = #tpu.dot_dimension_numbers<[1], [0], [0], [1], [0, 0, 1, 1], [], []>} : vector<2x64xf32>, vector<64x32xf32>, vector<2x32xf32> -> vector<2x32xf32>
    %c0_121 = arith.constant 0 : index
    %c0_122 = arith.constant 0 : index
    %581 = vector.load %arg11[%c0_121, %c0_122] : memref<1x32xf32, #tpu.memory_space<vmem>>, vector<1x32xf32>
    %582 = vector.broadcast %581 : vector<1x32xf32> to vector<2x32xf32>
    %583 = arith.addf %580, %582 : vector<2x32xf32>
    %cst_123 = arith.constant 0.000000e+00 : f32
    %584 = vector.broadcast %cst_123 : f32 to vector<2x32xf32>
    %585 = arith.maximumf %583, %584 : vector<2x32xf32>
    %c0_124 = arith.constant 0 : index
    %c0_125 = arith.constant 0 : index
    %586 = vector.load %arg13[%c0_124, %c0_125] : memref<2x32xf32, #tpu.memory_space<vmem>>, vector<2x32xf32>
    tpu.vector_store %arg13[%c0_124, %c0_125], %585 {strides = array<i32>} : memref<2x32xf32, #tpu.memory_space<vmem>>, vector<2x32xf32>,
    return
  }
}

</mosaic_0001>

<llo_original>
// kernel: tpu_custom_call.1
$region0: #{tpu_custom_call.1}
  #allocation0 [shape = 'u32[]', space=smem, size = 0x4, offset = 0x4, fixed_abs, tag = 'smem constant byte address 0x4 - core index']
  #allocation1 [shape = 'u32[144,128]{1,0:T(1,128)}', space=vmem, size = 0x12000, scoped, tag = 'internal scratch']
  %s0 = inlined_call_operand.vmem [shape: s32[16,1], index: 0, kind: input, shape index: {}]
  %s1 = inlined_call_operand.vmem [shape: f32[64,32], index: 1, kind: input, shape index: {}]
  %s2 = inlined_call_operand.vmem [shape: f32[32,96], index: 2, kind: input, shape index: {}]
  %s3 = inlined_call_operand.vmem [shape: f32[32,96], index: 3, kind: input, shape index: {}]
  %s4 = inlined_call_operand.vmem [shape: f32[1,96], index: 4, kind: input, shape index: {}]
  %s5 = inlined_call_operand.vmem [shape: f32[1,96], index: 5, kind: input, shape index: {}]
  %s6 = inlined_call_operand.vmem [shape: f32[32,96], index: 6, kind: input, shape index: {}]
  %s7 = inlined_call_operand.vmem [shape: f32[32,96], index: 7, kind: input, shape index: {}]
  %s8 = inlined_call_operand.vmem [shape: f32[1,96], index: 8, kind: input, shape index: {}]
  %s9 = inlined_call_operand.vmem [shape: f32[1,96], index: 9, kind: input, shape index: {}]
  %s10 = inlined_call_operand.vmem [shape: f32[64,32], index: 10, kind: input, shape index: {}]
  %s11 = inlined_call_operand.vmem [shape: f32[1,32], index: 11, kind: input, shape index: {}]
  %s12 = inlined_call_operand.hbm [shape: f32[8,2,64], index: 12, kind: output, shape index: {0}]
  %s13 = inlined_call_operand.hbm [shape: f32[2,32], index: 13, kind: output, shape index: {1}]
  %14 = xla_tuple %s12, %s13
  %s15 = sld [smem:[#allocation0]]
  $region66: #{tpu_custom_call.1} parent=0
    _
  %s17 = ssub.s32 1, %s15
  %s18 = scalar_select 0, %s17, %s15
  $region1: #{tpu_custom_call.1} parent=0
    #allocation2 [shape = 'u8[8192]{0}', space=vmem, size = 0x2000, scoped, tag = 'output window, operand 0, single buffered']
    #allocation3 [shape = 's32[1]{0}', space=sflag, size = 0x4, scoped, tag = 'scoped memory for tpu_custom_call.1']
    #allocation4 [shape = 'u8[1024]{0}', space=vmem, size = 0x400, scoped, tag = 'output window, operand 1, single buffered']
    #allocation5 [shape = 's32[1]{0}', space=sflag, size = 0x4, scoped, tag = 'scoped memory for tpu_custom_call.1']
    %19 = vsyncpa [#allocation3], 0
    %20 = vsyncpa [#allocation5], 0
    // Predicated region
    $region2: #{tpu_custom_call.1} parent=1 // pred_check
      _
    $region3: #{tpu_custom_call.1} parent=1 // pred_check_branch
      %22 = sbr.rel (0) target = $region5
    $region4: #{tpu_custom_call.1} parent=1 // pred_region
      _
    $region5: #{tpu_custom_call.1} parent=1 // pred_fallthru
      _
    // Predicated region
    $region6: #{tpu_custom_call.1} parent=1 // pred_check
      _
    $region7: #{tpu_custom_call.1} parent=1 // pred_check_branch
      %24 = sbr.rel (0) target = $region9
    $region8: #{tpu_custom_call.1} parent=1 // pred_region
      _
    $region9: #{tpu_custom_call.1} parent=1 // pred_fallthru
      _
    // Predicated region
    $region10: #{tpu_custom_call.1} parent=1 // pred_check
      _
    $region11: #{tpu_custom_call.1} parent=1 // pred_check_branch
      %26 = sbr.rel (0) target = $region13
    $region12: #{tpu_custom_call.1} parent=1 // pred_region
      _
    $region13: #{tpu_custom_call.1} parent=1 // pred_fallthru
      _
    // Predicated region
    $region14: #{tpu_custom_call.1} parent=1 // pred_check
      _
    $region15: #{tpu_custom_call.1} parent=1 // pred_check_branch
      %28 = sbr.rel (0) target = $region17
    $region16: #{tpu_custom_call.1} parent=1 // pred_region
      _
    $region17: #{tpu_custom_call.1} parent=1 // pred_fallthru
      _
    // Predicated region
    $region18: #{tpu_custom_call.1} parent=1 // pred_check
      _
    $region19: #{tpu_custom_call.1} parent=1 // pred_check_branch
      %30 = sbr.rel (0) target = $region21
    $region20: #{tpu_custom_call.1} parent=1 // pred_region
      _
    $region21: #{tpu_custom_call.1} parent=1 // pred_fallthru
      _
    // Predicated region
    $region22: #{tpu_custom_call.1} parent=1 // pred_check
      _
    $region23: #{tpu_custom_call.1} parent=1 // pred_check_branch
      %32 = sbr.rel (0) target = $region25
    $region24: #{tpu_custom_call.1} parent=1 // pred_region
      _
    $region25: #{tpu_custom_call.1} parent=1 // pred_fallthru
      _
    // Predicated region
    $region26: #{tpu_custom_call.1} parent=1 // pred_check
      _
    $region27: #{tpu_custom_call.1} parent=1 // pred_check_branch
      %34 = sbr.rel (0) target = $region29
    $region28: #{tpu_custom_call.1} parent=1 // pred_region
      _
    $region29: #{tpu_custom_call.1} parent=1 // pred_fallthru
      _
    // Predicated region
    $region30: #{tpu_custom_call.1} parent=1 // pred_check
      _
    $region31: #{tpu_custom_call.1} parent=1 // pred_check_branch
      %36 = sbr.rel (0) target = $region33
    $region32: #{tpu_custom_call.1} parent=1 // pred_region
      _
    $region33: #{tpu_custom_call.1} parent=1 // pred_fallthru
      _
    // Predicated region
    $region34: #{tpu_custom_call.1} parent=1 // pred_check
      _
    $region35: #{tpu_custom_call.1} parent=1 // pred_check_branch
      %38 = sbr.rel (0) target = $region37
    $region36: #{tpu_custom_call.1} parent=1 // pred_region
      _
    $region37: #{tpu_custom_call.1} parent=1 // pred_fallthru
      _
    // Predicated region
    $region38: #{tpu_custom_call.1} parent=1 // pred_check
      _
    $region39: #{tpu_custom_call.1} parent=1 // pred_check_branch
      %40 = sbr.rel (0) target = $region41
    $region40: #{tpu_custom_call.1} parent=1 // pred_region
      _
    $region41: #{tpu_custom_call.1} parent=1 // pred_fallthru
      _
    // Predicated region
    $region42: #{tpu_custom_call.1} parent=1 // pred_check
      _
    $region43: #{tpu_custom_call.1} parent=1 // pred_check_branch
      %42 = sbr.rel (0) target = $region45
    $region44: #{tpu_custom_call.1} parent=1 // pred_region
      _
    $region45: #{tpu_custom_call.1} parent=1 // pred_fallthru
      _
    // Predicated region
    $region46: #{tpu_custom_call.1} parent=1 // pred_check
      _
    $region47: #{tpu_custom_call.1} parent=1 // pred_check_branch
      %44 = sbr.rel (0) target = $region49
    $region48: #{tpu_custom_call.1} parent=1 // pred_region
      _
    $region49: #{tpu_custom_call.1} parent=1 // pred_fallthru
      _
    %v45 = vld [vmem:[%s0] sm:$0xff]
    %v46 = vld [vmem:[%s0 + $0x8] sm:$0xff]
    %v47 = vlaneseq
    %v48 = vand.u32 %v47, 127
    %49 = vset.pattern.permute.xlu0 0
    %50 = vperm.xlu0 %49, %v45
    %v51 = vpop.permute.xlu0 %50
    %52 = vset.pattern.permute.xlu0 0
    %53 = vperm.xlu0 %52, %v46
    %v54 = vpop.permute.xlu0 %53
    %vm55 = vcmp.eq.s32.totalorder %v51, %v48
    %vm56 = vcmp.eq.s32.totalorder %v54, %v48
    %v57 = vsel %vm55, 1, 0
    %v58 = vsel %vm56, 1, 0
    %v59 = vcvt.s32.f32 %v57
    %v60 = vcvt.s32.f32 %v58
    %v61 = vld [vmem:[%s1] sm:$0xff]
    %v62 = vld [vmem:[%s1 + $0x8] sm:$0xff]
    %v63 = vld [vmem:[%s1 + $0x10] sm:$0xff]
    %v64 = vld [vmem:[%s1 + $0x18] sm:$0xff]
    %v65 = vld [vmem:[%s1 + $0x20] sm:$0xff]
    %v66 = vld [vmem:[%s1 + $0x28] sm:$0xff]
    %v67 = vld [vmem:[%s1 + $0x30] sm:$0xff]
    %v68 = vld [vmem:[%s1 + $0x38] sm:$0xff]
    %vm69 = vcmask 523264
    %v71 = vsel %vm69, %v59, 0
    %v74 = vsel %vm69, %v60, 0
    %76 = vmatprep.subr.mxu0 0.0
    %77 = vmatpush1.msra.mxu0 0.0
    %78 = vmatprep.subr.mxu0 0.0
    %79 = vmatpush1.msra.mxu0 0.0
    %80 = vmatprep.subr.mxu0 0.0
    %81 = vmatpush1.msra.mxu0 0.0
    %82 = vmatprep.subr.mxu0 0.0
    %83 = vmatpush1.msra.mxu0 0.0
    %84 = vmatprep.subr.mxu0 0.0
    %85 = vmatpush1.msra.mxu0 0.0
    %86 = vmatprep.subr.mxu0 0.0
    %87 = vmatpush1.msra.mxu0 0.0
    %88 = vmatprep.subr.mxu0 0.0
    %89 = vmatpush1.msra.mxu0 0.0
    %90 = vmatprep.subr.mxu0 0.0
    %91 = vmatpush1.msra.mxu0 0.0
    %92 = vmatprep.subr.mxu0 0.0
    %93 = vmatpush1.msra.mxu0 %v68
    %94 = vmatprep.subr.mxu0 0.0
    %95 = vmatpush1.msra.mxu0 %v67
    %96 = vmatprep.subr.mxu0 0.0
    %97 = vmatpush1.msra.mxu0 %v66
    %98 = vmatprep.subr.mxu0 0.0
    %99 = vmatpush1.msra.mxu0 %v65
    %100 = vmatprep.subr.mxu0 0.0
    %101 = vmatpush1.msra.mxu0 %v64
    %102 = vmatprep.subr.mxu0 0.0
    %103 = vmatpush1.msra.mxu0 %v63
    %104 = vmatprep.subr.mxu0 0.0
    %105 = vmatpush1.msra.mxu0 %v62
    %106 = vmatprep.subr.mxu0 0.0
    %107 = vmatpush1.msra.mxu0 %v61
    %108 = vmatprep.subr.mxu0 0.0
    %109 = vmatpush2.msra.mxu0 0.0
    %110 = vmatprep.subr.mxu0 0.0
    %111 = vmatpush2.msra.mxu0 0.0
    %112 = vmatprep.subr.mxu0 0.0
    %113 = vmatpush2.msra.mxu0 0.0
    %114 = vmatprep.subr.mxu0 0.0
    %115 = vmatpush2.msra.mxu0 0.0
    %116 = vmatprep.subr.mxu0 0.0
    %117 = vmatpush2.msra.mxu0 0.0
    %118 = vmatprep.subr.mxu0 0.0
    %119 = vmatpush2.msra.mxu0 0.0
    %120 = vmatprep.subr.mxu0 0.0
    %121 = vmatpush2.msra.mxu0 0.0
    %122 = vmatprep.subr.mxu0 0.0
    %123 = vmatpush2.msra.mxu0 0.0
    %124 = vmatprep.subr.mxu0 0.0
    %125 = vmatpush2.msra.mxu0 0.0
    %126 = vmatprep.subr.mxu0 0.0
    %127 = vmatpush2.msra.mxu0 0.0
    %128 = vmatprep.subr.mxu0 0.0
    %129 = vmatpush2.msra.mxu0 0.0
    %130 = vmatprep.subr.mxu0 0.0
    %131 = vmatpush2.msra.mxu0 0.0
    %132 = vmatprep.subr.mxu0 0.0
    %133 = vmatpush2.msra.mxu0 0.0
    %134 = vmatprep.subr.mxu0 0.0
    %135 = vmatpush2.msra.mxu0 0.0
    %136 = vmatprep.subr.mxu0 0.0
    %137 = vmatpush2.msra.mxu0 0.0
    %138 = vmatprep.subr.mxu0 0.0
    %139 = vmatpush2.msra.mxu0 0.0
    %140 = vmatprep.mubr.f32.mxu0 0.0
    %141 = vmatmul.mubr.f32.gmra.mxu0 %v71
    %v142 = vpop.f32.mrf.mxu0
    %v143 = vadd.f32 0.0, %v142
    %v144 = vpop.f32.mrf.mxu0
    %145 = vmatprep.mubr.f32.mxu0 0.0
    %146 = vmatmul.mubr.f32.gmra.mxu0 %v74
    %v147 = vpop.f32.mrf.mxu0
    %v148 = vadd.f32 0.0, %v147
    %v149 = vpop.f32.mrf.mxu0
    %150 = vdwg.mxu0
    %v151 = vld [vmem:[%s2] sm:$0xff]
    %v152 = vld [vmem:[%s2 + $0x8] sm:$0xff]
    %v153 = vld [vmem:[%s2 + $0x10] sm:$0xff]
    %v154 = vld [vmem:[%s2 + $0x18] sm:$0xff]
    %v155 = vld [vmem:[%s3] sm:$0xff]
    %v156 = vld [vmem:[%s3 + $0x8] sm:$0xff]
    %v157 = vld [vmem:[%s3 + $0x10] sm:$0xff]
    %v158 = vld [vmem:[%s3 + $0x18] sm:$0xff]
    %v159 = vld [vmem:[%s4] sm:$0x1]
    %v160 = vld [vmem:[%s5] sm:$0x1]
    %v161 = vld [vmem:[%s6] sm:$0xff]
    %v162 = vld [vmem:[%s6 + $0x8] sm:$0xff]
    %v163 = vld [vmem:[%s6 + $0x10] sm:$0xff]
    %v164 = vld [vmem:[%s6 + $0x18] sm:$0xff]
    %v165 = vld [vmem:[%s7] sm:$0xff]
    %v166 = vld [vmem:[%s7 + $0x8] sm:$0xff]
    %v167 = vld [vmem:[%s7 + $0x10] sm:$0xff]
    %v168 = vld [vmem:[%s7 + $0x18] sm:$0xff]
    %v169 = vld [vmem:[%s8] sm:$0x1]
    %v170 = vld [vmem:[%s9] sm:$0x1]
    %v172 = vlaneseq
    %v173 = vshrl.u32 %v172, 7
    %v174 = vsub.s32 0, %v173
    %v175 = vrot.slane %v159, %v174
    %vm177 = vcmask 261120
    %v179 = vsel %vm177, %v143, 0
    %181 = vmatprep.subr.mxu0 0.0
    %182 = vmatpush1.msra.mxu0 0.0
    %183 = vmatprep.subr.mxu0 0.0
    %184 = vmatpush1.msra.mxu0 0.0
    %185 = vmatprep.subr.mxu0 0.0
    %186 = vmatpush1.msra.mxu0 0.0
    %187 = vmatprep.subr.mxu0 0.0
    %188 = vmatpush1.msra.mxu0 0.0
    %189 = vmatprep.subr.mxu0 0.0
    %190 = vmatpush1.msra.mxu0 0.0
    %191 = vmatprep.subr.mxu0 0.0
    %192 = vmatpush1.msra.mxu0 0.0
    %193 = vmatprep.subr.mxu0 0.0
    %194 = vmatpush1.msra.mxu0 0.0
    %195 = vmatprep.subr.mxu0 0.0
    %196 = vmatpush1.msra.mxu0 0.0
    %197 = vmatprep.subr.mxu0 0.0
    %198 = vmatpush1.msra.mxu0 0.0
    %199 = vmatprep.subr.mxu0 0.0
    %200 = vmatpush1.msra.mxu0 0.0
    %201 = vmatprep.subr.mxu0 0.0
    %202 = vmatpush1.msra.mxu0 0.0
    %203 = vmatprep.subr.mxu0 0.0
    %204 = vmatpush1.msra.mxu0 0.0
    %205 = vmatprep.subr.mxu0 0.0
    %206 = vmatpush1.msra.mxu0 %v154
    %207 = vmatprep.subr.mxu0 0.0
    %208 = vmatpush1.msra.mxu0 %v153
    %209 = vmatprep.subr.mxu0 0.0
    %210 = vmatpush1.msra.mxu0 %v152
    %211 = vmatprep.subr.mxu0 0.0
    %212 = vmatpush1.msra.mxu0 %v151
    %213 = vmatprep.subr.mxu0 0.0
    %214 = vmatpush2.msra.mxu0 0.0
    %215 = vmatprep.subr.mxu0 0.0
    %216 = vmatpush2.msra.mxu0 0.0
    %217 = vmatprep.subr.mxu0 0.0
    %218 = vmatpush2.msra.mxu0 0.0
    %219 = vmatprep.subr.mxu0 0.0
    %220 = vmatpush2.msra.mxu0 0.0
    %221 = vmatprep.subr.mxu0 0.0
    %222 = vmatpush2.msra.mxu0 0.0
    %223 = vmatprep.subr.mxu0 0.0
    %224 = vmatpush2.msra.mxu0 0.0
    %225 = vmatprep.subr.mxu0 0.0
    %226 = vmatpush2.msra.mxu0 0.0
    %227 = vmatprep.subr.mxu0 0.0
    %228 = vmatpush2.msra.mxu0 0.0
    %229 = vmatprep.subr.mxu0 0.0
    %230 = vmatpush2.msra.mxu0 0.0
    %231 = vmatprep.subr.mxu0 0.0
    %232 = vmatpush2.msra.mxu0 0.0
    %233 = vmatprep.subr.mxu0 0.0
    %234 = vmatpush2.msra.mxu0 0.0
    %235 = vmatprep.subr.mxu0 0.0
    %236 = vmatpush2.msra.mxu0 0.0
    %237 = vmatprep.subr.mxu0 0.0
    %238 = vmatpush2.msra.mxu0 0.0
    %239 = vmatprep.subr.mxu0 0.0
    %240 = vmatpush2.msra.mxu0 0.0
    %241 = vmatprep.subr.mxu0 0.0
    %242 = vmatpush2.msra.mxu0 0.0
    %243 = vmatprep.subr.mxu0 0.0
    %244 = vmatpush2.msra.mxu0 0.0
    %245 = vmatprep.mubr.f32.mxu0 0.0
    %246 = vmatmul.mubr.f32.gmra.mxu0 %v179
    %v247 = vpop.f32.mrf.mxu0
    %v248 = vadd.f32 %v175, %v247
    %v249 = vpop.f32.mrf.mxu0
    %250 = vdwg.mxu0
    %v252 = vlaneseq
    %v253 = vshrl.u32 %v252, 7
    %v254 = vsub.s32 0, %v253
    %v255 = vrot.slane %v160, %v254
    %v258 = vsel %vm177, 0.0, 0
    %260 = vmatprep.subr.mxu0 0.0
    %261 = vmatpush1.msra.mxu0 0.0
    %262 = vmatprep.subr.mxu0 0.0
    %263 = vmatpush1.msra.mxu0 0.0
    %264 = vmatprep.subr.mxu0 0.0
    %265 = vmatpush1.msra.mxu0 0.0
    %266 = vmatprep.subr.mxu0 0.0
    %267 = vmatpush1.msra.mxu0 0.0
    %268 = vmatprep.subr.mxu0 0.0
    %269 = vmatpush1.msra.mxu0 0.0
    %270 = vmatprep.subr.mxu0 0.0
    %271 = vmatpush1.msra.mxu0 0.0
    %272 = vmatprep.subr.mxu0 0.0
    %273 = vmatpush1.msra.mxu0 0.0
    %274 = vmatprep.subr.mxu0 0.0
    %275 = vmatpush1.msra.mxu0 0.0
    %276 = vmatprep.subr.mxu0 0.0
    %277 = vmatpush1.msra.mxu0 0.0
    %278 = vmatprep.subr.mxu0 0.0
    %279 = vmatpush1.msra.mxu0 0.0
    %280 = vmatprep.subr.mxu0 0.0
    %281 = vmatpush1.msra.mxu0 0.0
    %282 = vmatprep.subr.mxu0 0.0
    %283 = vmatpush1.msra.mxu0 0.0
    %284 = vmatprep.subr.mxu0 0.0
    %285 = vmatpush1.msra.mxu0 %v158
    %286 = vmatprep.subr.mxu0 0.0
    %287 = vmatpush1.msra.mxu0 %v157
    %288 = vmatprep.subr.mxu0 0.0
    %289 = vmatpush1.msra.mxu0 %v156
    %290 = vmatprep.subr.mxu0 0.0
    %291 = vmatpush1.msra.mxu0 %v155
    %292 = vmatprep.subr.mxu0 0.0
    %293 = vmatpush2.msra.mxu0 0.0
    %294 = vmatprep.subr.mxu0 0.0
    %295 = vmatpush2.msra.mxu0 0.0
    %296 = vmatprep.subr.mxu0 0.0
    %297 = vmatpush2.msra.mxu0 0.0
    %298 = vmatprep.subr.mxu0 0.0
    %299 = vmatpush2.msra.mxu0 0.0
    %300 = vmatprep.subr.mxu0 0.0
    %301 = vmatpush2.msra.mxu0 0.0
    %302 = vmatprep.subr.mxu0 0.0
    %303 = vmatpush2.msra.mxu0 0.0
    %304 = vmatprep.subr.mxu0 0.0
    %305 = vmatpush2.msra.mxu0 0.0
    %306 = vmatprep.subr.mxu0 0.0
    %307 = vmatpush2.msra.mxu0 0.0
    %308 = vmatprep.subr.mxu0 0.0
    %309 = vmatpush2.msra.mxu0 0.0
    %310 = vmatprep.subr.mxu0 0.0
    %311 = vmatpush2.msra.mxu0 0.0
    %312 = vmatprep.subr.mxu0 0.0
    %313 = vmatpush2.msra.mxu0 0.0
    %314 = vmatprep.subr.mxu0 0.0
    %315 = vmatpush2.msra.mxu0 0.0
    %316 = vmatprep.subr.mxu0 0.0
    %317 = vmatpush2.msra.mxu0 0.0
    %318 = vmatprep.subr.mxu0 0.0
    %319 = vmatpush2.msra.mxu0 0.0
    %320 = vmatprep.subr.mxu0 0.0
    %321 = vmatpush2.msra.mxu0 0.0
    %322 = vmatprep.subr.mxu0 0.0
    %323 = vmatpush2.msra.mxu0 0.0
    %324 = vmatprep.mubr.f32.mxu0 0.0
    %325 = vmatmul.mubr.f32.gmra.mxu0 %v258
    %v326 = vpop.f32.mrf.mxu0
    %v327 = vadd.f32 %v255, %v326
    %v328 = vpop.f32.mrf.mxu0
    %329 = vdwg.mxu0
    %v330 = vadd.f32 %v248, %v327
    %v331 = vxor.u32 %v330, 2147483648
    %v332 = vmul.f32 %v331, 1.442695
    %v333 = vpow.pop %v332
    %v334 = vadd.f32 %v333, 1.0
    %v335 = vrcp.pop %v334
    %v336 = vmul.f32 1.0, %v335
    %338 = vrot.lane.b32.xlu0 %v327, 64
    %v339 = vpop.permute.xlu0 %338
    %v341 = vmul.f32 %v336, %v339
    %343 = vrot.lane.b32.xlu0 %v341, 64
    %v344 = vpop.permute.xlu0 %343
    %v346 = vadd.f32 %v248, %v344
    %v347 = vtanh.pop %v346
    %v348 = vsub.f32 1.0, %v336
    %350 = vrot.lane.b32.xlu0 %v347, 96
    %v351 = vpop.permute.xlu0 %350
    %v353 = vmul.f32 %v348, %v351
    %v354 = vmul.f32 %v336, 0.0
    %v355 = vadd.f32 %v353, %v354
    %v356 = vrot.slane %v143, 2
    %v357 = vsel %vm177, %v356, 0
    %359 = vmatprep.subr.mxu0 0.0
    %360 = vmatpush1.msra.mxu0 0.0
    %361 = vmatprep.subr.mxu0 0.0
    %362 = vmatpush1.msra.mxu0 0.0
    %363 = vmatprep.subr.mxu0 0.0
    %364 = vmatpush1.msra.mxu0 0.0
    %365 = vmatprep.subr.mxu0 0.0
    %366 = vmatpush1.msra.mxu0 0.0
    %367 = vmatprep.subr.mxu0 0.0
    %368 = vmatpush1.msra.mxu0 0.0
    %369 = vmatprep.subr.mxu0 0.0
    %370 = vmatpush1.msra.mxu0 0.0
    %371 = vmatprep.subr.mxu0 0.0
    %372 = vmatpush1.msra.mxu0 0.0
    %373 = vmatprep.subr.mxu0 0.0
    %374 = vmatpush1.msra.mxu0 0.0
    %375 = vmatprep.subr.mxu0 0.0
    %376 = vmatpush1.msra.mxu0 0.0
    %377 = vmatprep.subr.mxu0 0.0
    %378 = vmatpush1.msra.mxu0 0.0
    %379 = vmatprep.subr.mxu0 0.0
    %380 = vmatpush1.msra.mxu0 0.0
    %381 = vmatprep.subr.mxu0 0.0
    %382 = vmatpush1.msra.mxu0 0.0
    %383 = vmatprep.subr.mxu0 0.0
    %384 = vmatpush1.msra.mxu0 %v154
    %385 = vmatprep.subr.mxu0 0.0
    %386 = vmatpush1.msra.mxu0 %v153
    %387 = vmatprep.subr.mxu0 0.0
    %388 = vmatpush1.msra.mxu0 %v152
    %389 = vmatprep.subr.mxu0 0.0
    %390 = vmatpush1.msra.mxu0 %v151
    %391 = vmatprep.subr.mxu0 0.0
    %392 = vmatpush2.msra.mxu0 0.0
    %393 = vmatprep.subr.mxu0 0.0
    %394 = vmatpush2.msra.mxu0 0.0
    %395 = vmatprep.subr.mxu0 0.0
    %396 = vmatpush2.msra.mxu0 0.0
    %397 = vmatprep.subr.mxu0 0.0
    %398 = vmatpush2.msra.mxu0 0.0
    %399 = vmatprep.subr.mxu0 0.0
    %400 = vmatpush2.msra.mxu0 0.0
    %401 = vmatprep.subr.mxu0 0.0
    %402 = vmatpush2.msra.mxu0 0.0
    %403 = vmatprep.subr.mxu0 0.0
    %404 = vmatpush2.msra.mxu0 0.0
    %405 = vmatprep.subr.mxu0 0.0
    %406 = vmatpush2.msra.mxu0 0.0
    %407 = vmatprep.subr.mxu0 0.0
    %408 = vmatpush2.msra.mxu0 0.0
    %409 = vmatprep.subr.mxu0 0.0
    %410 = vmatpush2.msra.mxu0 0.0
    %411 = vmatprep.subr.mxu0 0.0
    %412 = vmatpush2.msra.mxu0 0.0
    %413 = vmatprep.subr.mxu0 0.0
    %414 = vmatpush2.msra.mxu0 0.0
    %415 = vmatprep.subr.mxu0 0.0
    %416 = vmatpush2.msra.mxu0 0.0
    %417 = vmatprep.subr.mxu0 0.0
    %418 = vmatpush2.msra.mxu0 0.0
    %419 = vmatprep.subr.mxu0 0.0
    %420 = vmatpush2.msra.mxu0 0.0
    %421 = vmatprep.subr.mxu0 0.0
    %422 = vmatpush2.msra.mxu0 0.0
    %423 = vmatprep.mubr.f32.mxu0 0.0
    %424 = vmatmul.mubr.f32.gmra.mxu0 %v357
    %v425 = vpop.f32.mrf.mxu0
    %v426 = vadd.f32 %v175, %v425
    %v427 = vpop.f32.mrf.mxu0
    %428 = vdwg.mxu0
    %430 = vrot.lane.b32.xlu0 %v355, 96
    %v431 = vpop.permute.xlu0 %430
    %v432 = vsel %vm177, %v431, 0
    %434 = vmatprep.subr.mxu0 0.0
    %435 = vmatpush1.msra.mxu0 0.0
    %436 = vmatprep.subr.mxu0 0.0
    %437 = vmatpush1.msra.mxu0 0.0
    %438 = vmatprep.subr.mxu0 0.0
    %439 = vmatpush1.msra.mxu0 0.0
    %440 = vmatprep.subr.mxu0 0.0
    %441 = vmatpush1.msra.mxu0 0.0
    %442 = vmatprep.subr.mxu0 0.0
    %443 = vmatpush1.msra.mxu0 0.0
    %444 = vmatprep.subr.mxu0 0.0
    %445 = vmatpush1.msra.mxu0 0.0
    %446 = vmatprep.subr.mxu0 0.0
    %447 = vmatpush1.msra.mxu0 0.0
    %448 = vmatprep.subr.mxu0 0.0
    %449 = vmatpush1.msra.mxu0 0.0
    %450 = vmatprep.subr.mxu0 0.0
    %451 = vmatpush1.msra.mxu0 0.0
    %452 = vmatprep.subr.mxu0 0.0
    %453 = vmatpush1.msra.mxu0 0.0
    %454 = vmatprep.subr.mxu0 0.0
    %455 = vmatpush1.msra.mxu0 0.0
    %456 = vmatprep.subr.mxu0 0.0
    %457 = vmatpush1.msra.mxu0 0.0
    %458 = vmatprep.subr.mxu0 0.0
    %459 = vmatpush1.msra.mxu0 %v158
    %460 = vmatprep.subr.mxu0 0.0
    %461 = vmatpush1.msra.mxu0 %v157
    %462 = vmatprep.subr.mxu0 0.0
    %463 = vmatpush1.msra.mxu0 %v156
    %464 = vmatprep.subr.mxu0 0.0
    %465 = vmatpush1.msra.mxu0 %v155
    %466 = vmatprep.subr.mxu0 0.0
    %467 = vmatpush2.msra.mxu0 0.0
    %468 = vmatprep.subr.mxu0 0.0
    %469 = vmatpush2.msra.mxu0 0.0
    %470 = vmatprep.subr.mxu0 0.0
    %471 = vmatpush2.msra.mxu0 0.0
    %472 = vmatprep.subr.mxu0 0.0
    %473 = vmatpush2.msra.mxu0 0.0
    %474 = vmatprep.subr.mxu0 0.0
    %475 = vmatpush2.msra.mxu0 0.0
    %476 = vmatprep.subr.mxu0 0.0
    %477 = vmatpush2.msra.mxu0 0.0
    %478 = vmatprep.subr.mxu0 0.0
    %479 = vmatpush2.msra.mxu0 0.0
    %480 = vmatprep.subr.mxu0 0.0
    %481 = vmatpush2.msra.mxu0 0.0
    %482 = vmatprep.subr.mxu0 0.0
    %483 = vmatpush2.msra.mxu0 0.0
    %484 = vmatprep.subr.mxu0 0.0
    %485 = vmatpush2.msra.mxu0 0.0
    %486 = vmatprep.subr.mxu0 0.0
    %487 = vmatpush2.msra.mxu0 0.0
    %488 = vmatprep.subr.mxu0 0.0
    %489 = vmatpush2.msra.mxu0 0.0
    %490 = vmatprep.subr.mxu0 0.0
    %491 = vmatpush2.msra.mxu0 0.0
    %492 = vmatprep.subr.mxu0 0.0
    %493 = vmatpush2.msra.mxu0 0.0
    %494 = vmatprep.subr.mxu0 0.0
    %495 = vmatpush2.msra.mxu0 0.0
    %496 = vmatprep.subr.mxu0 0.0
    %497 = vmatpush2.msra.mxu0 0.0
    %498 = vmatprep.mubr.f32.mxu0 0.0
    %499 = vmatmul.mubr.f32.gmra.mxu0 %v432
    %v500 = vpop.f32.mrf.mxu0
    %v501 = vadd.f32 %v255, %v500
    %v502 = vpop.f32.mrf.mxu0
    %503 = vdwg.mxu0
    %v504 = vadd.f32 %v426, %v501
    %v505 = vxor.u32 %v504, 2147483648
    %v506 = vmul.f32 %v505, 1.442695
    %v507 = vpow.pop %v506
    %v508 = vadd.f32 %v507, 1.0
    %v509 = vrcp.pop %v508
    %v510 = vmul.f32 1.0, %v509
    %512 = vrot.lane.b32.xlu0 %v501, 64
    %v513 = vpop.permute.xlu0 %512
    %v515 = vmul.f32 %v510, %v513
    %517 = vrot.lane.b32.xlu0 %v515, 64
    %v518 = vpop.permute.xlu0 %517
    %v520 = vadd.f32 %v426, %v518
    %v521 = vtanh.pop %v520
    %v522 = vsub.f32 1.0, %v510
    %524 = vrot.lane.b32.xlu0 %v521, 96
    %v525 = vpop.permute.xlu0 %524
    %v527 = vmul.f32 %v522, %v525
    %v528 = vmul.f32 %v510, %v355
    %v529 = vadd.f32 %v527, %v528
    %v530 = vrot.slane %v143, 4
    %v531 = vsel %vm177, %v530, 0
    %533 = vmatprep.subr.mxu0 0.0
    %534 = vmatpush1.msra.mxu0 0.0
    %535 = vmatprep.subr.mxu0 0.0
    %536 = vmatpush1.msra.mxu0 0.0
    %537 = vmatprep.subr.mxu0 0.0
    %538 = vmatpush1.msra.mxu0 0.0
    %539 = vmatprep.subr.mxu0 0.0
    %540 = vmatpush1.msra.mxu0 0.0
    %541 = vmatprep.subr.mxu0 0.0
    %542 = vmatpush1.msra.mxu0 0.0
    %543 = vmatprep.subr.mxu0 0.0
    %544 = vmatpush1.msra.mxu0 0.0
    %545 = vmatprep.subr.mxu0 0.0
    %546 = vmatpush1.msra.mxu0 0.0
    %547 = vmatprep.subr.mxu0 0.0
    %548 = vmatpush1.msra.mxu0 0.0
    %549 = vmatprep.subr.mxu0 0.0
    %550 = vmatpush1.msra.mxu0 0.0
    %551 = vmatprep.subr.mxu0 0.0
    %552 = vmatpush1.msra.mxu0 0.0
    %553 = vmatprep.subr.mxu0 0.0
    %554 = vmatpush1.msra.mxu0 0.0
    %555 = vmatprep.subr.mxu0 0.0
    %556 = vmatpush1.msra.mxu0 0.0
    %557 = vmatprep.subr.mxu0 0.0
    %558 = vmatpush1.msra.mxu0 %v154
    %559 = vmatprep.subr.mxu0 0.0
    %560 = vmatpush1.msra.mxu0 %v153
    %561 = vmatprep.subr.mxu0 0.0
    %562 = vmatpush1.msra.mxu0 %v152
    %563 = vmatprep.subr.mxu0 0.0
    %564 = vmatpush1.msra.mxu0 %v151
    %565 = vmatprep.subr.mxu0 0.0
    %566 = vmatpush2.msra.mxu0 0.0
    %567 = vmatprep.subr.mxu0 0.0
    %568 = vmatpush2.msra.mxu0 0.0
    %569 = vmatprep.subr.mxu0 0.0
    %570 = vmatpush2.msra.mxu0 0.0
    %571 = vmatprep.subr.mxu0 0.0
    %572 = vmatpush2.msra.mxu0 0.0
    %573 = vmatprep.subr.mxu0 0.0
    %574 = vmatpush2.msra.mxu0 0.0
    %575 = vmatprep.subr.mxu0 0.0
    %576 = vmatpush2.msra.mxu0 0.0
    %577 = vmatprep.subr.mxu0 0.0
    %578 = vmatpush2.msra.mxu0 0.0
    %579 = vmatprep.subr.mxu0 0.0
    %580 = vmatpush2.msra.mxu0 0.0
    %581 = vmatprep.subr.mxu0 0.0
    %582 = vmatpush2.msra.mxu0 0.0
    %583 = vmatprep.subr.mxu0 0.0
    %584 = vmatpush2.msra.mxu0 0.0
    %585 = vmatprep.subr.mxu0 0.0
    %586 = vmatpush2.msra.mxu0 0.0
    %587 = vmatprep.subr.mxu0 0.0
    %588 = vmatpush2.msra.mxu0 0.0
    %589 = vmatprep.subr.mxu0 0.0
    %590 = vmatpush2.msra.mxu0 0.0
    %591 = vmatprep.subr.mxu0 0.0
    %592 = vmatpush2.msra.mxu0 0.0
    %593 = vmatprep.subr.mxu0 0.0
    %594 = vmatpush2.msra.mxu0 0.0
    %595 = vmatprep.subr.mxu0 0.0
    %596 = vmatpush2.msra.mxu0 0.0
    %597 = vmatprep.mubr.f32.mxu0 0.0
    %598 = vmatmul.mubr.f32.gmra.mxu0 %v531
    %v599 = vpop.f32.mrf.mxu0
    %v600 = vadd.f32 %v175, %v599
    %v601 = vpop.f32.mrf.mxu0
    %602 = vdwg.mxu0
    %604 = vrot.lane.b32.xlu0 %v529, 96
    %v605 = vpop.permute.xlu0 %604
    %v606 = vsel %vm177, %v605, 0
    %608 = vmatprep.subr.mxu0 0.0
    %609 = vmatpush1.msra.mxu0 0.0
    %610 = vmatprep.subr.mxu0 0.0
    %611 = vmatpush1.msra.mxu0 0.0
    %612 = vmatprep.subr.mxu0 0.0
    %613 = vmatpush1.msra.mxu0 0.0
    %614 = vmatprep.subr.mxu0 0.0
    %615 = vmatpush1.msra.mxu0 0.0
    %616 = vmatprep.subr.mxu0 0.0
    %617 = vmatpush1.msra.mxu0 0.0
    %618 = vmatprep.subr.mxu0 0.0
    %619 = vmatpush1.msra.mxu0 0.0
    %620 = vmatprep.subr.mxu0 0.0
    %621 = vmatpush1.msra.mxu0 0.0
    %622 = vmatprep.subr.mxu0 0.0
    %623 = vmatpush1.msra.mxu0 0.0
    %624 = vmatprep.subr.mxu0 0.0
    %625 = vmatpush1.msra.mxu0 0.0
    %626 = vmatprep.subr.mxu0 0.0
    %627 = vmatpush1.msra.mxu0 0.0
    %628 = vmatprep.subr.mxu0 0.0
    %629 = vmatpush1.msra.mxu0 0.0
    %630 = vmatprep.subr.mxu0 0.0
    %631 = vmatpush1.msra.mxu0 0.0
    %632 = vmatprep.subr.mxu0 0.0
    %633 = vmatpush1.msra.mxu0 %v158
    %634 = vmatprep.subr.mxu0 0.0
    %635 = vmatpush1.msra.mxu0 %v157
    %636 = vmatprep.subr.mxu0 0.0
    %637 = vmatpush1.msra.mxu0 %v156
    %638 = vmatprep.subr.mxu0 0.0
    %639 = vmatpush1.msra.mxu0 %v155
    %640 = vmatprep.subr.mxu0 0.0
    %641 = vmatpush2.msra.mxu0 0.0
    %642 = vmatprep.subr.mxu0 0.0
    %643 = vmatpush2.msra.mxu0 0.0
    %644 = vmatprep.subr.mxu0 0.0
    %645 = vmatpush2.msra.mxu0 0.0
    %646 = vmatprep.subr.mxu0 0.0
    %647 = vmatpush2.msra.mxu0 0.0
    %648 = vmatprep.subr.mxu0 0.0
    %649 = vmatpush2.msra.mxu0 0.0
    %650 = vmatprep.subr.mxu0 0.0
    %651 = vmatpush2.msra.mxu0 0.0
    %652 = vmatprep.subr.mxu0 0.0
    %653 = vmatpush2.msra.mxu0 0.0
    %654 = vmatprep.subr.mxu0 0.0
    %655 = vmatpush2.msra.mxu0 0.0
    %656 = vmatprep.subr.mxu0 0.0
    %657 = vmatpush2.msra.mxu0 0.0
    %658 = vmatprep.subr.mxu0 0.0
    %659 = vmatpush2.msra.mxu0 0.0
    %660 = vmatprep.subr.mxu0 0.0
    %661 = vmatpush2.msra.mxu0 0.0
    %662 = vmatprep.subr.mxu0 0.0
    %663 = vmatpush2.msra.mxu0 0.0
    %664 = vmatprep.subr.mxu0 0.0
    %665 = vmatpush2.msra.mxu0 0.0
    %666 = vmatprep.subr.mxu0 0.0
    %667 = vmatpush2.msra.mxu0 0.0
    %668 = vmatprep.subr.mxu0 0.0
    %669 = vmatpush2.msra.mxu0 0.0
    %670 = vmatprep.subr.mxu0 0.0
    %671 = vmatpush2.msra.mxu0 0.0
    %672 = vmatprep.mubr.f32.mxu0 0.0
    %673 = vmatmul.mubr.f32.gmra.mxu0 %v606
    %v674 = vpop.f32.mrf.mxu0
    %v675 = vadd.f32 %v255, %v674
    %v676 = vpop.f32.mrf.mxu0
    %677 = vdwg.mxu0
    %v678 = vadd.f32 %v600, %v675
    %v679 = vxor.u32 %v678, 2147483648
    %v680 = vmul.f32 %v679, 1.442695
    %v681 = vpow.pop %v680
    %v682 = vadd.f32 %v681, 1.0
    %v683 = vrcp.pop %v682
    %v684 = vmul.f32 1.0, %v683
    %686 = vrot.lane.b32.xlu0 %v675, 64
    %v687 = vpop.permute.xlu0 %686
    %v689 = vmul.f32 %v684, %v687
    %691 = vrot.lane.b32.xlu0 %v689, 64
    %v692 = vpop.permute.xlu0 %691
    %v694 = vadd.f32 %v600, %v692
    %v695 = vtanh.pop %v694
    %v696 = vsub.f32 1.0, %v684
    %698 = vrot.lane.b32.xlu0 %v695, 96
    %v699 = vpop.permute.xlu0 %698
    %v701 = vmul.f32 %v696, %v699
    %v702 = vmul.f32 %v684, %v529
    %v703 = vadd.f32 %v701, %v702
    %v704 = vrot.slane %v143, 6
    %v705 = vsel %vm177, %v704, 0
    %707 = vmatprep.subr.mxu0 0.0
    %708 = vmatpush1.msra.mxu0 0.0
    %709 = vmatprep.subr.mxu0 0.0
    %710 = vmatpush1.msra.mxu0 0.0
    %711 = vmatprep.subr.mxu0 0.0
    %712 = vmatpush1.msra.mxu0 0.0
    %713 = vmatprep.subr.mxu0 0.0
    %714 = vmatpush1.msra.mxu0 0.0
    %715 = vmatprep.subr.mxu0 0.0
    %716 = vmatpush1.msra.mxu0 0.0
    %717 = vmatprep.subr.mxu0 0.0
    %718 = vmatpush1.msra.mxu0 0.0
    %719 = vmatprep.subr.mxu0 0.0
    %720 = vmatpush1.msra.mxu0 0.0
    %721 = vmatprep.subr.mxu0 0.0
    %722 = vmatpush1.msra.mxu0 0.0
    %723 = vmatprep.subr.mxu0 0.0
    %724 = vmatpush1.msra.mxu0 0.0
    %725 = vmatprep.subr.mxu0 0.0
    %726 = vmatpush1.msra.mxu0 0.0
    %727 = vmatprep.subr.mxu0 0.0
    %728 = vmatpush1.msra.mxu0 0.0
    %729 = vmatprep.subr.mxu0 0.0
    %730 = vmatpush1.msra.mxu0 0.0
    %731 = vmatprep.subr.mxu0 0.0
    %732 = vmatpush1.msra.mxu0 %v154
    %733 = vmatprep.subr.mxu0 0.0
    %734 = vmatpush1.msra.mxu0 %v153
    %735 = vmatprep.subr.mxu0 0.0
    %736 = vmatpush1.msra.mxu0 %v152
    %737 = vmatprep.subr.mxu0 0.0
    %738 = vmatpush1.msra.mxu0 %v151
    %739 = vmatprep.subr.mxu0 0.0
    %740 = vmatpush2.msra.mxu0 0.0
    %741 = vmatprep.subr.mxu0 0.0
    %742 = vmatpush2.msra.mxu0 0.0
    %743 = vmatprep.subr.mxu0 0.0
    %744 = vmatpush2.msra.mxu0 0.0
    %745 = vmatprep.subr.mxu0 0.0
    %746 = vmatpush2.msra.mxu0 0.0
    %747 = vmatprep.subr.mxu0 0.0
    %748 = vmatpush2.msra.mxu0 0.0
    %749 = vmatprep.subr.mxu0 0.0
    %750 = vmatpush2.msra.mxu0 0.0
    %751 = vmatprep.subr.mxu0 0.0
    %752 = vmatpush2.msra.mxu0 0.0
    %753 = vmatprep.subr.mxu0 0.0
    %754 = vmatpush2.msra.mxu0 0.0
    %755 = vmatprep.subr.mxu0 0.0
    %756 = vmatpush2.msra.mxu0 0.0
    %757 = vmatprep.subr.mxu0 0.0
    %758 = vmatpush2.msra.mxu0 0.0
    %759 = vmatprep.subr.mxu0 0.0
    %760 = vmatpush2.msra.mxu0 0.0
    %761 = vmatprep.subr.mxu0 0.0
    %762 = vmatpush2.msra.mxu0 0.0
    %763 = vmatprep.subr.mxu0 0.0
    %764 = vmatpush2.msra.mxu0 0.0
    %765 = vmatprep.subr.mxu0 0.0
    %766 = vmatpush2.msra.mxu0 0.0
    %767 = vmatprep.subr.mxu0 0.0
    %768 = vmatpush2.msra.mxu0 0.0
    %769 = vmatprep.subr.mxu0 0.0
    %770 = vmatpush2.msra.mxu0 0.0
    %771 = vmatprep.mubr.f32.mxu0 0.0
    %772 = vmatmul.mubr.f32.gmra.mxu0 %v705
    %v773 = vpop.f32.mrf.mxu0
    %v774 = vadd.f32 %v175, %v773
    %v775 = vpop.f32.mrf.mxu0
    %776 = vdwg.mxu0
    %778 = vrot.lane.b32.xlu0 %v703, 96
    %v779 = vpop.permute.xlu0 %778
    %v780 = vsel %vm177, %v779, 0
    %782 = vmatprep.subr.mxu0 0.0
    %783 = vmatpush1.msra.mxu0 0.0
    %784 = vmatprep.subr.mxu0 0.0
    %785 = vmatpush1.msra.mxu0 0.0
    %786 = vmatprep.subr.mxu0 0.0
    %787 = vmatpush1.msra.mxu0 0.0
    %788 = vmatprep.subr.mxu0 0.0
    %789 = vmatpush1.msra.mxu0 0.0
    %790 = vmatprep.subr.mxu0 0.0
    %791 = vmatpush1.msra.mxu0 0.0
    %792 = vmatprep.subr.mxu0 0.0
    %793 = vmatpush1.msra.mxu0 0.0
    %794 = vmatprep.subr.mxu0 0.0
    %795 = vmatpush1.msra.mxu0 0.0
    %796 = vmatprep.subr.mxu0 0.0
    %797 = vmatpush1.msra.mxu0 0.0
    %798 = vmatprep.subr.mxu0 0.0
    %799 = vmatpush1.msra.mxu0 0.0
    %800 = vmatprep.subr.mxu0 0.0
    %801 = vmatpush1.msra.mxu0 0.0
    %802 = vmatprep.subr.mxu0 0.0
    %803 = vmatpush1.msra.mxu0 0.0
    %804 = vmatprep.subr.mxu0 0.0
    %805 = vmatpush1.msra.mxu0 0.0
    %806 = vmatprep.subr.mxu0 0.0
    %807 = vmatpush1.msra.mxu0 %v158
    %808 = vmatprep.subr.mxu0 0.0
    %809 = vmatpush1.msra.mxu0 %v157
    %810 = vmatprep.subr.mxu0 0.0
    %811 = vmatpush1.msra.mxu0 %v156
    %812 = vmatprep.subr.mxu0 0.0
    %813 = vmatpush1.msra.mxu0 %v155
    %814 = vmatprep.subr.mxu0 0.0
    %815 = vmatpush2.msra.mxu0 0.0
    %816 = vmatprep.subr.mxu0 0.0
    %817 = vmatpush2.msra.mxu0 0.0
    %818 = vmatprep.subr.mxu0 0.0
    %819 = vmatpush2.msra.mxu0 0.0
    %820 = vmatprep.subr.mxu0 0.0
    %821 = vmatpush2.msra.mxu0 0.0
    %822 = vmatprep.subr.mxu0 0.0
    %823 = vmatpush2.msra.mxu0 0.0
    %824 = vmatprep.subr.mxu0 0.0
    %825 = vmatpush2.msra.mxu0 0.0
    %826 = vmatprep.subr.mxu0 0.0
    %827 = vmatpush2.msra.mxu0 0.0
    %828 = vmatprep.subr.mxu0 0.0
    %829 = vmatpush2.msra.mxu0 0.0
    %830 = vmatprep.subr.mxu0 0.0
    %831 = vmatpush2.msra.mxu0 0.0
    %832 = vmatprep.subr.mxu0 0.0
    %833 = vmatpush2.msra.mxu0 0.0
    %834 = vmatprep.subr.mxu0 0.0
    %835 = vmatpush2.msra.mxu0 0.0
    %836 = vmatprep.subr.mxu0 0.0
    %837 = vmatpush2.msra.mxu0 0.0
    %838 = vmatprep.subr.mxu0 0.0
    %839 = vmatpush2.msra.mxu0 0.0
    %840 = vmatprep.subr.mxu0 0.0
    %841 = vmatpush2.msra.mxu0 0.0
    %842 = vmatprep.subr.mxu0 0.0
    %843 = vmatpush2.msra.mxu0 0.0
    %844 = vmatprep.subr.mxu0 0.0
    %845 = vmatpush2.msra.mxu0 0.0
    %846 = vmatprep.mubr.f32.mxu0 0.0
    %847 = vmatmul.mubr.f32.gmra.mxu0 %v780
    %v848 = vpop.f32.mrf.mxu0
    %v849 = vadd.f32 %v255, %v848
    %v850 = vpop.f32.mrf.mxu0
    %851 = vdwg.mxu0
    %v852 = vadd.f32 %v774, %v849
    %v853 = vxor.u32 %v852, 2147483648
    %v854 = vmul.f32 %v853, 1.442695
    %v855 = vpow.pop %v854
    %v856 = vadd.f32 %v855, 1.0
    %v857 = vrcp.pop %v856
    %v858 = vmul.f32 1.0, %v857
    %860 = vrot.lane.b32.xlu0 %v849, 64
    %v861 = vpop.permute.xlu0 %860
    %v863 = vmul.f32 %v858, %v861
    %865 = vrot.lane.b32.xlu0 %v863, 64
    %v866 = vpop.permute.xlu0 %865
    %v868 = vadd.f32 %v774, %v866
    %v869 = vtanh.pop %v868
    %v870 = vsub.f32 1.0, %v858
    %872 = vrot.lane.b32.xlu0 %v869, 96
    %v873 = vpop.permute.xlu0 %872
    %v875 = vmul.f32 %v870, %v873
    %v876 = vmul.f32 %v858, %v703
    %v877 = vadd.f32 %v875, %v876
    %v879 = vsel %vm177, %v148, 0
    %881 = vmatprep.subr.mxu0 0.0
    %882 = vmatpush1.msra.mxu0 0.0
    %883 = vmatprep.subr.mxu0 0.0
    %884 = vmatpush1.msra.mxu0 0.0
    %885 = vmatprep.subr.mxu0 0.0
    %886 = vmatpush1.msra.mxu0 0.0
    %887 = vmatprep.subr.mxu0 0.0
    %888 = vmatpush1.msra.mxu0 0.0
    %889 = vmatprep.subr.mxu0 0.0
    %890 = vmatpush1.msra.mxu0 0.0
    %891 = vmatprep.subr.mxu0 0.0
    %892 = vmatpush1.msra.mxu0 0.0
    %893 = vmatprep.subr.mxu0 0.0
    %894 = vmatpush1.msra.mxu0 0.0
    %895 = vmatprep.subr.mxu0 0.0
    %896 = vmatpush1.msra.mxu0 0.0
    %897 = vmatprep.subr.mxu0 0.0
    %898 = vmatpush1.msra.mxu0 0.0
    %899 = vmatprep.subr.mxu0 0.0
    %900 = vmatpush1.msra.mxu0 0.0
    %901 = vmatprep.subr.mxu0 0.0
    %902 = vmatpush1.msra.mxu0 0.0
    %903 = vmatprep.subr.mxu0 0.0
    %904 = vmatpush1.msra.mxu0 0.0
    %905 = vmatprep.subr.mxu0 0.0
    %906 = vmatpush1.msra.mxu0 %v154
    %907 = vmatprep.subr.mxu0 0.0
    %908 = vmatpush1.msra.mxu0 %v153
    %909 = vmatprep.subr.mxu0 0.0
    %910 = vmatpush1.msra.mxu0 %v152
    %911 = vmatprep.subr.mxu0 0.0
    %912 = vmatpush1.msra.mxu0 %v151
    %913 = vmatprep.subr.mxu0 0.0
    %914 = vmatpush2.msra.mxu0 0.0
    %915 = vmatprep.subr.mxu0 0.0
    %916 = vmatpush2.msra.mxu0 0.0
    %917 = vmatprep.subr.mxu0 0.0
    %918 = vmatpush2.msra.mxu0 0.0
    %919 = vmatprep.subr.mxu0 0.0
    %920 = vmatpush2.msra.mxu0 0.0
    %921 = vmatprep.subr.mxu0 0.0
    %922 = vmatpush2.msra.mxu0 0.0
    %923 = vmatprep.subr.mxu0 0.0
    %924 = vmatpush2.msra.mxu0 0.0
    %925 = vmatprep.subr.mxu0 0.0
    %926 = vmatpush2.msra.mxu0 0.0
    %927 = vmatprep.subr.mxu0 0.0
    %928 = vmatpush2.msra.mxu0 0.0
    %929 = vmatprep.subr.mxu0 0.0
    %930 = vmatpush2.msra.mxu0 0.0
    %931 = vmatprep.subr.mxu0 0.0
    %932 = vmatpush2.msra.mxu0 0.0
    %933 = vmatprep.subr.mxu0 0.0
    %934 = vmatpush2.msra.mxu0 0.0
    %935 = vmatprep.subr.mxu0 0.0
    %936 = vmatpush2.msra.mxu0 0.0
    %937 = vmatprep.subr.mxu0 0.0
    %938 = vmatpush2.msra.mxu0 0.0
    %939 = vmatprep.subr.mxu0 0.0
    %940 = vmatpush2.msra.mxu0 0.0
    %941 = vmatprep.subr.mxu0 0.0
    %942 = vmatpush2.msra.mxu0 0.0
    %943 = vmatprep.subr.mxu0 0.0
    %944 = vmatpush2.msra.mxu0 0.0
    %945 = vmatprep.mubr.f32.mxu0 0.0
    %946 = vmatmul.mubr.f32.gmra.mxu0 %v879
    %v947 = vpop.f32.mrf.mxu0
    %v948 = vadd.f32 %v175, %v947
    %v949 = vpop.f32.mrf.mxu0
    %950 = vdwg.mxu0
    %952 = vrot.lane.b32.xlu0 %v877, 96
    %v953 = vpop.permute.xlu0 %952
    %v954 = vsel %vm177, %v953, 0
    %956 = vmatprep.subr.mxu0 0.0
    %957 = vmatpush1.msra.mxu0 0.0
    %958 = vmatprep.subr.mxu0 0.0
    %959 = vmatpush1.msra.mxu0 0.0
    %960 = vmatprep.subr.mxu0 0.0
    %961 = vmatpush1.msra.mxu0 0.0
    %962 = vmatprep.subr.mxu0 0.0
    %963 = vmatpush1.msra.mxu0 0.0
    %964 = vmatprep.subr.mxu0 0.0
    %965 = vmatpush1.msra.mxu0 0.0
    %966 = vmatprep.subr.mxu0 0.0
    %967 = vmatpush1.msra.mxu0 0.0
    %968 = vmatprep.subr.mxu0 0.0
    %969 = vmatpush1.msra.mxu0 0.0
    %970 = vmatprep.subr.mxu0 0.0
    %971 = vmatpush1.msra.mxu0 0.0
    %972 = vmatprep.subr.mxu0 0.0
    %973 = vmatpush1.msra.mxu0 0.0
    %974 = vmatprep.subr.mxu0 0.0
    %975 = vmatpush1.msra.mxu0 0.0
    %976 = vmatprep.subr.mxu0 0.0
    %977 = vmatpush1.msra.mxu0 0.0
    %978 = vmatprep.subr.mxu0 0.0
    %979 = vmatpush1.msra.mxu0 0.0
    %980 = vmatprep.subr.mxu0 0.0
    %981 = vmatpush1.msra.mxu0 %v158
    %982 = vmatprep.subr.mxu0 0.0
    %983 = vmatpush1.msra.mxu0 %v157
    %984 = vmatprep.subr.mxu0 0.0
    %985 = vmatpush1.msra.mxu0 %v156
    %986 = vmatprep.subr.mxu0 0.0
    %987 = vmatpush1.msra.mxu0 %v155
    %988 = vmatprep.subr.mxu0 0.0
    %989 = vmatpush2.msra.mxu0 0.0
    %990 = vmatprep.subr.mxu0 0.0
    %991 = vmatpush2.msra.mxu0 0.0
    %992 = vmatprep.subr.mxu0 0.0
    %993 = vmatpush2.msra.mxu0 0.0
    %994 = vmatprep.subr.mxu0 0.0
    %995 = vmatpush2.msra.mxu0 0.0
    %996 = vmatprep.subr.mxu0 0.0
    %997 = vmatpush2.msra.mxu0 0.0
    %998 = vmatprep.subr.mxu0 0.0
    %999 = vmatpush2.msra.mxu0 0.0
    %1000 = vmatprep.subr.mxu0 0.0
    %1001 = vmatpush2.msra.mxu0 0.0
    %1002 = vmatprep.subr.mxu0 0.0
    %1003 = vmatpush2.msra.mxu0 0.0
    %1004 = vmatprep.subr.mxu0 0.0
    %1005 = vmatpush2.msra.mxu0 0.0
    %1006 = vmatprep.subr.mxu0 0.0
    %1007 = vmatpush2.msra.mxu0 0.0
    %1008 = vmatprep.subr.mxu0 0.0
    %1009 = vmatpush2.msra.mxu0 0.0
    %1010 = vmatprep.subr.mxu0 0.0
    %1011 = vmatpush2.msra.mxu0 0.0
    %1012 = vmatprep.subr.mxu0 0.0
    %1013 = vmatpush2.msra.mxu0 0.0
    %1014 = vmatprep.subr.mxu0 0.0
    %1015 = vmatpush2.msra.mxu0 0.0
    %1016 = vmatprep.subr.mxu0 0.0
    %1017 = vmatpush2.msra.mxu0 0.0
    %1018 = vmatprep.subr.mxu0 0.0
    %1019 = vmatpush2.msra.mxu0 0.0
    %1020 = vmatprep.mubr.f32.mxu0 0.0
    %1021 = vmatmul.mubr.f32.gmra.mxu0 %v954
    %v1022 = vpop.f32.mrf.mxu0
    %v1023 = vadd.f32 %v255, %v1022
    %v1024 = vpop.f32.mrf.mxu0
    %1025 = vdwg.mxu0
    %v1026 = vadd.f32 %v948, %v1023
    %v1027 = vxor.u32 %v1026, 2147483648
    %v1028 = vmul.f32 %v1027, 1.442695
    %v1029 = vpow.pop %v1028
    %v1030 = vadd.f32 %v1029, 1.0
    %v1031 = vrcp.pop %v1030
    %v1032 = vmul.f32 1.0, %v1031
    %1034 = vrot.lane.b32.xlu0 %v1023, 64
    %v1035 = vpop.permute.xlu0 %1034
    %v1037 = vmul.f32 %v1032, %v1035
    %1039 = vrot.lane.b32.xlu0 %v1037, 64
    %v1040 = vpop.permute.xlu0 %1039
    %v1042 = vadd.f32 %v948, %v1040
    %v1043 = vtanh.pop %v1042
    %v1044 = vsub.f32 1.0, %v1032
    %1046 = vrot.lane.b32.xlu0 %v1043, 96
    %v1047 = vpop.permute.xlu0 %1046
    %v1049 = vmul.f32 %v1044, %v1047
    %v1050 = vmul.f32 %v1032, %v877
    %v1051 = vadd.f32 %v1049, %v1050
    %v1052 = vrot.slane %v148, 2
    %v1053 = vsel %vm177, %v1052, 0
    %1055 = vmatprep.subr.mxu0 0.0
    %1056 = vmatpush1.msra.mxu0 0.0
    %1057 = vmatprep.subr.mxu0 0.0
    %1058 = vmatpush1.msra.mxu0 0.0
    %1059 = vmatprep.subr.mxu0 0.0
    %1060 = vmatpush1.msra.mxu0 0.0
    %1061 = vmatprep.subr.mxu0 0.0
    %1062 = vmatpush1.msra.mxu0 0.0
    %1063 = vmatprep.subr.mxu0 0.0
    %1064 = vmatpush1.msra.mxu0 0.0
    %1065 = vmatprep.subr.mxu0 0.0
    %1066 = vmatpush1.msra.mxu0 0.0
    %1067 = vmatprep.subr.mxu0 0.0
    %1068 = vmatpush1.msra.mxu0 0.0
    %1069 = vmatprep.subr.mxu0 0.0
    %1070 = vmatpush1.msra.mxu0 0.0
    %1071 = vmatprep.subr.mxu0 0.0
    %1072 = vmatpush1.msra.mxu0 0.0
    %1073 = vmatprep.subr.mxu0 0.0
    %1074 = vmatpush1.msra.mxu0 0.0
    %1075 = vmatprep.subr.mxu0 0.0
    %1076 = vmatpush1.msra.mxu0 0.0
    %1077 = vmatprep.subr.mxu0 0.0
    %1078 = vmatpush1.msra.mxu0 0.0
    %1079 = vmatprep.subr.mxu0 0.0
    %1080 = vmatpush1.msra.mxu0 %v154
    %1081 = vmatprep.subr.mxu0 0.0
    %1082 = vmatpush1.msra.mxu0 %v153
    %1083 = vmatprep.subr.mxu0 0.0
    %1084 = vmatpush1.msra.mxu0 %v152
    %1085 = vmatprep.subr.mxu0 0.0
    %1086 = vmatpush1.msra.mxu0 %v151
    %1087 = vmatprep.subr.mxu0 0.0
    %1088 = vmatpush2.msra.mxu0 0.0
    %1089 = vmatprep.subr.mxu0 0.0
    %1090 = vmatpush2.msra.mxu0 0.0
    %1091 = vmatprep.subr.mxu0 0.0
    %1092 = vmatpush2.msra.mxu0 0.0
    %1093 = vmatprep.subr.mxu0 0.0
    %1094 = vmatpush2.msra.mxu0 0.0
    %1095 = vmatprep.subr.mxu0 0.0
    %1096 = vmatpush2.msra.mxu0 0.0
    %1097 = vmatprep.subr.mxu0 0.0
    %1098 = vmatpush2.msra.mxu0 0.0
    %1099 = vmatprep.subr.mxu0 0.0
    %1100 = vmatpush2.msra.mxu0 0.0
    %1101 = vmatprep.subr.mxu0 0.0
    %1102 = vmatpush2.msra.mxu0 0.0
    %1103 = vmatprep.subr.mxu0 0.0
    %1104 = vmatpush2.msra.mxu0 0.0
    %1105 = vmatprep.subr.mxu0 0.0
    %1106 = vmatpush2.msra.mxu0 0.0
    %1107 = vmatprep.subr.mxu0 0.0
    %1108 = vmatpush2.msra.mxu0 0.0
    %1109 = vmatprep.subr.mxu0 0.0
    %1110 = vmatpush2.msra.mxu0 0.0
    %1111 = vmatprep.subr.mxu0 0.0
    %1112 = vmatpush2.msra.mxu0 0.0
    %1113 = vmatprep.subr.mxu0 0.0
    %1114 = vmatpush2.msra.mxu0 0.0
    %1115 = vmatprep.subr.mxu0 0.0
    %1116 = vmatpush2.msra.mxu0 0.0
    %1117 = vmatprep.subr.mxu0 0.0
    %1118 = vmatpush2.msra.mxu0 0.0
    %1119 = vmatprep.mubr.f32.mxu0 0.0
    %1120 = vmatmul.mubr.f32.gmra.mxu0 %v1053
    %v1121 = vpop.f32.mrf.mxu0
    %v1122 = vadd.f32 %v175, %v1121
    %v1123 = vpop.f32.mrf.mxu0
    %1124 = vdwg.mxu0
    %1126 = vrot.lane.b32.xlu0 %v1051, 96
    %v1127 = vpop.permute.xlu0 %1126
    %v1128 = vsel %vm177, %v1127, 0
    %1130 = vmatprep.subr.mxu0 0.0
    %1131 = vmatpush1.msra.mxu0 0.0
    %1132 = vmatprep.subr.mxu0 0.0
    %1133 = vmatpush1.msra.mxu0 0.0
    %1134 = vmatprep.subr.mxu0 0.0
    %1135 = vmatpush1.msra.mxu0 0.0
    %1136 = vmatprep.subr.mxu0 0.0
    %1137 = vmatpush1.msra.mxu0 0.0
    %1138 = vmatprep.subr.mxu0 0.0
    %1139 = vmatpush1.msra.mxu0 0.0
    %1140 = vmatprep.subr.mxu0 0.0
    %1141 = vmatpush1.msra.mxu0 0.0
    %1142 = vmatprep.subr.mxu0 0.0
    %1143 = vmatpush1.msra.mxu0 0.0
    %1144 = vmatprep.subr.mxu0 0.0
    %1145 = vmatpush1.msra.mxu0 0.0
    %1146 = vmatprep.subr.mxu0 0.0
    %1147 = vmatpush1.msra.mxu0 0.0
    %1148 = vmatprep.subr.mxu0 0.0
    %1149 = vmatpush1.msra.mxu0 0.0
    %1150 = vmatprep.subr.mxu0 0.0
    %1151 = vmatpush1.msra.mxu0 0.0
    %1152 = vmatprep.subr.mxu0 0.0
    %1153 = vmatpush1.msra.mxu0 0.0
    %1154 = vmatprep.subr.mxu0 0.0
    %1155 = vmatpush1.msra.mxu0 %v158
    %1156 = vmatprep.subr.mxu0 0.0
    %1157 = vmatpush1.msra.mxu0 %v157
    %1158 = vmatprep.subr.mxu0 0.0
    %1159 = vmatpush1.msra.mxu0 %v156
    %1160 = vmatprep.subr.mxu0 0.0
    %1161 = vmatpush1.msra.mxu0 %v155
    %1162 = vmatprep.subr.mxu0 0.0
    %1163 = vmatpush2.msra.mxu0 0.0
    %1164 = vmatprep.subr.mxu0 0.0
    %1165 = vmatpush2.msra.mxu0 0.0
    %1166 = vmatprep.subr.mxu0 0.0
    %1167 = vmatpush2.msra.mxu0 0.0
    %1168 = vmatprep.subr.mxu0 0.0
    %1169 = vmatpush2.msra.mxu0 0.0
    %1170 = vmatprep.subr.mxu0 0.0
    %1171 = vmatpush2.msra.mxu0 0.0
    %1172 = vmatprep.subr.mxu0 0.0
    %1173 = vmatpush2.msra.mxu0 0.0
    %1174 = vmatprep.subr.mxu0 0.0
    %1175 = vmatpush2.msra.mxu0 0.0
    %1176 = vmatprep.subr.mxu0 0.0
    %1177 = vmatpush2.msra.mxu0 0.0
    %1178 = vmatprep.subr.mxu0 0.0
    %1179 = vmatpush2.msra.mxu0 0.0
    %1180 = vmatprep.subr.mxu0 0.0
    %1181 = vmatpush2.msra.mxu0 0.0
    %1182 = vmatprep.subr.mxu0 0.0
    %1183 = vmatpush2.msra.mxu0 0.0
    %1184 = vmatprep.subr.mxu0 0.0
    %1185 = vmatpush2.msra.mxu0 0.0
    %1186 = vmatprep.subr.mxu0 0.0
    %1187 = vmatpush2.msra.mxu0 0.0
    %1188 = vmatprep.subr.mxu0 0.0
    %1189 = vmatpush2.msra.mxu0 0.0
    %1190 = vmatprep.subr.mxu0 0.0
    %1191 = vmatpush2.msra.mxu0 0.0
    %1192 = vmatprep.subr.mxu0 0.0
    %1193 = vmatpush2.msra.mxu0 0.0
    %1194 = vmatprep.mubr.f32.mxu0 0.0
    %1195 = vmatmul.mubr.f32.gmra.mxu0 %v1128
    %v1196 = vpop.f32.mrf.mxu0
    %v1197 = vadd.f32 %v255, %v1196
    %v1198 = vpop.f32.mrf.mxu0
    %1199 = vdwg.mxu0
    %v1200 = vadd.f32 %v1122, %v1197
    %v1201 = vxor.u32 %v1200, 2147483648
    %v1202 = vmul.f32 %v1201, 1.442695
    %v1203 = vpow.pop %v1202
    %v1204 = vadd.f32 %v1203, 1.0
    %v1205 = vrcp.pop %v1204
    %v1206 = vmul.f32 1.0, %v1205
    %1208 = vrot.lane.b32.xlu0 %v1197, 64
    %v1209 = vpop.permute.xlu0 %1208
    %v1211 = vmul.f32 %v1206, %v1209
    %1213 = vrot.lane.b32.xlu0 %v1211, 64
    %v1214 = vpop.permute.xlu0 %1213
    %v1216 = vadd.f32 %v1122, %v1214
    %v1217 = vtanh.pop %v1216
    %v1218 = vsub.f32 1.0, %v1206
    %1220 = vrot.lane.b32.xlu0 %v1217, 96
    %v1221 = vpop.permute.xlu0 %1220
    %v1223 = vmul.f32 %v1218, %v1221
    %v1224 = vmul.f32 %v1206, %v1051
    %v1225 = vadd.f32 %v1223, %v1224
    %v1226 = vrot.slane %v148, 4
    %v1227 = vsel %vm177, %v1226, 0
    %1229 = vmatprep.subr.mxu0 0.0
    %1230 = vmatpush1.msra.mxu0 0.0
    %1231 = vmatprep.subr.mxu0 0.0
    %1232 = vmatpush1.msra.mxu0 0.0
    %1233 = vmatprep.subr.mxu0 0.0
    %1234 = vmatpush1.msra.mxu0 0.0
    %1235 = vmatprep.subr.mxu0 0.0
    %1236 = vmatpush1.msra.mxu0 0.0
    %1237 = vmatprep.subr.mxu0 0.0
    %1238 = vmatpush1.msra.mxu0 0.0
    %1239 = vmatprep.subr.mxu0 0.0
    %1240 = vmatpush1.msra.mxu0 0.0
    %1241 = vmatprep.subr.mxu0 0.0
    %1242 = vmatpush1.msra.mxu0 0.0
    %1243 = vmatprep.subr.mxu0 0.0
    %1244 = vmatpush1.msra.mxu0 0.0
    %1245 = vmatprep.subr.mxu0 0.0
    %1246 = vmatpush1.msra.mxu0 0.0
    %1247 = vmatprep.subr.mxu0 0.0
    %1248 = vmatpush1.msra.mxu0 0.0
    %1249 = vmatprep.subr.mxu0 0.0
    %1250 = vmatpush1.msra.mxu0 0.0
    %1251 = vmatprep.subr.mxu0 0.0
    %1252 = vmatpush1.msra.mxu0 0.0
    %1253 = vmatprep.subr.mxu0 0.0
    %1254 = vmatpush1.msra.mxu0 %v154
    %1255 = vmatprep.subr.mxu0 0.0
    %1256 = vmatpush1.msra.mxu0 %v153
    %1257 = vmatprep.subr.mxu0 0.0
    %1258 = vmatpush1.msra.mxu0 %v152
    %1259 = vmatprep.subr.mxu0 0.0
    %1260 = vmatpush1.msra.mxu0 %v151
    %1261 = vmatprep.subr.mxu0 0.0
    %1262 = vmatpush2.msra.mxu0 0.0
    %1263 = vmatprep.subr.mxu0 0.0
    %1264 = vmatpush2.msra.mxu0 0.0
    %1265 = vmatprep.subr.mxu0 0.0
    %1266 = vmatpush2.msra.mxu0 0.0
    %1267 = vmatprep.subr.mxu0 0.0
    %1268 = vmatpush2.msra.mxu0 0.0
    %1269 = vmatprep.subr.mxu0 0.0
    %1270 = vmatpush2.msra.mxu0 0.0
    %1271 = vmatprep.subr.mxu0 0.0
    %1272 = vmatpush2.msra.mxu0 0.0
    %1273 = vmatprep.subr.mxu0 0.0
    %1274 = vmatpush2.msra.mxu0 0.0
    %1275 = vmatprep.subr.mxu0 0.0
    %1276 = vmatpush2.msra.mxu0 0.0
    %1277 = vmatprep.subr.mxu0 0.0
    %1278 = vmatpush2.msra.mxu0 0.0
    %1279 = vmatprep.subr.mxu0 0.0
    %1280 = vmatpush2.msra.mxu0 0.0
    %1281 = vmatprep.subr.mxu0 0.0
    %1282 = vmatpush2.msra.mxu0 0.0
    %1283 = vmatprep.subr.mxu0 0.0
    %1284 = vmatpush2.msra.mxu0 0.0
    %1285 = vmatprep.subr.mxu0 0.0
    %1286 = vmatpush2.msra.mxu0 0.0
    %1287 = vmatprep.subr.mxu0 0.0
    %1288 = vmatpush2.msra.mxu0 0.0
    %1289 = vmatprep.subr.mxu0 0.0
    %1290 = vmatpush2.msra.mxu0 0.0
    %1291 = vmatprep.subr.mxu0 0.0
    %1292 = vmatpush2.msra.mxu0 0.0
    %1293 = vmatprep.mubr.f32.mxu0 0.0
    %1294 = vmatmul.mubr.f32.gmra.mxu0 %v1227
    %v1295 = vpop.f32.mrf.mxu0
    %v1296 = vadd.f32 %v175, %v1295
    %v1297 = vpop.f32.mrf.mxu0
    %1298 = vdwg.mxu0
    %1300 = vrot.lane.b32.xlu0 %v1225, 96
    %v1301 = vpop.permute.xlu0 %1300
    %v1302 = vsel %vm177, %v1301, 0
    %1304 = vmatprep.subr.mxu0 0.0
    %1305 = vmatpush1.msra.mxu0 0.0
    %1306 = vmatprep.subr.mxu0 0.0
    %1307 = vmatpush1.msra.mxu0 0.0
    %1308 = vmatprep.subr.mxu0 0.0
    %1309 = vmatpush1.msra.mxu0 0.0
    %1310 = vmatprep.subr.mxu0 0.0
    %1311 = vmatpush1.msra.mxu0 0.0
    %1312 = vmatprep.subr.mxu0 0.0
    %1313 = vmatpush1.msra.mxu0 0.0
    %1314 = vmatprep.subr.mxu0 0.0
    %1315 = vmatpush1.msra.mxu0 0.0
    %1316 = vmatprep.subr.mxu0 0.0
    %1317 = vmatpush1.msra.mxu0 0.0
    %1318 = vmatprep.subr.mxu0 0.0
    %1319 = vmatpush1.msra.mxu0 0.0
    %1320 = vmatprep.subr.mxu0 0.0
    %1321 = vmatpush1.msra.mxu0 0.0
    %1322 = vmatprep.subr.mxu0 0.0
    %1323 = vmatpush1.msra.mxu0 0.0
    %1324 = vmatprep.subr.mxu0 0.0
    %1325 = vmatpush1.msra.mxu0 0.0
    %1326 = vmatprep.subr.mxu0 0.0
    %1327 = vmatpush1.msra.mxu0 0.0
    %1328 = vmatprep.subr.mxu0 0.0
    %1329 = vmatpush1.msra.mxu0 %v158
    %1330 = vmatprep.subr.mxu0 0.0
    %1331 = vmatpush1.msra.mxu0 %v157
    %1332 = vmatprep.subr.mxu0 0.0
    %1333 = vmatpush1.msra.mxu0 %v156
    %1334 = vmatprep.subr.mxu0 0.0
    %1335 = vmatpush1.msra.mxu0 %v155
    %1336 = vmatprep.subr.mxu0 0.0
    %1337 = vmatpush2.msra.mxu0 0.0
    %1338 = vmatprep.subr.mxu0 0.0
    %1339 = vmatpush2.msra.mxu0 0.0
    %1340 = vmatprep.subr.mxu0 0.0
    %1341 = vmatpush2.msra.mxu0 0.0
    %1342 = vmatprep.subr.mxu0 0.0
    %1343 = vmatpush2.msra.mxu0 0.0
    %1344 = vmatprep.subr.mxu0 0.0
    %1345 = vmatpush2.msra.mxu0 0.0
    %1346 = vmatprep.subr.mxu0 0.0
    %1347 = vmatpush2.msra.mxu0 0.0
    %1348 = vmatprep.subr.mxu0 0.0
    %1349 = vmatpush2.msra.mxu0 0.0
    %1350 = vmatprep.subr.mxu0 0.0
    %1351 = vmatpush2.msra.mxu0 0.0
    %1352 = vmatprep.subr.mxu0 0.0
    %1353 = vmatpush2.msra.mxu0 0.0
    %1354 = vmatprep.subr.mxu0 0.0
    %1355 = vmatpush2.msra.mxu0 0.0
    %1356 = vmatprep.subr.mxu0 0.0
    %1357 = vmatpush2.msra.mxu0 0.0
    %1358 = vmatprep.subr.mxu0 0.0
    %1359 = vmatpush2.msra.mxu0 0.0
    %1360 = vmatprep.subr.mxu0 0.0
    %1361 = vmatpush2.msra.mxu0 0.0
    %1362 = vmatprep.subr.mxu0 0.0
    %1363 = vmatpush2.msra.mxu0 0.0
    %1364 = vmatprep.subr.mxu0 0.0
    %1365 = vmatpush2.msra.mxu0 0.0
    %1366 = vmatprep.subr.mxu0 0.0
    %1367 = vmatpush2.msra.mxu0 0.0
    %1368 = vmatprep.mubr.f32.mxu0 0.0
    %1369 = vmatmul.mubr.f32.gmra.mxu0 %v1302
    %v1370 = vpop.f32.mrf.mxu0
    %v1371 = vadd.f32 %v255, %v1370
    %v1372 = vpop.f32.mrf.mxu0
    %1373 = vdwg.mxu0
    %v1374 = vadd.f32 %v1296, %v1371
    %v1375 = vxor.u32 %v1374, 2147483648
    %v1376 = vmul.f32 %v1375, 1.442695
    %v1377 = vpow.pop %v1376
    %v1378 = vadd.f32 %v1377, 1.0
    %v1379 = vrcp.pop %v1378
    %v1380 = vmul.f32 1.0, %v1379
    %1382 = vrot.lane.b32.xlu0 %v1371, 64
    %v1383 = vpop.permute.xlu0 %1382
    %v1385 = vmul.f32 %v1380, %v1383
    %1387 = vrot.lane.b32.xlu0 %v1385, 64
    %v1388 = vpop.permute.xlu0 %1387
    %v1390 = vadd.f32 %v1296, %v1388
    %v1391 = vtanh.pop %v1390
    %v1392 = vsub.f32 1.0, %v1380
    %1394 = vrot.lane.b32.xlu0 %v1391, 96
    %v1395 = vpop.permute.xlu0 %1394
    %v1397 = vmul.f32 %v1392, %v1395
    %v1398 = vmul.f32 %v1380, %v1225
    %v1399 = vadd.f32 %v1397, %v1398
    %v1400 = vrot.slane %v148, 6
    %v1401 = vsel %vm177, %v1400, 0
    %1403 = vmatprep.subr.mxu0 0.0
    %1404 = vmatpush1.msra.mxu0 0.0
    %1405 = vmatprep.subr.mxu0 0.0
    %1406 = vmatpush1.msra.mxu0 0.0
    %1407 = vmatprep.subr.mxu0 0.0
    %1408 = vmatpush1.msra.mxu0 0.0
    %1409 = vmatprep.subr.mxu0 0.0
    %1410 = vmatpush1.msra.mxu0 0.0
    %1411 = vmatprep.subr.mxu0 0.0
    %1412 = vmatpush1.msra.mxu0 0.0
    %1413 = vmatprep.subr.mxu0 0.0
    %1414 = vmatpush1.msra.mxu0 0.0
    %1415 = vmatprep.subr.mxu0 0.0
    %1416 = vmatpush1.msra.mxu0 0.0
    %1417 = vmatprep.subr.mxu0 0.0
    %1418 = vmatpush1.msra.mxu0 0.0
    %1419 = vmatprep.subr.mxu0 0.0
    %1420 = vmatpush1.msra.mxu0 0.0
    %1421 = vmatprep.subr.mxu0 0.0
    %1422 = vmatpush1.msra.mxu0 0.0
    %1423 = vmatprep.subr.mxu0 0.0
    %1424 = vmatpush1.msra.mxu0 0.0
    %1425 = vmatprep.subr.mxu0 0.0
    %1426 = vmatpush1.msra.mxu0 0.0
    %1427 = vmatprep.subr.mxu0 0.0
    %1428 = vmatpush1.msra.mxu0 %v154
    %1429 = vmatprep.subr.mxu0 0.0
    %1430 = vmatpush1.msra.mxu0 %v153
    %1431 = vmatprep.subr.mxu0 0.0
    %1432 = vmatpush1.msra.mxu0 %v152
    %1433 = vmatprep.subr.mxu0 0.0
    %1434 = vmatpush1.msra.mxu0 %v151
    %1435 = vmatprep.subr.mxu0 0.0
    %1436 = vmatpush2.msra.mxu0 0.0
    %1437 = vmatprep.subr.mxu0 0.0
    %1438 = vmatpush2.msra.mxu0 0.0
    %1439 = vmatprep.subr.mxu0 0.0
    %1440 = vmatpush2.msra.mxu0 0.0
    %1441 = vmatprep.subr.mxu0 0.0
    %1442 = vmatpush2.msra.mxu0 0.0
    %1443 = vmatprep.subr.mxu0 0.0
    %1444 = vmatpush2.msra.mxu0 0.0
    %1445 = vmatprep.subr.mxu0 0.0
    %1446 = vmatpush2.msra.mxu0 0.0
    %1447 = vmatprep.subr.mxu0 0.0
    %1448 = vmatpush2.msra.mxu0 0.0
    %1449 = vmatprep.subr.mxu0 0.0
    %1450 = vmatpush2.msra.mxu0 0.0
    %1451 = vmatprep.subr.mxu0 0.0
    %1452 = vmatpush2.msra.mxu0 0.0
    %1453 = vmatprep.subr.mxu0 0.0
    %1454 = vmatpush2.msra.mxu0 0.0
    %1455 = vmatprep.subr.mxu0 0.0
    %1456 = vmatpush2.msra.mxu0 0.0
    %1457 = vmatprep.subr.mxu0 0.0
    %1458 = vmatpush2.msra.mxu0 0.0
    %1459 = vmatprep.subr.mxu0 0.0
    %1460 = vmatpush2.msra.mxu0 0.0
    %1461 = vmatprep.subr.mxu0 0.0
    %1462 = vmatpush2.msra.mxu0 0.0
    %1463 = vmatprep.subr.mxu0 0.0
    %1464 = vmatpush2.msra.mxu0 0.0
    %1465 = vmatprep.subr.mxu0 0.0
    %1466 = vmatpush2.msra.mxu0 0.0
    %1467 = vmatprep.mubr.f32.mxu0 0.0
    %1468 = vmatmul.mubr.f32.gmra.mxu0 %v1401
    %v1469 = vpop.f32.mrf.mxu0
    %v1470 = vadd.f32 %v175, %v1469
    %v1471 = vpop.f32.mrf.mxu0
    %1472 = vdwg.mxu0
    %1474 = vrot.lane.b32.xlu0 %v1399, 96
    %v1475 = vpop.permute.xlu0 %1474
    %v1476 = vsel %vm177, %v1475, 0
    %1478 = vmatprep.subr.mxu0 0.0
    %1479 = vmatpush1.msra.mxu0 0.0
    %1480 = vmatprep.subr.mxu0 0.0
    %1481 = vmatpush1.msra.mxu0 0.0
    %1482 = vmatprep.subr.mxu0 0.0
    %1483 = vmatpush1.msra.mxu0 0.0
    %1484 = vmatprep.subr.mxu0 0.0
    %1485 = vmatpush1.msra.mxu0 0.0
    %1486 = vmatprep.subr.mxu0 0.0
    %1487 = vmatpush1.msra.mxu0 0.0
    %1488 = vmatprep.subr.mxu0 0.0
    %1489 = vmatpush1.msra.mxu0 0.0
    %1490 = vmatprep.subr.mxu0 0.0
    %1491 = vmatpush1.msra.mxu0 0.0
    %1492 = vmatprep.subr.mxu0 0.0
    %1493 = vmatpush1.msra.mxu0 0.0
    %1494 = vmatprep.subr.mxu0 0.0
    %1495 = vmatpush1.msra.mxu0 0.0
    %1496 = vmatprep.subr.mxu0 0.0
    %1497 = vmatpush1.msra.mxu0 0.0
    %1498 = vmatprep.subr.mxu0 0.0
    %1499 = vmatpush1.msra.mxu0 0.0
    %1500 = vmatprep.subr.mxu0 0.0
    %1501 = vmatpush1.msra.mxu0 0.0
    %1502 = vmatprep.subr.mxu0 0.0
    %1503 = vmatpush1.msra.mxu0 %v158
    %1504 = vmatprep.subr.mxu0 0.0
    %1505 = vmatpush1.msra.mxu0 %v157
    %1506 = vmatprep.subr.mxu0 0.0
    %1507 = vmatpush1.msra.mxu0 %v156
    %1508 = vmatprep.subr.mxu0 0.0
    %1509 = vmatpush1.msra.mxu0 %v155
    %1510 = vmatprep.subr.mxu0 0.0
    %1511 = vmatpush2.msra.mxu0 0.0
    %1512 = vmatprep.subr.mxu0 0.0
    %1513 = vmatpush2.msra.mxu0 0.0
    %1514 = vmatprep.subr.mxu0 0.0
    %1515 = vmatpush2.msra.mxu0 0.0
    %1516 = vmatprep.subr.mxu0 0.0
    %1517 = vmatpush2.msra.mxu0 0.0
    %1518 = vmatprep.subr.mxu0 0.0
    %1519 = vmatpush2.msra.mxu0 0.0
    %1520 = vmatprep.subr.mxu0 0.0
    %1521 = vmatpush2.msra.mxu0 0.0
    %1522 = vmatprep.subr.mxu0 0.0
    %1523 = vmatpush2.msra.mxu0 0.0
    %1524 = vmatprep.subr.mxu0 0.0
    %1525 = vmatpush2.msra.mxu0 0.0
    %1526 = vmatprep.subr.mxu0 0.0
    %1527 = vmatpush2.msra.mxu0 0.0
    %1528 = vmatprep.subr.mxu0 0.0
    %1529 = vmatpush2.msra.mxu0 0.0
    %1530 = vmatprep.subr.mxu0 0.0
    %1531 = vmatpush2.msra.mxu0 0.0
    %1532 = vmatprep.subr.mxu0 0.0
    %1533 = vmatpush2.msra.mxu0 0.0
    %1534 = vmatprep.subr.mxu0 0.0
    %1535 = vmatpush2.msra.mxu0 0.0
    %1536 = vmatprep.subr.mxu0 0.0
    %1537 = vmatpush2.msra.mxu0 0.0
    %1538 = vmatprep.subr.mxu0 0.0
    %1539 = vmatpush2.msra.mxu0 0.0
    %1540 = vmatprep.subr.mxu0 0.0
    %1541 = vmatpush2.msra.mxu0 0.0
    %1542 = vmatprep.mubr.f32.mxu0 0.0
    %1543 = vmatmul.mubr.f32.gmra.mxu0 %v1476
    %v1544 = vpop.f32.mrf.mxu0
    %v1545 = vadd.f32 %v255, %v1544
    %v1546 = vpop.f32.mrf.mxu0
    %1547 = vdwg.mxu0
    %v1548 = vadd.f32 %v1470, %v1545
    %v1549 = vxor.u32 %v1548, 2147483648
    %v1550 = vmul.f32 %v1549, 1.442695
    %v1551 = vpow.pop %v1550
    %v1552 = vadd.f32 %v1551, 1.0
    %v1553 = vrcp.pop %v1552
    %v1554 = vmul.f32 1.0, %v1553
    %1556 = vrot.lane.b32.xlu0 %v1545, 64
    %v1557 = vpop.permute.xlu0 %1556
    %v1559 = vmul.f32 %v1554, %v1557
    %1561 = vrot.lane.b32.xlu0 %v1559, 64
    %v1562 = vpop.permute.xlu0 %1561
    %v1564 = vadd.f32 %v1470, %v1562
    %v1565 = vtanh.pop %v1564
    %v1566 = vsub.f32 1.0, %v1554
    %1568 = vrot.lane.b32.xlu0 %v1565, 96
    %v1569 = vpop.permute.xlu0 %1568
    %v1571 = vmul.f32 %v1566, %v1569
    %v1572 = vmul.f32 %v1554, %v1399
    %v1573 = vadd.f32 %v1571, %v1572
    %v1575 = vlaneseq
    %v1576 = vshrl.u32 %v1575, 7
    %v1577 = vsub.s32 0, %v1576
    %v1578 = vrot.slane %v169, %v1577
    %1580 = vmatprep.subr.mxu0 0.0
    %1581 = vmatpush1.msra.mxu0 0.0
    %1582 = vmatprep.subr.mxu0 0.0
    %1583 = vmatpush1.msra.mxu0 0.0
    %1584 = vmatprep.subr.mxu0 0.0
    %1585 = vmatpush1.msra.mxu0 0.0
    %1586 = vmatprep.subr.mxu0 0.0
    %1587 = vmatpush1.msra.mxu0 0.0
    %1588 = vmatprep.subr.mxu0 0.0
    %1589 = vmatpush1.msra.mxu0 0.0
    %1590 = vmatprep.subr.mxu0 0.0
    %1591 = vmatpush1.msra.mxu0 0.0
    %1592 = vmatprep.subr.mxu0 0.0
    %1593 = vmatpush1.msra.mxu0 0.0
    %1594 = vmatprep.subr.mxu0 0.0
    %1595 = vmatpush1.msra.mxu0 0.0
    %1596 = vmatprep.subr.mxu0 0.0
    %1597 = vmatpush1.msra.mxu0 0.0
    %1598 = vmatprep.subr.mxu0 0.0
    %1599 = vmatpush1.msra.mxu0 0.0
    %1600 = vmatprep.subr.mxu0 0.0
    %1601 = vmatpush1.msra.mxu0 0.0
    %1602 = vmatprep.subr.mxu0 0.0
    %1603 = vmatpush1.msra.mxu0 0.0
    %1604 = vmatprep.subr.mxu0 0.0
    %1605 = vmatpush1.msra.mxu0 %v164
    %1606 = vmatprep.subr.mxu0 0.0
    %1607 = vmatpush1.msra.mxu0 %v163
    %1608 = vmatprep.subr.mxu0 0.0
    %1609 = vmatpush1.msra.mxu0 %v162
    %1610 = vmatprep.subr.mxu0 0.0
    %1611 = vmatpush1.msra.mxu0 %v161
    %1612 = vmatprep.subr.mxu0 0.0
    %1613 = vmatpush2.msra.mxu0 0.0
    %1614 = vmatprep.subr.mxu0 0.0
    %1615 = vmatpush2.msra.mxu0 0.0
    %1616 = vmatprep.subr.mxu0 0.0
    %1617 = vmatpush2.msra.mxu0 0.0
    %1618 = vmatprep.subr.mxu0 0.0
    %1619 = vmatpush2.msra.mxu0 0.0
    %1620 = vmatprep.subr.mxu0 0.0
    %1621 = vmatpush2.msra.mxu0 0.0
    %1622 = vmatprep.subr.mxu0 0.0
    %1623 = vmatpush2.msra.mxu0 0.0
    %1624 = vmatprep.subr.mxu0 0.0
    %1625 = vmatpush2.msra.mxu0 0.0
    %1626 = vmatprep.subr.mxu0 0.0
    %1627 = vmatpush2.msra.mxu0 0.0
    %1628 = vmatprep.subr.mxu0 0.0
    %1629 = vmatpush2.msra.mxu0 0.0
    %1630 = vmatprep.subr.mxu0 0.0
    %1631 = vmatpush2.msra.mxu0 0.0
    %1632 = vmatprep.subr.mxu0 0.0
    %1633 = vmatpush2.msra.mxu0 0.0
    %1634 = vmatprep.subr.mxu0 0.0
    %1635 = vmatpush2.msra.mxu0 0.0
    %1636 = vmatprep.subr.mxu0 0.0
    %1637 = vmatpush2.msra.mxu0 0.0
    %1638 = vmatprep.subr.mxu0 0.0
    %1639 = vmatpush2.msra.mxu0 0.0
    %1640 = vmatprep.subr.mxu0 0.0
    %1641 = vmatpush2.msra.mxu0 0.0
    %1642 = vmatprep.subr.mxu0 0.0
    %1643 = vmatpush2.msra.mxu0 0.0
    %1644 = vmatprep.mubr.f32.mxu0 0.0
    %1645 = vmatmul.mubr.f32.gmra.mxu0 %v1401
    %v1646 = vpop.f32.mrf.mxu0
    %v1647 = vadd.f32 %v1578, %v1646
    %v1648 = vpop.f32.mrf.mxu0
    %1649 = vdwg.mxu0
    %v1651 = vlaneseq
    %v1652 = vshrl.u32 %v1651, 7
    %v1653 = vsub.s32 0, %v1652
    %v1654 = vrot.slane %v170, %v1653
    %1656 = vmatprep.subr.mxu0 0.0
    %1657 = vmatpush1.msra.mxu0 0.0
    %1658 = vmatprep.subr.mxu0 0.0
    %1659 = vmatpush1.msra.mxu0 0.0
    %1660 = vmatprep.subr.mxu0 0.0
    %1661 = vmatpush1.msra.mxu0 0.0
    %1662 = vmatprep.subr.mxu0 0.0
    %1663 = vmatpush1.msra.mxu0 0.0
    %1664 = vmatprep.subr.mxu0 0.0
    %1665 = vmatpush1.msra.mxu0 0.0
    %1666 = vmatprep.subr.mxu0 0.0
    %1667 = vmatpush1.msra.mxu0 0.0
    %1668 = vmatprep.subr.mxu0 0.0
    %1669 = vmatpush1.msra.mxu0 0.0
    %1670 = vmatprep.subr.mxu0 0.0
    %1671 = vmatpush1.msra.mxu0 0.0
    %1672 = vmatprep.subr.mxu0 0.0
    %1673 = vmatpush1.msra.mxu0 0.0
    %1674 = vmatprep.subr.mxu0 0.0
    %1675 = vmatpush1.msra.mxu0 0.0
    %1676 = vmatprep.subr.mxu0 0.0
    %1677 = vmatpush1.msra.mxu0 0.0
    %1678 = vmatprep.subr.mxu0 0.0
    %1679 = vmatpush1.msra.mxu0 0.0
    %1680 = vmatprep.subr.mxu0 0.0
    %1681 = vmatpush1.msra.mxu0 %v168
    %1682 = vmatprep.subr.mxu0 0.0
    %1683 = vmatpush1.msra.mxu0 %v167
    %1684 = vmatprep.subr.mxu0 0.0
    %1685 = vmatpush1.msra.mxu0 %v166
    %1686 = vmatprep.subr.mxu0 0.0
    %1687 = vmatpush1.msra.mxu0 %v165
    %1688 = vmatprep.subr.mxu0 0.0
    %1689 = vmatpush2.msra.mxu0 0.0
    %1690 = vmatprep.subr.mxu0 0.0
    %1691 = vmatpush2.msra.mxu0 0.0
    %1692 = vmatprep.subr.mxu0 0.0
    %1693 = vmatpush2.msra.mxu0 0.0
    %1694 = vmatprep.subr.mxu0 0.0
    %1695 = vmatpush2.msra.mxu0 0.0
    %1696 = vmatprep.subr.mxu0 0.0
    %1697 = vmatpush2.msra.mxu0 0.0
    %1698 = vmatprep.subr.mxu0 0.0
    %1699 = vmatpush2.msra.mxu0 0.0
    %1700 = vmatprep.subr.mxu0 0.0
    %1701 = vmatpush2.msra.mxu0 0.0
    %1702 = vmatprep.subr.mxu0 0.0
    %1703 = vmatpush2.msra.mxu0 0.0
    %1704 = vmatprep.subr.mxu0 0.0
    %1705 = vmatpush2.msra.mxu0 0.0
    %1706 = vmatprep.subr.mxu0 0.0
    %1707 = vmatpush2.msra.mxu0 0.0
    %1708 = vmatprep.subr.mxu0 0.0
    %1709 = vmatpush2.msra.mxu0 0.0
    %1710 = vmatprep.subr.mxu0 0.0
    %1711 = vmatpush2.msra.mxu0 0.0
    %1712 = vmatprep.subr.mxu0 0.0
    %1713 = vmatpush2.msra.mxu0 0.0
    %1714 = vmatprep.subr.mxu0 0.0
    %1715 = vmatpush2.msra.mxu0 0.0
    %1716 = vmatprep.subr.mxu0 0.0
    %1717 = vmatpush2.msra.mxu0 0.0
    %1718 = vmatprep.subr.mxu0 0.0
    %1719 = vmatpush2.msra.mxu0 0.0
    %1720 = vmatprep.mubr.f32.mxu0 0.0
    %1721 = vmatmul.mubr.f32.gmra.mxu0 %v258
    %v1722 = vpop.f32.mrf.mxu0
    %v1723 = vadd.f32 %v1654, %v1722
    %v1724 = vpop.f32.mrf.mxu0
    %1725 = vdwg.mxu0
    %v1726 = vadd.f32 %v1647, %v1723
    %v1727 = vxor.u32 %v1726, 2147483648
    %v1728 = vmul.f32 %v1727, 1.442695
    %v1729 = vpow.pop %v1728
    %v1730 = vadd.f32 %v1729, 1.0
    %v1731 = vrcp.pop %v1730
    %v1732 = vmul.f32 1.0, %v1731
    %1734 = vrot.lane.b32.xlu0 %v1723, 64
    %v1735 = vpop.permute.xlu0 %1734
    %v1737 = vmul.f32 %v1732, %v1735
    %1739 = vrot.lane.b32.xlu0 %v1737, 64
    %v1740 = vpop.permute.xlu0 %1739
    %v1742 = vadd.f32 %v1647, %v1740
    %v1743 = vtanh.pop %v1742
    %v1744 = vsub.f32 1.0, %v1732
    %1746 = vrot.lane.b32.xlu0 %v1743, 96
    %v1747 = vpop.permute.xlu0 %1746
    %v1749 = vmul.f32 %v1744, %v1747
    %v1750 = vmul.f32 %v1732, 0.0
    %v1751 = vadd.f32 %v1749, %v1750
    %1752 = vmatprep.subr.mxu0 0.0
    %1753 = vmatpush1.msra.mxu0 0.0
    %1754 = vmatprep.subr.mxu0 0.0
    %1755 = vmatpush1.msra.mxu0 0.0
    %1756 = vmatprep.subr.mxu0 0.0
    %1757 = vmatpush1.msra.mxu0 0.0
    %1758 = vmatprep.subr.mxu0 0.0
    %1759 = vmatpush1.msra.mxu0 0.0
    %1760 = vmatprep.subr.mxu0 0.0
    %1761 = vmatpush1.msra.mxu0 0.0
    %1762 = vmatprep.subr.mxu0 0.0
    %1763 = vmatpush1.msra.mxu0 0.0
    %1764 = vmatprep.subr.mxu0 0.0
    %1765 = vmatpush1.msra.mxu0 0.0
    %1766 = vmatprep.subr.mxu0 0.0
    %1767 = vmatpush1.msra.mxu0 0.0
    %1768 = vmatprep.subr.mxu0 0.0
    %1769 = vmatpush1.msra.mxu0 0.0
    %1770 = vmatprep.subr.mxu0 0.0
    %1771 = vmatpush1.msra.mxu0 0.0
    %1772 = vmatprep.subr.mxu0 0.0
    %1773 = vmatpush1.msra.mxu0 0.0
    %1774 = vmatprep.subr.mxu0 0.0
    %1775 = vmatpush1.msra.mxu0 0.0
    %1776 = vmatprep.subr.mxu0 0.0
    %1777 = vmatpush1.msra.mxu0 %v164
    %1778 = vmatprep.subr.mxu0 0.0
    %1779 = vmatpush1.msra.mxu0 %v163
    %1780 = vmatprep.subr.mxu0 0.0
    %1781 = vmatpush1.msra.mxu0 %v162
    %1782 = vmatprep.subr.mxu0 0.0
    %1783 = vmatpush1.msra.mxu0 %v161
    %1784 = vmatprep.subr.mxu0 0.0
    %1785 = vmatpush2.msra.mxu0 0.0
    %1786 = vmatprep.subr.mxu0 0.0
    %1787 = vmatpush2.msra.mxu0 0.0
    %1788 = vmatprep.subr.mxu0 0.0
    %1789 = vmatpush2.msra.mxu0 0.0
    %1790 = vmatprep.subr.mxu0 0.0
    %1791 = vmatpush2.msra.mxu0 0.0
    %1792 = vmatprep.subr.mxu0 0.0
    %1793 = vmatpush2.msra.mxu0 0.0
    %1794 = vmatprep.subr.mxu0 0.0
    %1795 = vmatpush2.msra.mxu0 0.0
    %1796 = vmatprep.subr.mxu0 0.0
    %1797 = vmatpush2.msra.mxu0 0.0
    %1798 = vmatprep.subr.mxu0 0.0
    %1799 = vmatpush2.msra.mxu0 0.0
    %1800 = vmatprep.subr.mxu0 0.0
    %1801 = vmatpush2.msra.mxu0 0.0
    %1802 = vmatprep.subr.mxu0 0.0
    %1803 = vmatpush2.msra.mxu0 0.0
    %1804 = vmatprep.subr.mxu0 0.0
    %1805 = vmatpush2.msra.mxu0 0.0
    %1806 = vmatprep.subr.mxu0 0.0
    %1807 = vmatpush2.msra.mxu0 0.0
    %1808 = vmatprep.subr.mxu0 0.0
    %1809 = vmatpush2.msra.mxu0 0.0
    %1810 = vmatprep.subr.mxu0 0.0
    %1811 = vmatpush2.msra.mxu0 0.0
    %1812 = vmatprep.subr.mxu0 0.0
    %1813 = vmatpush2.msra.mxu0 0.0
    %1814 = vmatprep.subr.mxu0 0.0
    %1815 = vmatpush2.msra.mxu0 0.0
    %1816 = vmatprep.mubr.f32.mxu0 0.0
    %1817 = vmatmul.mubr.f32.gmra.mxu0 %v1227
    %v1818 = vpop.f32.mrf.mxu0
    %v1819 = vadd.f32 %v1578, %v1818
    %v1820 = vpop.f32.mrf.mxu0
    %1821 = vdwg.mxu0
    %1823 = vrot.lane.b32.xlu0 %v1751, 96
    %v1824 = vpop.permute.xlu0 %1823
    %v1825 = vsel %vm177, %v1824, 0
    %1827 = vmatprep.subr.mxu0 0.0
    %1828 = vmatpush1.msra.mxu0 0.0
    %1829 = vmatprep.subr.mxu0 0.0
    %1830 = vmatpush1.msra.mxu0 0.0
    %1831 = vmatprep.subr.mxu0 0.0
    %1832 = vmatpush1.msra.mxu0 0.0
    %1833 = vmatprep.subr.mxu0 0.0
    %1834 = vmatpush1.msra.mxu0 0.0
    %1835 = vmatprep.subr.mxu0 0.0
    %1836 = vmatpush1.msra.mxu0 0.0
    %1837 = vmatprep.subr.mxu0 0.0
    %1838 = vmatpush1.msra.mxu0 0.0
    %1839 = vmatprep.subr.mxu0 0.0
    %1840 = vmatpush1.msra.mxu0 0.0
    %1841 = vmatprep.subr.mxu0 0.0
    %1842 = vmatpush1.msra.mxu0 0.0
    %1843 = vmatprep.subr.mxu0 0.0
    %1844 = vmatpush1.msra.mxu0 0.0
    %1845 = vmatprep.subr.mxu0 0.0
    %1846 = vmatpush1.msra.mxu0 0.0
    %1847 = vmatprep.subr.mxu0 0.0
    %1848 = vmatpush1.msra.mxu0 0.0
    %1849 = vmatprep.subr.mxu0 0.0
    %1850 = vmatpush1.msra.mxu0 0.0
    %1851 = vmatprep.subr.mxu0 0.0
    %1852 = vmatpush1.msra.mxu0 %v168
    %1853 = vmatprep.subr.mxu0 0.0
    %1854 = vmatpush1.msra.mxu0 %v167
    %1855 = vmatprep.subr.mxu0 0.0
    %1856 = vmatpush1.msra.mxu0 %v166
    %1857 = vmatprep.subr.mxu0 0.0
    %1858 = vmatpush1.msra.mxu0 %v165
    %1859 = vmatprep.subr.mxu0 0.0
    %1860 = vmatpush2.msra.mxu0 0.0
    %1861 = vmatprep.subr.mxu0 0.0
    %1862 = vmatpush2.msra.mxu0 0.0
    %1863 = vmatprep.subr.mxu0 0.0
    %1864 = vmatpush2.msra.mxu0 0.0
    %1865 = vmatprep.subr.mxu0 0.0
    %1866 = vmatpush2.msra.mxu0 0.0
    %1867 = vmatprep.subr.mxu0 0.0
    %1868 = vmatpush2.msra.mxu0 0.0
    %1869 = vmatprep.subr.mxu0 0.0
    %1870 = vmatpush2.msra.mxu0 0.0
    %1871 = vmatprep.subr.mxu0 0.0
    %1872 = vmatpush2.msra.mxu0 0.0
    %1873 = vmatprep.subr.mxu0 0.0
    %1874 = vmatpush2.msra.mxu0 0.0
    %1875 = vmatprep.subr.mxu0 0.0
    %1876 = vmatpush2.msra.mxu0 0.0
    %1877 = vmatprep.subr.mxu0 0.0
    %1878 = vmatpush2.msra.mxu0 0.0
    %1879 = vmatprep.subr.mxu0 0.0
    %1880 = vmatpush2.msra.mxu0 0.0
    %1881 = vmatprep.subr.mxu0 0.0
    %1882 = vmatpush2.msra.mxu0 0.0
    %1883 = vmatprep.subr.mxu0 0.0
    %1884 = vmatpush2.msra.mxu0 0.0
    %1885 = vmatprep.subr.mxu0 0.0
    %1886 = vmatpush2.msra.mxu0 0.0
    %1887 = vmatprep.subr.mxu0 0.0
    %1888 = vmatpush2.msra.mxu0 0.0
    %1889 = vmatprep.subr.mxu0 0.0
    %1890 = vmatpush2.msra.mxu0 0.0
    %1891 = vmatprep.mubr.f32.mxu0 0.0
    %1892 = vmatmul.mubr.f32.gmra.mxu0 %v1825
    %v1893 = vpop.f32.mrf.mxu0
    %v1894 = vadd.f32 %v1654, %v1893
    %v1895 = vpop.f32.mrf.mxu0
    %1896 = vdwg.mxu0
    %v1897 = vadd.f32 %v1819, %v1894
    %v1898 = vxor.u32 %v1897, 2147483648
    %v1899 = vmul.f32 %v1898, 1.442695
    %v1900 = vpow.pop %v1899
    %v1901 = vadd.f32 %v1900, 1.0
    %v1902 = vrcp.pop %v1901
    %v1903 = vmul.f32 1.0, %v1902
    %1905 = vrot.lane.b32.xlu0 %v1894, 64
    %v1906 = vpop.permute.xlu0 %1905
    %v1908 = vmul.f32 %v1903, %v1906
    %1910 = vrot.lane.b32.xlu0 %v1908, 64
    %v1911 = vpop.permute.xlu0 %1910
    %v1913 = vadd.f32 %v1819, %v1911
    %v1914 = vtanh.pop %v1913
    %v1915 = vsub.f32 1.0, %v1903
    %1917 = vrot.lane.b32.xlu0 %v1914, 96
    %v1918 = vpop.permute.xlu0 %1917
    %v1920 = vmul.f32 %v1915, %v1918
    %v1921 = vmul.f32 %v1903, %v1751
    %v1922 = vadd.f32 %v1920, %v1921
    %1923 = vmatprep.subr.mxu0 0.0
    %1924 = vmatpush1.msra.mxu0 0.0
    %1925 = vmatprep.subr.mxu0 0.0
    %1926 = vmatpush1.msra.mxu0 0.0
    %1927 = vmatprep.subr.mxu0 0.0
    %1928 = vmatpush1.msra.mxu0 0.0
    %1929 = vmatprep.subr.mxu0 0.0
    %1930 = vmatpush1.msra.mxu0 0.0
    %1931 = vmatprep.subr.mxu0 0.0
    %1932 = vmatpush1.msra.mxu0 0.0
    %1933 = vmatprep.subr.mxu0 0.0
    %1934 = vmatpush1.msra.mxu0 0.0
    %1935 = vmatprep.subr.mxu0 0.0
    %1936 = vmatpush1.msra.mxu0 0.0
    %1937 = vmatprep.subr.mxu0 0.0
    %1938 = vmatpush1.msra.mxu0 0.0
    %1939 = vmatprep.subr.mxu0 0.0
    %1940 = vmatpush1.msra.mxu0 0.0
    %1941 = vmatprep.subr.mxu0 0.0
    %1942 = vmatpush1.msra.mxu0 0.0
    %1943 = vmatprep.subr.mxu0 0.0
    %1944 = vmatpush1.msra.mxu0 0.0
    %1945 = vmatprep.subr.mxu0 0.0
    %1946 = vmatpush1.msra.mxu0 0.0
    %1947 = vmatprep.subr.mxu0 0.0
    %1948 = vmatpush1.msra.mxu0 %v164
    %1949 = vmatprep.subr.mxu0 0.0
    %1950 = vmatpush1.msra.mxu0 %v163
    %1951 = vmatprep.subr.mxu0 0.0
    %1952 = vmatpush1.msra.mxu0 %v162
    %1953 = vmatprep.subr.mxu0 0.0
    %1954 = vmatpush1.msra.mxu0 %v161
    %1955 = vmatprep.subr.mxu0 0.0
    %1956 = vmatpush2.msra.mxu0 0.0
    %1957 = vmatprep.subr.mxu0 0.0
    %1958 = vmatpush2.msra.mxu0 0.0
    %1959 = vmatprep.subr.mxu0 0.0
    %1960 = vmatpush2.msra.mxu0 0.0
    %1961 = vmatprep.subr.mxu0 0.0
    %1962 = vmatpush2.msra.mxu0 0.0
    %1963 = vmatprep.subr.mxu0 0.0
    %1964 = vmatpush2.msra.mxu0 0.0
    %1965 = vmatprep.subr.mxu0 0.0
    %1966 = vmatpush2.msra.mxu0 0.0
    %1967 = vmatprep.subr.mxu0 0.0
    %1968 = vmatpush2.msra.mxu0 0.0
    %1969 = vmatprep.subr.mxu0 0.0
    %1970 = vmatpush2.msra.mxu0 0.0
    %1971 = vmatprep.subr.mxu0 0.0
    %1972 = vmatpush2.msra.mxu0 0.0
    %1973 = vmatprep.subr.mxu0 0.0
    %1974 = vmatpush2.msra.mxu0 0.0
    %1975 = vmatprep.subr.mxu0 0.0
    %1976 = vmatpush2.msra.mxu0 0.0
    %1977 = vmatprep.subr.mxu0 0.0
    %1978 = vmatpush2.msra.mxu0 0.0
    %1979 = vmatprep.subr.mxu0 0.0
    %1980 = vmatpush2.msra.mxu0 0.0
    %1981 = vmatprep.subr.mxu0 0.0
    %1982 = vmatpush2.msra.mxu0 0.0
    %1983 = vmatprep.subr.mxu0 0.0
    %1984 = vmatpush2.msra.mxu0 0.0
    %1985 = vmatprep.subr.mxu0 0.0
    %1986 = vmatpush2.msra.mxu0 0.0
    %1987 = vmatprep.mubr.f32.mxu0 0.0
    %1988 = vmatmul.mubr.f32.gmra.mxu0 %v1053
    %v1989 = vpop.f32.mrf.mxu0
    %v1990 = vadd.f32 %v1578, %v1989
    %v1991 = vpop.f32.mrf.mxu0
    %1992 = vdwg.mxu0
    %1994 = vrot.lane.b32.xlu0 %v1922, 96
    %v1995 = vpop.permute.xlu0 %1994
    %v1996 = vsel %vm177, %v1995, 0
    %1998 = vmatprep.subr.mxu0 0.0
    %1999 = vmatpush1.msra.mxu0 0.0
    %2000 = vmatprep.subr.mxu0 0.0
    %2001 = vmatpush1.msra.mxu0 0.0
    %2002 = vmatprep.subr.mxu0 0.0
    %2003 = vmatpush1.msra.mxu0 0.0
    %2004 = vmatprep.subr.mxu0 0.0
    %2005 = vmatpush1.msra.mxu0 0.0
    %2006 = vmatprep.subr.mxu0 0.0
    %2007 = vmatpush1.msra.mxu0 0.0
    %2008 = vmatprep.subr.mxu0 0.0
    %2009 = vmatpush1.msra.mxu0 0.0
    %2010 = vmatprep.subr.mxu0 0.0
    %2011 = vmatpush1.msra.mxu0 0.0
    %2012 = vmatprep.subr.mxu0 0.0
    %2013 = vmatpush1.msra.mxu0 0.0
    %2014 = vmatprep.subr.mxu0 0.0
    %2015 = vmatpush1.msra.mxu0 0.0
    %2016 = vmatprep.subr.mxu0 0.0
    %2017 = vmatpush1.msra.mxu0 0.0
    %2018 = vmatprep.subr.mxu0 0.0
    %2019 = vmatpush1.msra.mxu0 0.0
    %2020 = vmatprep.subr.mxu0 0.0
    %2021 = vmatpush1.msra.mxu0 0.0
    %2022 = vmatprep.subr.mxu0 0.0
    %2023 = vmatpush1.msra.mxu0 %v168
    %2024 = vmatprep.subr.mxu0 0.0
    %2025 = vmatpush1.msra.mxu0 %v167
    %2026 = vmatprep.subr.mxu0 0.0
    %2027 = vmatpush1.msra.mxu0 %v166
    %2028 = vmatprep.subr.mxu0 0.0
    %2029 = vmatpush1.msra.mxu0 %v165
    %2030 = vmatprep.subr.mxu0 0.0
    %2031 = vmatpush2.msra.mxu0 0.0
    %2032 = vmatprep.subr.mxu0 0.0
    %2033 = vmatpush2.msra.mxu0 0.0
    %2034 = vmatprep.subr.mxu0 0.0
    %2035 = vmatpush2.msra.mxu0 0.0
    %2036 = vmatprep.subr.mxu0 0.0
    %2037 = vmatpush2.msra.mxu0 0.0
    %2038 = vmatprep.subr.mxu0 0.0
    %2039 = vmatpush2.msra.mxu0 0.0
    %2040 = vmatprep.subr.mxu0 0.0
    %2041 = vmatpush2.msra.mxu0 0.0
    %2042 = vmatprep.subr.mxu0 0.0
    %2043 = vmatpush2.msra.mxu0 0.0
    %2044 = vmatprep.subr.mxu0 0.0
    %2045 = vmatpush2.msra.mxu0 0.0
    %2046 = vmatprep.subr.mxu0 0.0
    %2047 = vmatpush2.msra.mxu0 0.0
    %2048 = vmatprep.subr.mxu0 0.0
    %2049 = vmatpush2.msra.mxu0 0.0
    %2050 = vmatprep.subr.mxu0 0.0
    %2051 = vmatpush2.msra.mxu0 0.0
    %2052 = vmatprep.subr.mxu0 0.0
    %2053 = vmatpush2.msra.mxu0 0.0
    %2054 = vmatprep.subr.mxu0 0.0
    %2055 = vmatpush2.msra.mxu0 0.0
    %2056 = vmatprep.subr.mxu0 0.0
    %2057 = vmatpush2.msra.mxu0 0.0
    %2058 = vmatprep.subr.mxu0 0.0
    %2059 = vmatpush2.msra.mxu0 0.0
    %2060 = vmatprep.subr.mxu0 0.0
    %2061 = vmatpush2.msra.mxu0 0.0
    %2062 = vmatprep.mubr.f32.mxu0 0.0
    %2063 = vmatmul.mubr.f32.gmra.mxu0 %v1996
    %v2064 = vpop.f32.mrf.mxu0
    %v2065 = vadd.f32 %v1654, %v2064
    %v2066 = vpop.f32.mrf.mxu0
    %2067 = vdwg.mxu0
    %v2068 = vadd.f32 %v1990, %v2065
    %v2069 = vxor.u32 %v2068, 2147483648
    %v2070 = vmul.f32 %v2069, 1.442695
    %v2071 = vpow.pop %v2070
    %v2072 = vadd.f32 %v2071, 1.0
    %v2073 = vrcp.pop %v2072
    %v2074 = vmul.f32 1.0, %v2073
    %2076 = vrot.lane.b32.xlu0 %v2065, 64
    %v2077 = vpop.permute.xlu0 %2076
    %v2079 = vmul.f32 %v2074, %v2077
    %2081 = vrot.lane.b32.xlu0 %v2079, 64
    %v2082 = vpop.permute.xlu0 %2081
    %v2084 = vadd.f32 %v1990, %v2082
    %v2085 = vtanh.pop %v2084
    %v2086 = vsub.f32 1.0, %v2074
    %2088 = vrot.lane.b32.xlu0 %v2085, 96
    %v2089 = vpop.permute.xlu0 %2088
    %v2091 = vmul.f32 %v2086, %v2089
    %v2092 = vmul.f32 %v2074, %v1922
    %v2093 = vadd.f32 %v2091, %v2092
    %2094 = vmatprep.subr.mxu0 0.0
    %2095 = vmatpush1.msra.mxu0 0.0
    %2096 = vmatprep.subr.mxu0 0.0
    %2097 = vmatpush1.msra.mxu0 0.0
    %2098 = vmatprep.subr.mxu0 0.0
    %2099 = vmatpush1.msra.mxu0 0.0
    %2100 = vmatprep.subr.mxu0 0.0
    %2101 = vmatpush1.msra.mxu0 0.0
    %2102 = vmatprep.subr.mxu0 0.0
    %2103 = vmatpush1.msra.mxu0 0.0
    %2104 = vmatprep.subr.mxu0 0.0
    %2105 = vmatpush1.msra.mxu0 0.0
    %2106 = vmatprep.subr.mxu0 0.0
    %2107 = vmatpush1.msra.mxu0 0.0
    %2108 = vmatprep.subr.mxu0 0.0
    %2109 = vmatpush1.msra.mxu0 0.0
    %2110 = vmatprep.subr.mxu0 0.0
    %2111 = vmatpush1.msra.mxu0 0.0
    %2112 = vmatprep.subr.mxu0 0.0
    %2113 = vmatpush1.msra.mxu0 0.0
    %2114 = vmatprep.subr.mxu0 0.0
    %2115 = vmatpush1.msra.mxu0 0.0
    %2116 = vmatprep.subr.mxu0 0.0
    %2117 = vmatpush1.msra.mxu0 0.0
    %2118 = vmatprep.subr.mxu0 0.0
    %2119 = vmatpush1.msra.mxu0 %v164
    %2120 = vmatprep.subr.mxu0 0.0
    %2121 = vmatpush1.msra.mxu0 %v163
    %2122 = vmatprep.subr.mxu0 0.0
    %2123 = vmatpush1.msra.mxu0 %v162
    %2124 = vmatprep.subr.mxu0 0.0
    %2125 = vmatpush1.msra.mxu0 %v161
    %2126 = vmatprep.subr.mxu0 0.0
    %2127 = vmatpush2.msra.mxu0 0.0
    %2128 = vmatprep.subr.mxu0 0.0
    %2129 = vmatpush2.msra.mxu0 0.0
    %2130 = vmatprep.subr.mxu0 0.0
    %2131 = vmatpush2.msra.mxu0 0.0
    %2132 = vmatprep.subr.mxu0 0.0
    %2133 = vmatpush2.msra.mxu0 0.0
    %2134 = vmatprep.subr.mxu0 0.0
    %2135 = vmatpush2.msra.mxu0 0.0
    %2136 = vmatprep.subr.mxu0 0.0
    %2137 = vmatpush2.msra.mxu0 0.0
    %2138 = vmatprep.subr.mxu0 0.0
    %2139 = vmatpush2.msra.mxu0 0.0
    %2140 = vmatprep.subr.mxu0 0.0
    %2141 = vmatpush2.msra.mxu0 0.0
    %2142 = vmatprep.subr.mxu0 0.0
    %2143 = vmatpush2.msra.mxu0 0.0
    %2144 = vmatprep.subr.mxu0 0.0
    %2145 = vmatpush2.msra.mxu0 0.0
    %2146 = vmatprep.subr.mxu0 0.0
    %2147 = vmatpush2.msra.mxu0 0.0
    %2148 = vmatprep.subr.mxu0 0.0
    %2149 = vmatpush2.msra.mxu0 0.0
    %2150 = vmatprep.subr.mxu0 0.0
    %2151 = vmatpush2.msra.mxu0 0.0
    %2152 = vmatprep.subr.mxu0 0.0
    %2153 = vmatpush2.msra.mxu0 0.0
    %2154 = vmatprep.subr.mxu0 0.0
    %2155 = vmatpush2.msra.mxu0 0.0
    %2156 = vmatprep.subr.mxu0 0.0
    %2157 = vmatpush2.msra.mxu0 0.0
    %2158 = vmatprep.mubr.f32.mxu0 0.0
    %2159 = vmatmul.mubr.f32.gmra.mxu0 %v879
    %v2160 = vpop.f32.mrf.mxu0
    %v2161 = vadd.f32 %v1578, %v2160
    %v2162 = vpop.f32.mrf.mxu0
    %2163 = vdwg.mxu0
    %2165 = vrot.lane.b32.xlu0 %v2093, 96
    %v2166 = vpop.permute.xlu0 %2165
    %v2167 = vsel %vm177, %v2166, 0
    %2169 = vmatprep.subr.mxu0 0.0
    %2170 = vmatpush1.msra.mxu0 0.0
    %2171 = vmatprep.subr.mxu0 0.0
    %2172 = vmatpush1.msra.mxu0 0.0
    %2173 = vmatprep.subr.mxu0 0.0
    %2174 = vmatpush1.msra.mxu0 0.0
    %2175 = vmatprep.subr.mxu0 0.0
    %2176 = vmatpush1.msra.mxu0 0.0
    %2177 = vmatprep.subr.mxu0 0.0
    %2178 = vmatpush1.msra.mxu0 0.0
    %2179 = vmatprep.subr.mxu0 0.0
    %2180 = vmatpush1.msra.mxu0 0.0
    %2181 = vmatprep.subr.mxu0 0.0
    %2182 = vmatpush1.msra.mxu0 0.0
    %2183 = vmatprep.subr.mxu0 0.0
    %2184 = vmatpush1.msra.mxu0 0.0
    %2185 = vmatprep.subr.mxu0 0.0
    %2186 = vmatpush1.msra.mxu0 0.0
    %2187 = vmatprep.subr.mxu0 0.0
    %2188 = vmatpush1.msra.mxu0 0.0
    %2189 = vmatprep.subr.mxu0 0.0
    %2190 = vmatpush1.msra.mxu0 0.0
    %2191 = vmatprep.subr.mxu0 0.0
    %2192 = vmatpush1.msra.mxu0 0.0
    %2193 = vmatprep.subr.mxu0 0.0
    %2194 = vmatpush1.msra.mxu0 %v168
    %2195 = vmatprep.subr.mxu0 0.0
    %2196 = vmatpush1.msra.mxu0 %v167
    %2197 = vmatprep.subr.mxu0 0.0
    %2198 = vmatpush1.msra.mxu0 %v166
    %2199 = vmatprep.subr.mxu0 0.0
    %2200 = vmatpush1.msra.mxu0 %v165
    %2201 = vmatprep.subr.mxu0 0.0
    %2202 = vmatpush2.msra.mxu0 0.0
    %2203 = vmatprep.subr.mxu0 0.0
    %2204 = vmatpush2.msra.mxu0 0.0
    %2205 = vmatprep.subr.mxu0 0.0
    %2206 = vmatpush2.msra.mxu0 0.0
    %2207 = vmatprep.subr.mxu0 0.0
    %2208 = vmatpush2.msra.mxu0 0.0
    %2209 = vmatprep.subr.mxu0 0.0
    %2210 = vmatpush2.msra.mxu0 0.0
    %2211 = vmatprep.subr.mxu0 0.0
    %2212 = vmatpush2.msra.mxu0 0.0
    %2213 = vmatprep.subr.mxu0 0.0
    %2214 = vmatpush2.msra.mxu0 0.0
    %2215 = vmatprep.subr.mxu0 0.0
    %2216 = vmatpush2.msra.mxu0 0.0
    %2217 = vmatprep.subr.mxu0 0.0
    %2218 = vmatpush2.msra.mxu0 0.0
    %2219 = vmatprep.subr.mxu0 0.0
    %2220 = vmatpush2.msra.mxu0 0.0
    %2221 = vmatprep.subr.mxu0 0.0
    %2222 = vmatpush2.msra.mxu0 0.0
    %2223 = vmatprep.subr.mxu0 0.0
    %2224 = vmatpush2.msra.mxu0 0.0
    %2225 = vmatprep.subr.mxu0 0.0
    %2226 = vmatpush2.msra.mxu0 0.0
    %2227 = vmatprep.subr.mxu0 0.0
    %2228 = vmatpush2.msra.mxu0 0.0
    %2229 = vmatprep.subr.mxu0 0.0
    %2230 = vmatpush2.msra.mxu0 0.0
    %2231 = vmatprep.subr.mxu0 0.0
    %2232 = vmatpush2.msra.mxu0 0.0
    %2233 = vmatprep.mubr.f32.mxu0 0.0
    %2234 = vmatmul.mubr.f32.gmra.mxu0 %v2167
    %v2235 = vpop.f32.mrf.mxu0
    %v2236 = vadd.f32 %v1654, %v2235
    %v2237 = vpop.f32.mrf.mxu0
    %2238 = vdwg.mxu0
    %v2239 = vadd.f32 %v2161, %v2236
    %v2240 = vxor.u32 %v2239, 2147483648
    %v2241 = vmul.f32 %v2240, 1.442695
    %v2242 = vpow.pop %v2241
    %v2243 = vadd.f32 %v2242, 1.0
    %v2244 = vrcp.pop %v2243
    %v2245 = vmul.f32 1.0, %v2244
    %2247 = vrot.lane.b32.xlu0 %v2236, 64
    %v2248 = vpop.permute.xlu0 %2247
    %v2250 = vmul.f32 %v2245, %v2248
    %2252 = vrot.lane.b32.xlu0 %v2250, 64
    %v2253 = vpop.permute.xlu0 %2252
    %v2255 = vadd.f32 %v2161, %v2253
    %v2256 = vtanh.pop %v2255
    %v2257 = vsub.f32 1.0, %v2245
    %2259 = vrot.lane.b32.xlu0 %v2256, 96
    %v2260 = vpop.permute.xlu0 %2259
    %v2262 = vmul.f32 %v2257, %v2260
    %v2263 = vmul.f32 %v2245, %v2093
    %v2264 = vadd.f32 %v2262, %v2263
    %2265 = vmatprep.subr.mxu0 0.0
    %2266 = vmatpush1.msra.mxu0 0.0
    %2267 = vmatprep.subr.mxu0 0.0
    %2268 = vmatpush1.msra.mxu0 0.0
    %2269 = vmatprep.subr.mxu0 0.0
    %2270 = vmatpush1.msra.mxu0 0.0
    %2271 = vmatprep.subr.mxu0 0.0
    %2272 = vmatpush1.msra.mxu0 0.0
    %2273 = vmatprep.subr.mxu0 0.0
    %2274 = vmatpush1.msra.mxu0 0.0
    %2275 = vmatprep.subr.mxu0 0.0
    %2276 = vmatpush1.msra.mxu0 0.0
    %2277 = vmatprep.subr.mxu0 0.0
    %2278 = vmatpush1.msra.mxu0 0.0
    %2279 = vmatprep.subr.mxu0 0.0
    %2280 = vmatpush1.msra.mxu0 0.0
    %2281 = vmatprep.subr.mxu0 0.0
    %2282 = vmatpush1.msra.mxu0 0.0
    %2283 = vmatprep.subr.mxu0 0.0
    %2284 = vmatpush1.msra.mxu0 0.0
    %2285 = vmatprep.subr.mxu0 0.0
    %2286 = vmatpush1.msra.mxu0 0.0
    %2287 = vmatprep.subr.mxu0 0.0
    %2288 = vmatpush1.msra.mxu0 0.0
    %2289 = vmatprep.subr.mxu0 0.0
    %2290 = vmatpush1.msra.mxu0 %v164
    %2291 = vmatprep.subr.mxu0 0.0
    %2292 = vmatpush1.msra.mxu0 %v163
    %2293 = vmatprep.subr.mxu0 0.0
    %2294 = vmatpush1.msra.mxu0 %v162
    %2295 = vmatprep.subr.mxu0 0.0
    %2296 = vmatpush1.msra.mxu0 %v161
    %2297 = vmatprep.subr.mxu0 0.0
    %2298 = vmatpush2.msra.mxu0 0.0
    %2299 = vmatprep.subr.mxu0 0.0
    %2300 = vmatpush2.msra.mxu0 0.0
    %2301 = vmatprep.subr.mxu0 0.0
    %2302 = vmatpush2.msra.mxu0 0.0
    %2303 = vmatprep.subr.mxu0 0.0
    %2304 = vmatpush2.msra.mxu0 0.0
    %2305 = vmatprep.subr.mxu0 0.0
    %2306 = vmatpush2.msra.mxu0 0.0
    %2307 = vmatprep.subr.mxu0 0.0
    %2308 = vmatpush2.msra.mxu0 0.0
    %2309 = vmatprep.subr.mxu0 0.0
    %2310 = vmatpush2.msra.mxu0 0.0
    %2311 = vmatprep.subr.mxu0 0.0
    %2312 = vmatpush2.msra.mxu0 0.0
    %2313 = vmatprep.subr.mxu0 0.0
    %2314 = vmatpush2.msra.mxu0 0.0
    %2315 = vmatprep.subr.mxu0 0.0
    %2316 = vmatpush2.msra.mxu0 0.0
    %2317 = vmatprep.subr.mxu0 0.0
    %2318 = vmatpush2.msra.mxu0 0.0
    %2319 = vmatprep.subr.mxu0 0.0
    %2320 = vmatpush2.msra.mxu0 0.0
    %2321 = vmatprep.subr.mxu0 0.0
    %2322 = vmatpush2.msra.mxu0 0.0
    %2323 = vmatprep.subr.mxu0 0.0
    %2324 = vmatpush2.msra.mxu0 0.0
    %2325 = vmatprep.subr.mxu0 0.0
    %2326 = vmatpush2.msra.mxu0 0.0
    %2327 = vmatprep.subr.mxu0 0.0
    %2328 = vmatpush2.msra.mxu0 0.0
    %2329 = vmatprep.mubr.f32.mxu0 0.0
    %2330 = vmatmul.mubr.f32.gmra.mxu0 %v705
    %v2331 = vpop.f32.mrf.mxu0
    %v2332 = vadd.f32 %v1578, %v2331
    %v2333 = vpop.f32.mrf.mxu0
    %2334 = vdwg.mxu0
    %2336 = vrot.lane.b32.xlu0 %v2264, 96
    %v2337 = vpop.permute.xlu0 %2336
    %v2338 = vsel %vm177, %v2337, 0
    %2340 = vmatprep.subr.mxu0 0.0
    %2341 = vmatpush1.msra.mxu0 0.0
    %2342 = vmatprep.subr.mxu0 0.0
    %2343 = vmatpush1.msra.mxu0 0.0
    %2344 = vmatprep.subr.mxu0 0.0
    %2345 = vmatpush1.msra.mxu0 0.0
    %2346 = vmatprep.subr.mxu0 0.0
    %2347 = vmatpush1.msra.mxu0 0.0
    %2348 = vmatprep.subr.mxu0 0.0
    %2349 = vmatpush1.msra.mxu0 0.0
    %2350 = vmatprep.subr.mxu0 0.0
    %2351 = vmatpush1.msra.mxu0 0.0
    %2352 = vmatprep.subr.mxu0 0.0
    %2353 = vmatpush1.msra.mxu0 0.0
    %2354 = vmatprep.subr.mxu0 0.0
    %2355 = vmatpush1.msra.mxu0 0.0
    %2356 = vmatprep.subr.mxu0 0.0
    %2357 = vmatpush1.msra.mxu0 0.0
    %2358 = vmatprep.subr.mxu0 0.0
    %2359 = vmatpush1.msra.mxu0 0.0
    %2360 = vmatprep.subr.mxu0 0.0
    %2361 = vmatpush1.msra.mxu0 0.0
    %2362 = vmatprep.subr.mxu0 0.0
    %2363 = vmatpush1.msra.mxu0 0.0
    %2364 = vmatprep.subr.mxu0 0.0
    %2365 = vmatpush1.msra.mxu0 %v168
    %2366 = vmatprep.subr.mxu0 0.0
    %2367 = vmatpush1.msra.mxu0 %v167
    %2368 = vmatprep.subr.mxu0 0.0
    %2369 = vmatpush1.msra.mxu0 %v166
    %2370 = vmatprep.subr.mxu0 0.0
    %2371 = vmatpush1.msra.mxu0 %v165
    %2372 = vmatprep.subr.mxu0 0.0
    %2373 = vmatpush2.msra.mxu0 0.0
    %2374 = vmatprep.subr.mxu0 0.0
    %2375 = vmatpush2.msra.mxu0 0.0
    %2376 = vmatprep.subr.mxu0 0.0
    %2377 = vmatpush2.msra.mxu0 0.0
    %2378 = vmatprep.subr.mxu0 0.0
    %2379 = vmatpush2.msra.mxu0 0.0
    %2380 = vmatprep.subr.mxu0 0.0
    %2381 = vmatpush2.msra.mxu0 0.0
    %2382 = vmatprep.subr.mxu0 0.0
    %2383 = vmatpush2.msra.mxu0 0.0
    %2384 = vmatprep.subr.mxu0 0.0
    %2385 = vmatpush2.msra.mxu0 0.0
    %2386 = vmatprep.subr.mxu0 0.0
    %2387 = vmatpush2.msra.mxu0 0.0
    %2388 = vmatprep.subr.mxu0 0.0
    %2389 = vmatpush2.msra.mxu0 0.0
    %2390 = vmatprep.subr.mxu0 0.0
    %2391 = vmatpush2.msra.mxu0 0.0
    %2392 = vmatprep.subr.mxu0 0.0
    %2393 = vmatpush2.msra.mxu0 0.0
    %2394 = vmatprep.subr.mxu0 0.0
    %2395 = vmatpush2.msra.mxu0 0.0
    %2396 = vmatprep.subr.mxu0 0.0
    %2397 = vmatpush2.msra.mxu0 0.0
    %2398 = vmatprep.subr.mxu0 0.0
    %2399 = vmatpush2.msra.mxu0 0.0
    %2400 = vmatprep.subr.mxu0 0.0
    %2401 = vmatpush2.msra.mxu0 0.0
    %2402 = vmatprep.subr.mxu0 0.0
    %2403 = vmatpush2.msra.mxu0 0.0
    %2404 = vmatprep.mubr.f32.mxu0 0.0
    %2405 = vmatmul.mubr.f32.gmra.mxu0 %v2338
    %v2406 = vpop.f32.mrf.mxu0
    %v2407 = vadd.f32 %v1654, %v2406
    %v2408 = vpop.f32.mrf.mxu0
    %2409 = vdwg.mxu0
    %v2410 = vadd.f32 %v2332, %v2407
    %v2411 = vxor.u32 %v2410, 2147483648
    %v2412 = vmul.f32 %v2411, 1.442695
    %v2413 = vpow.pop %v2412
    %v2414 = vadd.f32 %v2413, 1.0
    %v2415 = vrcp.pop %v2414
    %v2416 = vmul.f32 1.0, %v2415
    %2418 = vrot.lane.b32.xlu0 %v2407, 64
    %v2419 = vpop.permute.xlu0 %2418
    %v2421 = vmul.f32 %v2416, %v2419
    %2423 = vrot.lane.b32.xlu0 %v2421, 64
    %v2424 = vpop.permute.xlu0 %2423
    %v2426 = vadd.f32 %v2332, %v2424
    %v2427 = vtanh.pop %v2426
    %v2428 = vsub.f32 1.0, %v2416
    %2430 = vrot.lane.b32.xlu0 %v2427, 96
    %v2431 = vpop.permute.xlu0 %2430
    %v2433 = vmul.f32 %v2428, %v2431
    %v2434 = vmul.f32 %v2416, %v2264
    %v2435 = vadd.f32 %v2433, %v2434
    %2436 = vmatprep.subr.mxu0 0.0
    %2437 = vmatpush1.msra.mxu0 0.0
    %2438 = vmatprep.subr.mxu0 0.0
    %2439 = vmatpush1.msra.mxu0 0.0
    %2440 = vmatprep.subr.mxu0 0.0
    %2441 = vmatpush1.msra.mxu0 0.0
    %2442 = vmatprep.subr.mxu0 0.0
    %2443 = vmatpush1.msra.mxu0 0.0
    %2444 = vmatprep.subr.mxu0 0.0
    %2445 = vmatpush1.msra.mxu0 0.0
    %2446 = vmatprep.subr.mxu0 0.0
    %2447 = vmatpush1.msra.mxu0 0.0
    %2448 = vmatprep.subr.mxu0 0.0
    %2449 = vmatpush1.msra.mxu0 0.0
    %2450 = vmatprep.subr.mxu0 0.0
    %2451 = vmatpush1.msra.mxu0 0.0
    %2452 = vmatprep.subr.mxu0 0.0
    %2453 = vmatpush1.msra.mxu0 0.0
    %2454 = vmatprep.subr.mxu0 0.0
    %2455 = vmatpush1.msra.mxu0 0.0
    %2456 = vmatprep.subr.mxu0 0.0
    %2457 = vmatpush1.msra.mxu0 0.0
    %2458 = vmatprep.subr.mxu0 0.0
    %2459 = vmatpush1.msra.mxu0 0.0
    %2460 = vmatprep.subr.mxu0 0.0
    %2461 = vmatpush1.msra.mxu0 %v164
    %2462 = vmatprep.subr.mxu0 0.0
    %2463 = vmatpush1.msra.mxu0 %v163
    %2464 = vmatprep.subr.mxu0 0.0
    %2465 = vmatpush1.msra.mxu0 %v162
    %2466 = vmatprep.subr.mxu0 0.0
    %2467 = vmatpush1.msra.mxu0 %v161
    %2468 = vmatprep.subr.mxu0 0.0
    %2469 = vmatpush2.msra.mxu0 0.0
    %2470 = vmatprep.subr.mxu0 0.0
    %2471 = vmatpush2.msra.mxu0 0.0
    %2472 = vmatprep.subr.mxu0 0.0
    %2473 = vmatpush2.msra.mxu0 0.0
    %2474 = vmatprep.subr.mxu0 0.0
    %2475 = vmatpush2.msra.mxu0 0.0
    %2476 = vmatprep.subr.mxu0 0.0
    %2477 = vmatpush2.msra.mxu0 0.0
    %2478 = vmatprep.subr.mxu0 0.0
    %2479 = vmatpush2.msra.mxu0 0.0
    %2480 = vmatprep.subr.mxu0 0.0
    %2481 = vmatpush2.msra.mxu0 0.0
    %2482 = vmatprep.subr.mxu0 0.0
    %2483 = vmatpush2.msra.mxu0 0.0
    %2484 = vmatprep.subr.mxu0 0.0
    %2485 = vmatpush2.msra.mxu0 0.0
    %2486 = vmatprep.subr.mxu0 0.0
    %2487 = vmatpush2.msra.mxu0 0.0
    %2488 = vmatprep.subr.mxu0 0.0
    %2489 = vmatpush2.msra.mxu0 0.0
    %2490 = vmatprep.subr.mxu0 0.0
    %2491 = vmatpush2.msra.mxu0 0.0
    %2492 = vmatprep.subr.mxu0 0.0
    %2493 = vmatpush2.msra.mxu0 0.0
    %2494 = vmatprep.subr.mxu0 0.0
    %2495 = vmatpush2.msra.mxu0 0.0
    %2496 = vmatprep.subr.mxu0 0.0
    %2497 = vmatpush2.msra.mxu0 0.0
    %2498 = vmatprep.subr.mxu0 0.0
    %2499 = vmatpush2.msra.mxu0 0.0
    %2500 = vmatprep.mubr.f32.mxu0 0.0
    %2501 = vmatmul.mubr.f32.gmra.mxu0 %v531
    %v2502 = vpop.f32.mrf.mxu0
    %v2503 = vadd.f32 %v1578, %v2502
    %v2504 = vpop.f32.mrf.mxu0
    %2505 = vdwg.mxu0
    %2507 = vrot.lane.b32.xlu0 %v2435, 96
    %v2508 = vpop.permute.xlu0 %2507
    %v2509 = vsel %vm177, %v2508, 0
    %2511 = vmatprep.subr.mxu0 0.0
    %2512 = vmatpush1.msra.mxu0 0.0
    %2513 = vmatprep.subr.mxu0 0.0
    %2514 = vmatpush1.msra.mxu0 0.0
    %2515 = vmatprep.subr.mxu0 0.0
    %2516 = vmatpush1.msra.mxu0 0.0
    %2517 = vmatprep.subr.mxu0 0.0
    %2518 = vmatpush1.msra.mxu0 0.0
    %2519 = vmatprep.subr.mxu0 0.0
    %2520 = vmatpush1.msra.mxu0 0.0
    %2521 = vmatprep.subr.mxu0 0.0
    %2522 = vmatpush1.msra.mxu0 0.0
    %2523 = vmatprep.subr.mxu0 0.0
    %2524 = vmatpush1.msra.mxu0 0.0
    %2525 = vmatprep.subr.mxu0 0.0
    %2526 = vmatpush1.msra.mxu0 0.0
    %2527 = vmatprep.subr.mxu0 0.0
    %2528 = vmatpush1.msra.mxu0 0.0
    %2529 = vmatprep.subr.mxu0 0.0
    %2530 = vmatpush1.msra.mxu0 0.0
    %2531 = vmatprep.subr.mxu0 0.0
    %2532 = vmatpush1.msra.mxu0 0.0
    %2533 = vmatprep.subr.mxu0 0.0
    %2534 = vmatpush1.msra.mxu0 0.0
    %2535 = vmatprep.subr.mxu0 0.0
    %2536 = vmatpush1.msra.mxu0 %v168
    %2537 = vmatprep.subr.mxu0 0.0
    %2538 = vmatpush1.msra.mxu0 %v167
    %2539 = vmatprep.subr.mxu0 0.0
    %2540 = vmatpush1.msra.mxu0 %v166
    %2541 = vmatprep.subr.mxu0 0.0
    %2542 = vmatpush1.msra.mxu0 %v165
    %2543 = vmatprep.subr.mxu0 0.0
    %2544 = vmatpush2.msra.mxu0 0.0
    %2545 = vmatprep.subr.mxu0 0.0
    %2546 = vmatpush2.msra.mxu0 0.0
    %2547 = vmatprep.subr.mxu0 0.0
    %2548 = vmatpush2.msra.mxu0 0.0
    %2549 = vmatprep.subr.mxu0 0.0
    %2550 = vmatpush2.msra.mxu0 0.0
    %2551 = vmatprep.subr.mxu0 0.0
    %2552 = vmatpush2.msra.mxu0 0.0
    %2553 = vmatprep.subr.mxu0 0.0
    %2554 = vmatpush2.msra.mxu0 0.0
    %2555 = vmatprep.subr.mxu0 0.0
    %2556 = vmatpush2.msra.mxu0 0.0
    %2557 = vmatprep.subr.mxu0 0.0
    %2558 = vmatpush2.msra.mxu0 0.0
    %2559 = vmatprep.subr.mxu0 0.0
    %2560 = vmatpush2.msra.mxu0 0.0
    %2561 = vmatprep.subr.mxu0 0.0
    %2562 = vmatpush2.msra.mxu0 0.0
    %2563 = vmatprep.subr.mxu0 0.0
    %2564 = vmatpush2.msra.mxu0 0.0
    %2565 = vmatprep.subr.mxu0 0.0
    %2566 = vmatpush2.msra.mxu0 0.0
    %2567 = vmatprep.subr.mxu0 0.0
    %2568 = vmatpush2.msra.mxu0 0.0
    %2569 = vmatprep.subr.mxu0 0.0
    %2570 = vmatpush2.msra.mxu0 0.0
    %2571 = vmatprep.subr.mxu0 0.0
    %2572 = vmatpush2.msra.mxu0 0.0
    %2573 = vmatprep.subr.mxu0 0.0
    %2574 = vmatpush2.msra.mxu0 0.0
    %2575 = vmatprep.mubr.f32.mxu0 0.0
    %2576 = vmatmul.mubr.f32.gmra.mxu0 %v2509
    %v2577 = vpop.f32.mrf.mxu0
    %v2578 = vadd.f32 %v1654, %v2577
    %v2579 = vpop.f32.mrf.mxu0
    %2580 = vdwg.mxu0
    %v2581 = vadd.f32 %v2503, %v2578
    %v2582 = vxor.u32 %v2581, 2147483648
    %v2583 = vmul.f32 %v2582, 1.442695
    %v2584 = vpow.pop %v2583
    %v2585 = vadd.f32 %v2584, 1.0
    %v2586 = vrcp.pop %v2585
    %v2587 = vmul.f32 1.0, %v2586
    %2589 = vrot.lane.b32.xlu0 %v2578, 64
    %v2590 = vpop.permute.xlu0 %2589
    %v2592 = vmul.f32 %v2587, %v2590
    %2594 = vrot.lane.b32.xlu0 %v2592, 64
    %v2595 = vpop.permute.xlu0 %2594
    %v2597 = vadd.f32 %v2503, %v2595
    %v2598 = vtanh.pop %v2597
    %v2599 = vsub.f32 1.0, %v2587
    %2601 = vrot.lane.b32.xlu0 %v2598, 96
    %v2602 = vpop.permute.xlu0 %2601
    %v2604 = vmul.f32 %v2599, %v2602
    %v2605 = vmul.f32 %v2587, %v2435
    %v2606 = vadd.f32 %v2604, %v2605
    %2607 = vmatprep.subr.mxu0 0.0
    %2608 = vmatpush1.msra.mxu0 0.0
    %2609 = vmatprep.subr.mxu0 0.0
    %2610 = vmatpush1.msra.mxu0 0.0
    %2611 = vmatprep.subr.mxu0 0.0
    %2612 = vmatpush1.msra.mxu0 0.0
    %2613 = vmatprep.subr.mxu0 0.0
    %2614 = vmatpush1.msra.mxu0 0.0
    %2615 = vmatprep.subr.mxu0 0.0
    %2616 = vmatpush1.msra.mxu0 0.0
    %2617 = vmatprep.subr.mxu0 0.0
    %2618 = vmatpush1.msra.mxu0 0.0
    %2619 = vmatprep.subr.mxu0 0.0
    %2620 = vmatpush1.msra.mxu0 0.0
    %2621 = vmatprep.subr.mxu0 0.0
    %2622 = vmatpush1.msra.mxu0 0.0
    %2623 = vmatprep.subr.mxu0 0.0
    %2624 = vmatpush1.msra.mxu0 0.0
    %2625 = vmatprep.subr.mxu0 0.0
    %2626 = vmatpush1.msra.mxu0 0.0
    %2627 = vmatprep.subr.mxu0 0.0
    %2628 = vmatpush1.msra.mxu0 0.0
    %2629 = vmatprep.subr.mxu0 0.0
    %2630 = vmatpush1.msra.mxu0 0.0
    %2631 = vmatprep.subr.mxu0 0.0
    %2632 = vmatpush1.msra.mxu0 %v164
    %2633 = vmatprep.subr.mxu0 0.0
    %2634 = vmatpush1.msra.mxu0 %v163
    %2635 = vmatprep.subr.mxu0 0.0
    %2636 = vmatpush1.msra.mxu0 %v162
    %2637 = vmatprep.subr.mxu0 0.0
    %2638 = vmatpush1.msra.mxu0 %v161
    %2639 = vmatprep.subr.mxu0 0.0
    %2640 = vmatpush2.msra.mxu0 0.0
    %2641 = vmatprep.subr.mxu0 0.0
    %2642 = vmatpush2.msra.mxu0 0.0
    %2643 = vmatprep.subr.mxu0 0.0
    %2644 = vmatpush2.msra.mxu0 0.0
    %2645 = vmatprep.subr.mxu0 0.0
    %2646 = vmatpush2.msra.mxu0 0.0
    %2647 = vmatprep.subr.mxu0 0.0
    %2648 = vmatpush2.msra.mxu0 0.0
    %2649 = vmatprep.subr.mxu0 0.0
    %2650 = vmatpush2.msra.mxu0 0.0
    %2651 = vmatprep.subr.mxu0 0.0
    %2652 = vmatpush2.msra.mxu0 0.0
    %2653 = vmatprep.subr.mxu0 0.0
    %2654 = vmatpush2.msra.mxu0 0.0
    %2655 = vmatprep.subr.mxu0 0.0
    %2656 = vmatpush2.msra.mxu0 0.0
    %2657 = vmatprep.subr.mxu0 0.0
    %2658 = vmatpush2.msra.mxu0 0.0
    %2659 = vmatprep.subr.mxu0 0.0
    %2660 = vmatpush2.msra.mxu0 0.0
    %2661 = vmatprep.subr.mxu0 0.0
    %2662 = vmatpush2.msra.mxu0 0.0
    %2663 = vmatprep.subr.mxu0 0.0
    %2664 = vmatpush2.msra.mxu0 0.0
    %2665 = vmatprep.subr.mxu0 0.0
    %2666 = vmatpush2.msra.mxu0 0.0
    %2667 = vmatprep.subr.mxu0 0.0
    %2668 = vmatpush2.msra.mxu0 0.0
    %2669 = vmatprep.subr.mxu0 0.0
    %2670 = vmatpush2.msra.mxu0 0.0
    %2671 = vmatprep.mubr.f32.mxu0 0.0
    %2672 = vmatmul.mubr.f32.gmra.mxu0 %v357
    %v2673 = vpop.f32.mrf.mxu0
    %v2674 = vadd.f32 %v1578, %v2673
    %v2675 = vpop.f32.mrf.mxu0
    %2676 = vdwg.mxu0
    %2678 = vrot.lane.b32.xlu0 %v2606, 96
    %v2679 = vpop.permute.xlu0 %2678
    %v2680 = vsel %vm177, %v2679, 0
    %2682 = vmatprep.subr.mxu0 0.0
    %2683 = vmatpush1.msra.mxu0 0.0
    %2684 = vmatprep.subr.mxu0 0.0
    %2685 = vmatpush1.msra.mxu0 0.0
    %2686 = vmatprep.subr.mxu0 0.0
    %2687 = vmatpush1.msra.mxu0 0.0
    %2688 = vmatprep.subr.mxu0 0.0
    %2689 = vmatpush1.msra.mxu0 0.0
    %2690 = vmatprep.subr.mxu0 0.0
    %2691 = vmatpush1.msra.mxu0 0.0
    %2692 = vmatprep.subr.mxu0 0.0
    %2693 = vmatpush1.msra.mxu0 0.0
    %2694 = vmatprep.subr.mxu0 0.0
    %2695 = vmatpush1.msra.mxu0 0.0
    %2696 = vmatprep.subr.mxu0 0.0
    %2697 = vmatpush1.msra.mxu0 0.0
    %2698 = vmatprep.subr.mxu0 0.0
    %2699 = vmatpush1.msra.mxu0 0.0
    %2700 = vmatprep.subr.mxu0 0.0
    %2701 = vmatpush1.msra.mxu0 0.0
    %2702 = vmatprep.subr.mxu0 0.0
    %2703 = vmatpush1.msra.mxu0 0.0
    %2704 = vmatprep.subr.mxu0 0.0
    %2705 = vmatpush1.msra.mxu0 0.0
    %2706 = vmatprep.subr.mxu0 0.0
    %2707 = vmatpush1.msra.mxu0 %v168
    %2708 = vmatprep.subr.mxu0 0.0
    %2709 = vmatpush1.msra.mxu0 %v167
    %2710 = vmatprep.subr.mxu0 0.0
    %2711 = vmatpush1.msra.mxu0 %v166
    %2712 = vmatprep.subr.mxu0 0.0
    %2713 = vmatpush1.msra.mxu0 %v165
    %2714 = vmatprep.subr.mxu0 0.0
    %2715 = vmatpush2.msra.mxu0 0.0
    %2716 = vmatprep.subr.mxu0 0.0
    %2717 = vmatpush2.msra.mxu0 0.0
    %2718 = vmatprep.subr.mxu0 0.0
    %2719 = vmatpush2.msra.mxu0 0.0
    %2720 = vmatprep.subr.mxu0 0.0
    %2721 = vmatpush2.msra.mxu0 0.0
    %2722 = vmatprep.subr.mxu0 0.0
    %2723 = vmatpush2.msra.mxu0 0.0
    %2724 = vmatprep.subr.mxu0 0.0
    %2725 = vmatpush2.msra.mxu0 0.0
    %2726 = vmatprep.subr.mxu0 0.0
    %2727 = vmatpush2.msra.mxu0 0.0
    %2728 = vmatprep.subr.mxu0 0.0
    %2729 = vmatpush2.msra.mxu0 0.0
    %2730 = vmatprep.subr.mxu0 0.0
    %2731 = vmatpush2.msra.mxu0 0.0
    %2732 = vmatprep.subr.mxu0 0.0
    %2733 = vmatpush2.msra.mxu0 0.0
    %2734 = vmatprep.subr.mxu0 0.0
    %2735 = vmatpush2.msra.mxu0 0.0
    %2736 = vmatprep.subr.mxu0 0.0
    %2737 = vmatpush2.msra.mxu0 0.0
    %2738 = vmatprep.subr.mxu0 0.0
    %2739 = vmatpush2.msra.mxu0 0.0
    %2740 = vmatprep.subr.mxu0 0.0
    %2741 = vmatpush2.msra.mxu0 0.0
    %2742 = vmatprep.subr.mxu0 0.0
    %2743 = vmatpush2.msra.mxu0 0.0
    %2744 = vmatprep.subr.mxu0 0.0
    %2745 = vmatpush2.msra.mxu0 0.0
    %2746 = vmatprep.mubr.f32.mxu0 0.0
    %2747 = vmatmul.mubr.f32.gmra.mxu0 %v2680
    %v2748 = vpop.f32.mrf.mxu0
    %v2749 = vadd.f32 %v1654, %v2748
    %v2750 = vpop.f32.mrf.mxu0
    %2751 = vdwg.mxu0
    %v2752 = vadd.f32 %v2674, %v2749
    %v2753 = vxor.u32 %v2752, 2147483648
    %v2754 = vmul.f32 %v2753, 1.442695
    %v2755 = vpow.pop %v2754
    %v2756 = vadd.f32 %v2755, 1.0
    %v2757 = vrcp.pop %v2756
    %v2758 = vmul.f32 1.0, %v2757
    %2760 = vrot.lane.b32.xlu0 %v2749, 64
    %v2761 = vpop.permute.xlu0 %2760
    %v2763 = vmul.f32 %v2758, %v2761
    %2765 = vrot.lane.b32.xlu0 %v2763, 64
    %v2766 = vpop.permute.xlu0 %2765
    %v2768 = vadd.f32 %v2674, %v2766
    %v2769 = vtanh.pop %v2768
    %v2770 = vsub.f32 1.0, %v2758
    %2772 = vrot.lane.b32.xlu0 %v2769, 96
    %v2773 = vpop.permute.xlu0 %2772
    %v2775 = vmul.f32 %v2770, %v2773
    %v2776 = vmul.f32 %v2758, %v2606
    %v2777 = vadd.f32 %v2775, %v2776
    %2778 = vmatprep.subr.mxu0 0.0
    %2779 = vmatpush1.msra.mxu0 0.0
    %2780 = vmatprep.subr.mxu0 0.0
    %2781 = vmatpush1.msra.mxu0 0.0
    %2782 = vmatprep.subr.mxu0 0.0
    %2783 = vmatpush1.msra.mxu0 0.0
    %2784 = vmatprep.subr.mxu0 0.0
    %2785 = vmatpush1.msra.mxu0 0.0
    %2786 = vmatprep.subr.mxu0 0.0
    %2787 = vmatpush1.msra.mxu0 0.0
    %2788 = vmatprep.subr.mxu0 0.0
    %2789 = vmatpush1.msra.mxu0 0.0
    %2790 = vmatprep.subr.mxu0 0.0
    %2791 = vmatpush1.msra.mxu0 0.0
    %2792 = vmatprep.subr.mxu0 0.0
    %2793 = vmatpush1.msra.mxu0 0.0
    %2794 = vmatprep.subr.mxu0 0.0
    %2795 = vmatpush1.msra.mxu0 0.0
    %2796 = vmatprep.subr.mxu0 0.0
    %2797 = vmatpush1.msra.mxu0 0.0
    %2798 = vmatprep.subr.mxu0 0.0
    %2799 = vmatpush1.msra.mxu0 0.0
    %2800 = vmatprep.subr.mxu0 0.0
    %2801 = vmatpush1.msra.mxu0 0.0
    %2802 = vmatprep.subr.mxu0 0.0
    %2803 = vmatpush1.msra.mxu0 %v164
    %2804 = vmatprep.subr.mxu0 0.0
    %2805 = vmatpush1.msra.mxu0 %v163
    %2806 = vmatprep.subr.mxu0 0.0
    %2807 = vmatpush1.msra.mxu0 %v162
    %2808 = vmatprep.subr.mxu0 0.0
    %2809 = vmatpush1.msra.mxu0 %v161
    %2810 = vmatprep.subr.mxu0 0.0
    %2811 = vmatpush2.msra.mxu0 0.0
    %2812 = vmatprep.subr.mxu0 0.0
    %2813 = vmatpush2.msra.mxu0 0.0
    %2814 = vmatprep.subr.mxu0 0.0
    %2815 = vmatpush2.msra.mxu0 0.0
    %2816 = vmatprep.subr.mxu0 0.0
    %2817 = vmatpush2.msra.mxu0 0.0
    %2818 = vmatprep.subr.mxu0 0.0
    %2819 = vmatpush2.msra.mxu0 0.0
    %2820 = vmatprep.subr.mxu0 0.0
    %2821 = vmatpush2.msra.mxu0 0.0
    %2822 = vmatprep.subr.mxu0 0.0
    %2823 = vmatpush2.msra.mxu0 0.0
    %2824 = vmatprep.subr.mxu0 0.0
    %2825 = vmatpush2.msra.mxu0 0.0
    %2826 = vmatprep.subr.mxu0 0.0
    %2827 = vmatpush2.msra.mxu0 0.0
    %2828 = vmatprep.subr.mxu0 0.0
    %2829 = vmatpush2.msra.mxu0 0.0
    %2830 = vmatprep.subr.mxu0 0.0
    %2831 = vmatpush2.msra.mxu0 0.0
    %2832 = vmatprep.subr.mxu0 0.0
    %2833 = vmatpush2.msra.mxu0 0.0
    %2834 = vmatprep.subr.mxu0 0.0
    %2835 = vmatpush2.msra.mxu0 0.0
    %2836 = vmatprep.subr.mxu0 0.0
    %2837 = vmatpush2.msra.mxu0 0.0
    %2838 = vmatprep.subr.mxu0 0.0
    %2839 = vmatpush2.msra.mxu0 0.0
    %2840 = vmatprep.subr.mxu0 0.0
    %2841 = vmatpush2.msra.mxu0 0.0
    %2842 = vmatprep.mubr.f32.mxu0 0.0
    %2843 = vmatmul.mubr.f32.gmra.mxu0 %v179
    %v2844 = vpop.f32.mrf.mxu0
    %v2845 = vadd.f32 %v1578, %v2844
    %v2846 = vpop.f32.mrf.mxu0
    %2847 = vdwg.mxu0
    %2849 = vrot.lane.b32.xlu0 %v2777, 96
    %v2850 = vpop.permute.xlu0 %2849
    %v2851 = vsel %vm177, %v2850, 0
    %2853 = vmatprep.subr.mxu0 0.0
    %2854 = vmatpush1.msra.mxu0 0.0
    %2855 = vmatprep.subr.mxu0 0.0
    %2856 = vmatpush1.msra.mxu0 0.0
    %2857 = vmatprep.subr.mxu0 0.0
    %2858 = vmatpush1.msra.mxu0 0.0
    %2859 = vmatprep.subr.mxu0 0.0
    %2860 = vmatpush1.msra.mxu0 0.0
    %2861 = vmatprep.subr.mxu0 0.0
    %2862 = vmatpush1.msra.mxu0 0.0
    %2863 = vmatprep.subr.mxu0 0.0
    %2864 = vmatpush1.msra.mxu0 0.0
    %2865 = vmatprep.subr.mxu0 0.0
    %2866 = vmatpush1.msra.mxu0 0.0
    %2867 = vmatprep.subr.mxu0 0.0
    %2868 = vmatpush1.msra.mxu0 0.0
    %2869 = vmatprep.subr.mxu0 0.0
    %2870 = vmatpush1.msra.mxu0 0.0
    %2871 = vmatprep.subr.mxu0 0.0
    %2872 = vmatpush1.msra.mxu0 0.0
    %2873 = vmatprep.subr.mxu0 0.0
    %2874 = vmatpush1.msra.mxu0 0.0
    %2875 = vmatprep.subr.mxu0 0.0
    %2876 = vmatpush1.msra.mxu0 0.0
    %2877 = vmatprep.subr.mxu0 0.0
    %2878 = vmatpush1.msra.mxu0 %v168
    %2879 = vmatprep.subr.mxu0 0.0
    %2880 = vmatpush1.msra.mxu0 %v167
    %2881 = vmatprep.subr.mxu0 0.0
    %2882 = vmatpush1.msra.mxu0 %v166
    %2883 = vmatprep.subr.mxu0 0.0
    %2884 = vmatpush1.msra.mxu0 %v165
    %2885 = vmatprep.subr.mxu0 0.0
    %2886 = vmatpush2.msra.mxu0 0.0
    %2887 = vmatprep.subr.mxu0 0.0
    %2888 = vmatpush2.msra.mxu0 0.0
    %2889 = vmatprep.subr.mxu0 0.0
    %2890 = vmatpush2.msra.mxu0 0.0
    %2891 = vmatprep.subr.mxu0 0.0
    %2892 = vmatpush2.msra.mxu0 0.0
    %2893 = vmatprep.subr.mxu0 0.0
    %2894 = vmatpush2.msra.mxu0 0.0
    %2895 = vmatprep.subr.mxu0 0.0
    %2896 = vmatpush2.msra.mxu0 0.0
    %2897 = vmatprep.subr.mxu0 0.0
    %2898 = vmatpush2.msra.mxu0 0.0
    %2899 = vmatprep.subr.mxu0 0.0
    %2900 = vmatpush2.msra.mxu0 0.0
    %2901 = vmatprep.subr.mxu0 0.0
    %2902 = vmatpush2.msra.mxu0 0.0
    %2903 = vmatprep.subr.mxu0 0.0
    %2904 = vmatpush2.msra.mxu0 0.0
    %2905 = vmatprep.subr.mxu0 0.0
    %2906 = vmatpush2.msra.mxu0 0.0
    %2907 = vmatprep.subr.mxu0 0.0
    %2908 = vmatpush2.msra.mxu0 0.0
    %2909 = vmatprep.subr.mxu0 0.0
    %2910 = vmatpush2.msra.mxu0 0.0
    %2911 = vmatprep.subr.mxu0 0.0
    %2912 = vmatpush2.msra.mxu0 0.0
    %2913 = vmatprep.subr.mxu0 0.0
    %2914 = vmatpush2.msra.mxu0 0.0
    %2915 = vmatprep.subr.mxu0 0.0
    %2916 = vmatpush2.msra.mxu0 0.0
    %2917 = vmatprep.mubr.f32.mxu0 0.0
    %2918 = vmatmul.mubr.f32.gmra.mxu0 %v2851
    %v2919 = vpop.f32.mrf.mxu0
    %v2920 = vadd.f32 %v1654, %v2919
    %v2921 = vpop.f32.mrf.mxu0
    %2922 = vdwg.mxu0
    %v2923 = vadd.f32 %v2845, %v2920
    %v2924 = vxor.u32 %v2923, 2147483648
    %v2925 = vmul.f32 %v2924, 1.442695
    %v2926 = vpow.pop %v2925
    %v2927 = vadd.f32 %v2926, 1.0
    %v2928 = vrcp.pop %v2927
    %v2929 = vmul.f32 1.0, %v2928
    %2931 = vrot.lane.b32.xlu0 %v2920, 64
    %v2932 = vpop.permute.xlu0 %2931
    %v2934 = vmul.f32 %v2929, %v2932
    %2936 = vrot.lane.b32.xlu0 %v2934, 64
    %v2937 = vpop.permute.xlu0 %2936
    %v2939 = vadd.f32 %v2845, %v2937
    %v2940 = vtanh.pop %v2939
    %v2941 = vsub.f32 1.0, %v2929
    %2943 = vrot.lane.b32.xlu0 %v2940, 96
    %v2944 = vpop.permute.xlu0 %2943
    %v2946 = vmul.f32 %v2941, %v2944
    %v2947 = vmul.f32 %v2929, %v2777
    %v2948 = vadd.f32 %v2946, %v2947
    %v2950 = vsel %vm177, %v431, %v2948
    %vm2951 = vcmask 517120
    %2952 = vst.msk [vmem:[#allocation2] sm:$0x3] %vm2951, %v2950
    %v2954 = vsel %vm177, %v605, %v2777
    %s2955 = scalar_lea.vmem [#allocation2], 2
    %2956 = vst.msk [vmem:[%s2955] sm:$0x3] %vm2951, %v2954
    %v2958 = vsel %vm177, %v779, %v2606
    %s2959 = scalar_lea.vmem [#allocation2], 4
    %2960 = vst.msk [vmem:[%s2959] sm:$0x3] %vm2951, %v2958
    %v2962 = vsel %vm177, %v953, %v2435
    %s2963 = scalar_lea.vmem [#allocation2], 6
    %2964 = vst.msk [vmem:[%s2963] sm:$0x3] %vm2951, %v2962
    %v2966 = vsel %vm177, %v1127, %v2264
    %s2967 = scalar_lea.vmem [#allocation2], 8
    %2968 = vst.msk [vmem:[%s2967] sm:$0x3] %vm2951, %v2966
    %v2970 = vsel %vm177, %v1301, %v2093
    %s2971 = scalar_lea.vmem [#allocation2], 10
    %2972 = vst.msk [vmem:[%s2971] sm:$0x3] %vm2951, %v2970
    %v2974 = vsel %vm177, %v1475, %v1922
    %s2975 = scalar_lea.vmem [#allocation2], 12
    %2976 = vst.msk [vmem:[%s2975] sm:$0x3] %vm2951, %v2974
    %2978 = vrot.lane.b32.xlu0 %v1573, 96
    %v2979 = vpop.permute.xlu0 %2978
    %v2981 = vsel %vm177, %v2979, %v1751
    %s2982 = scalar_lea.vmem [#allocation2], 14
    %2983 = vst.msk [vmem:[%s2982] sm:$0x3] %vm2951, %v2981
    %v2984 = vsel %vm177, %v2979, %v2948
    %v2985 = vld [vmem:[%s10] sm:$0xff]
    %v2986 = vld [vmem:[%s10 + $0x8] sm:$0xff]
    %v2987 = vld [vmem:[%s10 + $0x10] sm:$0xff]
    %v2988 = vld [vmem:[%s10 + $0x18] sm:$0xff]
    %v2989 = vld [vmem:[%s10 + $0x20] sm:$0xff]
    %v2990 = vld [vmem:[%s10 + $0x28] sm:$0xff]
    %v2991 = vld [vmem:[%s10 + $0x30] sm:$0xff]
    %v2992 = vld [vmem:[%s10 + $0x38] sm:$0xff]
    %v2993 = vld [vmem:[%s11] sm:$0x1]
    %v2995 = vlaneseq
    %v2996 = vshrl.u32 %v2995, 7
    %v2997 = vsub.s32 0, %v2996
    %v2998 = vrot.slane %v2993, %v2997
    %v3001 = vsel %vm69, %v2984, 0
    %3003 = vmatprep.subr.mxu0 0.0
    %3004 = vmatpush1.msra.mxu0 0.0
    %3005 = vmatprep.subr.mxu0 0.0
    %3006 = vmatpush1.msra.mxu0 0.0
    %3007 = vmatprep.subr.mxu0 0.0
    %3008 = vmatpush1.msra.mxu0 0.0
    %3009 = vmatprep.subr.mxu0 0.0
    %3010 = vmatpush1.msra.mxu0 0.0
    %3011 = vmatprep.subr.mxu0 0.0
    %3012 = vmatpush1.msra.mxu0 0.0
    %3013 = vmatprep.subr.mxu0 0.0
    %3014 = vmatpush1.msra.mxu0 0.0
    %3015 = vmatprep.subr.mxu0 0.0
    %3016 = vmatpush1.msra.mxu0 0.0
    %3017 = vmatprep.subr.mxu0 0.0
    %3018 = vmatpush1.msra.mxu0 0.0
    %3019 = vmatprep.subr.mxu0 0.0
    %3020 = vmatpush1.msra.mxu0 %v2992
    %3021 = vmatprep.subr.mxu0 0.0
    %3022 = vmatpush1.msra.mxu0 %v2991
    %3023 = vmatprep.subr.mxu0 0.0
    %3024 = vmatpush1.msra.mxu0 %v2990
    %3025 = vmatprep.subr.mxu0 0.0
    %3026 = vmatpush1.msra.mxu0 %v2989
    %3027 = vmatprep.subr.mxu0 0.0
    %3028 = vmatpush1.msra.mxu0 %v2988
    %3029 = vmatprep.subr.mxu0 0.0
    %3030 = vmatpush1.msra.mxu0 %v2987
    %3031 = vmatprep.subr.mxu0 0.0
    %3032 = vmatpush1.msra.mxu0 %v2986
    %3033 = vmatprep.subr.mxu0 0.0
    %3034 = vmatpush1.msra.mxu0 %v2985
    %3035 = vmatprep.subr.mxu0 0.0
    %3036 = vmatpush2.msra.mxu0 0.0
    %3037 = vmatprep.subr.mxu0 0.0
    %3038 = vmatpush2.msra.mxu0 0.0
    %3039 = vmatprep.subr.mxu0 0.0
    %3040 = vmatpush2.msra.mxu0 0.0
    %3041 = vmatprep.subr.mxu0 0.0
    %3042 = vmatpush2.msra.mxu0 0.0
    %3043 = vmatprep.subr.mxu0 0.0
    %3044 = vmatpush2.msra.mxu0 0.0
    %3045 = vmatprep.subr.mxu0 0.0
    %3046 = vmatpush2.msra.mxu0 0.0
    %3047 = vmatprep.subr.mxu0 0.0
    %3048 = vmatpush2.msra.mxu0 0.0
    %3049 = vmatprep.subr.mxu0 0.0
    %3050 = vmatpush2.msra.mxu0 0.0
    %3051 = vmatprep.subr.mxu0 0.0
    %3052 = vmatpush2.msra.mxu0 0.0
    %3053 = vmatprep.subr.mxu0 0.0
    %3054 = vmatpush2.msra.mxu0 0.0
    %3055 = vmatprep.subr.mxu0 0.0
    %3056 = vmatpush2.msra.mxu0 0.0
    %3057 = vmatprep.subr.mxu0 0.0
    %3058 = vmatpush2.msra.mxu0 0.0
    %3059 = vmatprep.subr.mxu0 0.0
    %3060 = vmatpush2.msra.mxu0 0.0
    %3061 = vmatprep.subr.mxu0 0.0
    %3062 = vmatpush2.msra.mxu0 0.0
    %3063 = vmatprep.subr.mxu0 0.0
    %3064 = vmatpush2.msra.mxu0 0.0
    %3065 = vmatprep.subr.mxu0 0.0
    %3066 = vmatpush2.msra.mxu0 0.0
    %3067 = vmatprep.mubr.f32.mxu0 0.0
    %3068 = vmatmul.mubr.f32.gmra.mxu0 %v3001
    %v3069 = vpop.f32.mrf.mxu0
    %v3070 = vadd.f32 %v2998, %v3069
    %v3071 = vpop.f32.mrf.mxu0
    %3072 = vdwg.mxu0
    %v3073 = vmax.f32 %v3070, 0.0
    %vm3074 = vcmask 254976
    %3075 = vst.msk [vmem:[#allocation4] sm:$0x3] %vm3074, %v3073
    // Predicated region
    $region50: #{tpu_custom_call.1} parent=1 // pred_check
      _
    $region51: #{tpu_custom_call.1} parent=1 // pred_check_branch
      %3077 = sbr.rel (0) target = $region53
    $region52: #{tpu_custom_call.1} parent=1 // pred_region
      %s3079 = ssub.s32 256, 256
      %3080 = vsyncadd [#allocation3], %s3079
      %s3081 = sshll.u32 [#allocation2], 4
      %s3082 = int_to_ptr.vmem [resolvable:$true] %s3081
      %3087 = dma.vmem_to_hbm [thread:$0]  %s3082, 256, %s12, [#allocation3], 32, 32, 2
    $region53: #{tpu_custom_call.1} parent=1 // pred_fallthru
      _
    // Predicated region
    $region54: #{tpu_custom_call.1} parent=1 // pred_check
      _
    $region55: #{tpu_custom_call.1} parent=1 // pred_check_branch
      %3089 = sbr.rel (0) target = $region57
    $region56: #{tpu_custom_call.1} parent=1 // pred_region
      %s3091 = ssub.s32 32, 32
      %3092 = vsyncadd [#allocation5], %s3091
      %s3094 = sshll.u32 [#allocation4], 4
      %s3095 = int_to_ptr.vmem [resolvable:$true] %s3094
      %3097 = dma.vmem_to_hbm [thread:$0]  %s3095, 32, %s13, [#allocation5]
    $region57: #{tpu_custom_call.1} parent=1 // pred_fallthru
      _
    // Predicated region
    $region58: #{tpu_custom_call.1} parent=1 // pred_check
      _
    $region59: #{tpu_custom_call.1} parent=1 // pred_check_branch
      %3099 = sbr.rel (0) target = $region61
    $region60: #{tpu_custom_call.1} parent=1 // pred_region
      %3100 = dma.done [#allocation3], 256
    $region61: #{tpu_custom_call.1} parent=1 // pred_fallthru
      _
    // Predicated region
    $region62: #{tpu_custom_call.1} parent=1 // pred_check
      _
    $region63: #{tpu_custom_call.1} parent=1 // pred_check_branch
      %3102 = sbr.rel (0) target = $region65
    $region64: #{tpu_custom_call.1} parent=1 // pred_region
      %3103 = dma.done [#allocation5], 32
    $region65: #{tpu_custom_call.1} parent=1 // pred_fallthru
      _
    %3104 = vsyncpa [#allocation3], 1
    %3105 = vsyncpa [#allocation5], 1

</llo_original>
